<compile_context>
chip_gen: v7x
topology: tpu7x:2x2x1
jax: 0.10.0
libtpu: 0.0.40
codegen_flags: <defaults>
</compile_context>

<pallas_src>
import jax
import jax.numpy as jnp
from jax.experimental import pallas as pl
from jax.experimental.pallas import tpu as pltpu

EPS = 1e-5  # PyTorch BatchNorm2d default eps


def _round_up(x, m):
    return ((x + m - 1) // m) * m


# ---------------------------------------------------------------------------
# In-kernel helpers (traced inside kernel bodies)
# ---------------------------------------------------------------------------
def _pad_into_scratch(scratch_ref, val, H, W):
    """Write val (TB,H,W,C) into scratch (TB,H+2,Wp8,C); zero only the halo."""
    TB, Hp, Wp, C = scratch_ref.shape
    scratch_ref[:, 0:1, :, :] = jnp.zeros((TB, 1, Wp, C), jnp.float32)
    scratch_ref[:, H + 1:H + 2, :, :] = jnp.zeros((TB, 1, Wp, C), jnp.float32)
    scratch_ref[:, :, 0:1, :] = jnp.zeros((TB, Hp, 1, C), jnp.float32)
    scratch_ref[:, :, W + 1:Wp, :] = jnp.zeros((TB, Hp, Wp - W - 1, C),
                                               jnp.float32)
    scratch_ref[:, 1:H + 1, 1:W + 1, :] = val


def _conv3x3(pad_ref, w_ref, H, W):
    """3x3 'same' conv as 9 shifted matmuls accumulated in f32.

    pad_ref: VMEM ref (TB, H+2, Wp8, Cin), already halo-padded.
    w_ref  : ref (3, 3, Cin, Cout)
    returns (TB*H*W, Cout) float32
    """
    TB, _, _, Cin = pad_ref.shape
    Cout = w_ref.shape[-1]
    rows = TB * H * W
    w = w_ref[...]                                       # (3,3,Cin,Cout), small
    acc = jnp.zeros((rows, Cout), jnp.float32)
    for dy in range(3):
        for dx in range(3):
            xs = pad_ref[:, dy:dy + H, dx:dx + W, :].reshape(rows, Cin)
            acc = acc + jnp.dot(xs, w[dy, dx],
                                preferred_element_type=jnp.float32)
    return acc


def _partial_stats(y2d):
    """Per-channel (sum, sumsq) of a (rows, C) tile -> (1, 8, C) sublane-padded."""
    C = y2d.shape[-1]
    s1 = jnp.sum(y2d, axis=0, keepdims=True)
    s2 = jnp.sum(y2d * y2d, axis=0, keepdims=True)
    pad = jnp.zeros((6, C), jnp.float32)
    return jnp.concatenate([s1, s2, pad], axis=0)[None]


# ---------------------------------------------------------------------------
# Kernels
# ---------------------------------------------------------------------------
def conv1_kernel(x_ref, w1_ref, y1_ref, st1_ref, xpad_sc):
    """conv1 (bias dropped: cancels under train-mode BN) + partial BN1 stats."""
    TB, H, W, _ = x_ref.shape
    _pad_into_scratch(xpad_sc, x_ref[...], H, W)
    y = _conv3x3(xpad_sc, w1_ref, H, W)                  # (TB*H*W, Cmid)
    y1_ref[...] = y.reshape(TB, H, W, y.shape[-1])
    st1_ref[...] = _partial_stats(y)


def conv2_kernel(y1_ref, sc1_ref, sh1_ref, w2_ref, y2_ref, st2_ref, hpad_sc):
    """apply BN1 (fused scale/shift) + ReLU, then conv2 + partial BN2 stats."""
    TB, H, W, Cm = y1_ref.shape
    scale = sc1_ref[...].reshape(1, 1, 1, Cm)
    shift = sh1_ref[...].reshape(1, 1, 1, Cm)
    h = jnp.maximum(y1_ref[...] * scale + shift, 0.0)
    _pad_into_scratch(hpad_sc, h, H, W)
    y = _conv3x3(hpad_sc, w2_ref, H, W)                  # (TB*H*W, Cout)
    y2_ref[...] = y.reshape(TB, H, W, y.shape[-1])
    st2_ref[...] = _partial_stats(y)


# ---------------------------------------------------------------------------
# Wrapper
# ---------------------------------------------------------------------------
def _scale_shift(partial_stats, gamma, beta, count):
    """Fold partial (sum, sumsq) into per-channel BN scale/shift (f32)."""
    s1 = jnp.sum(partial_stats[:, 0, :], axis=0)
    s2 = jnp.sum(partial_stats[:, 1, :], axis=0)
    mean = s1 / count
    var = jnp.maximum(s2 / count - mean * mean, 0.0)
    scale = gamma.reshape(-1) * jax.lax.rsqrt(var + EPS)
    shift = beta.reshape(-1) - mean * scale
    return scale.reshape(1, -1), shift.reshape(1, -1)


def _pick_tb(N, H, W, c_in, c_mid, c_out,
             budget_bytes=10 * 1024 * 1024, target_rows=4096):
    """Largest divisor of N fitting a conservative VMEM budget; keep >=2 grid
    steps when N >= 2 so v7x's two TensorCores both get work."""
    wp8 = _round_up(W + 2, 8)

    def step_bytes(tb):
        rows = tb * H * W
        b = 2 * rows * c_in * 4                      # input tile (dbl-buffered)
        b += 2 * rows * max(c_mid, c_out) * 4        # output tile (dbl-buffered)
        b += tb * (H + 2) * wp8 * max(c_in, c_mid) * 4   # halo scratch
        b += rows * max(c_mid, c_out) * 4            # conv accumulator
        b += 2 * 9 * max(c_in * c_mid, c_mid * c_out) * 4  # weights
        return b

    best = 1
    for tb in range(1, N + 1):
        if N % tb:
            continue
        if tb * H * W > target_rows and tb > 1:
            continue
        if step_bytes(tb) <= budget_bytes:
            best = tb
    if N >= 2 and N // best < 2:
        for tb in range(best - 1, 0, -1):
            if N % tb == 0 and N // tb >= 2:
                best = tb
                break
    return best


def double_conv_forward(x_nchw, params):
    """params = (w1, b1, g1, be1, w2, b2, g2, be2); conv weights are (3,3,Cin,Cout).

    Conv biases b1/b2 are accepted but not applied: under train-mode BatchNorm
    they shift the mean and cancel exactly.
    """
    w1, b1, g1, be1, w2, b2, g2, be2 = params
    N, Cin, H, W = x_nchw.shape
    Cmid = w1.shape[-1]
    Cout = w2.shape[-1]
    Wp8 = _round_up(W + 2, 8)

    # NCHW -> NHWC (channels on lanes), actual channel counts (no 128-padding).
    x = jnp.transpose(x_nchw, (0, 2, 3, 1)).astype(jnp.float32)
    w1f = w1.astype(jnp.float32)
    w2f = w2.astype(jnp.float32)

    TB = _pick_tb(N, H, W, Cin, Cmid, Cout)
    grid_n = N // TB
    count = float(N * H * W)
    cp = pltpu.CompilerParams(
        dimension_semantics=("parallel",),
        vmem_limit_bytes=32 * 1024 * 1024,   # raise v5e default; v6e/v7x-safe
    )

    # ---- pass 1: conv1 + partial BN1 stats ---------------------------------
    ce1 = pl.CostEstimate(
        flops=2 * N * H * W * 9 * Cin * Cmid, transcendentals=0,
        bytes_accessed=4 * (N * H * W * (Cin + Cmid)
                            + 9 * Cin * Cmid + grid_n * 8 * Cmid))
    y1, st1 = pl.pallas_call(
        conv1_kernel,
        grid=(grid_n,),
        in_specs=[
            pl.BlockSpec((TB, H, W, Cin), lambda n: (n, 0, 0, 0)),
            pl.BlockSpec((3, 3, Cin, Cmid), lambda n: (0, 0, 0, 0)),
        ],
        out_specs=(
            pl.BlockSpec((TB, H, W, Cmid), lambda n: (n, 0, 0, 0)),
            pl.BlockSpec((1, 8, Cmid), lambda n: (n, 0, 0)),
        ),
        out_shape=(
            jax.ShapeDtypeStruct((N, H, W, Cmid), jnp.float32),
            jax.ShapeDtypeStruct((grid_n, 8, Cmid), jnp.float32),
        ),
        scratch_shapes=[pltpu.VMEM((TB, H + 2, Wp8, Cin), jnp.float32)],
        compiler_params=cp,
        cost_estimate=ce1,
    )(x, w1f)

    scale1, shift1 = _scale_shift(st1, g1.astype(jnp.float32),
                                  be1.astype(jnp.float32), count)

    # ---- pass 2: BN1 + ReLU + conv2 + partial BN2 stats --------------------
    ce2 = pl.CostEstimate(
        flops=2 * N * H * W * 9 * Cmid * Cout, transcendentals=0,
        bytes_accessed=4 * (N * H * W * (Cmid + Cout)
                            + 9 * Cmid * Cout + grid_n * 8 * Cout))
    y2, st2 = pl.pallas_call(
        conv2_kernel,
        grid=(grid_n,),
        in_specs=[
            pl.BlockSpec((TB, H, W, Cmid), lambda n: (n, 0, 0, 0)),
            pl.BlockSpec((1, Cmid), lambda n: (0, 0)),
            pl.BlockSpec((1, Cmid), lambda n: (0, 0)),
            pl.BlockSpec((3, 3, Cmid, Cout), lambda n: (0, 0, 0, 0)),
        ],
        out_specs=(
            pl.BlockSpec((TB, H, W, Cout), lambda n: (n, 0, 0, 0)),
            pl.BlockSpec((1, 8, Cout), lambda n: (n, 0, 0)),
        ),
        out_shape=(
            jax.ShapeDtypeStruct((N, H, W, Cout), jnp.float32),
            jax.ShapeDtypeStruct((grid_n, 8, Cout), jnp.float32),
        ),
        scratch_shapes=[pltpu.VMEM((TB, H + 2, Wp8, Cmid), jnp.float32)],
        compiler_params=cp,
        cost_estimate=ce2,
    )(y1, scale1, shift1, w2f)

    scale2, shift2 = _scale_shift(st2, g2.astype(jnp.float32),
                                  be2.astype(jnp.float32), count)

    # ---- BN2 applied in the wrapper (fused by XLA with the transpose) ------
    out_nhwc = y2 * scale2.reshape(1, 1, 1, Cout) + shift2.reshape(1, 1, 1, Cout)
    return jnp.transpose(out_nhwc, (0, 3, 1, 2))   # back to NCHW


# ---------------------------------------------------------------------------
# Params / reference
# ---------------------------------------------------------------------------
def init_params(key, in_channels, out_channels, mid_channels=None):
    if not mid_channels:
        mid_channels = out_channels
    k1, k2, k3, k4 = jax.random.split(key, 4)
    w1 = jax.random.uniform(k1, (3, 3, in_channels, mid_channels),
                            jnp.float32, -0.3, 0.3)
    b1 = jax.random.uniform(k2, (1, mid_channels), jnp.float32, -0.1, 0.1)
    w2 = jax.random.uniform(k3, (3, 3, mid_channels, out_channels),
                            jnp.float32, -0.3, 0.3)
    b2 = jax.random.uniform(k4, (1, out_channels), jnp.float32, -0.1, 0.1)
    g1 = jnp.ones((1, mid_channels), jnp.float32)
    be1 = jnp.zeros((1, mid_channels), jnp.float32)
    g2 = jnp.ones((1, out_channels), jnp.float32)
    be2 = jnp.zeros((1, out_channels), jnp.float32)
    return (w1, b1, g1, be1, w2, b2, g2, be2)


def ref_forward(x_nchw, params):
    """Pure-JAX reference (NCHW) matching the PyTorch module in train mode."""
    w1, b1, g1, be1, w2, b2, g2, be2 = params

    def conv(x, w, b):
        wk = jnp.transpose(w, (3, 2, 0, 1))  # OIHW
        y = jax.lax.conv_general_dilated(
            x, wk, window_strides=(1, 1), padding=((1, 1), (1, 1)),
            dimension_numbers=('NCHW', 'OIHW', 'NCHW'))
        return y + b.reshape(1, -1, 1, 1)

    def bn(y, g, be):
        mean = jnp.mean(y, axis=(0, 2, 3), keepdims=True)
        var = jnp.mean((y - mean) ** 2, axis=(0, 2, 3), keepdims=True)
        return (y - mean) * jax.lax.rsqrt(var + EPS) * g.reshape(1, -1, 1, 1) \
            + be.reshape(1, -1, 1, 1)

    y = jnp.maximum(bn(conv(x_nchw, w1, b1), g1, be1), 0.0)
    return bn(conv(y, w2, b2), g2, be2)


if __name__ == "__main__":
    key = jax.random.PRNGKey(0)
    kx, kp = jax.random.split(key)

    N, Cin, H, W = 2, 4, 16, 16
    Cmid, Cout = 8, 4
    x = jax.random.normal(kx, (N, Cin, H, W), jnp.float32)
    params = init_params(kp, Cin, Cout, Cmid)

    out = jax.block_until_ready(double_conv_forward(x, params))

    ref = ref_forward(x, params)
    assert out.shape == (N, Cout, H, W), out.shape
    assert jnp.allclose(out, ref, atol=2e-4, rtol=2e-4), \
        float(jnp.max(jnp.abs(out - ref)))

    print("KERNEL_OK")
</pallas_src>

<mosaic_0001>
module attributes {stable_mosaic.version = 11 : i64} {
  func.func @conv1_kernel(%arg0: i32, %arg1: memref<1x16x16x4xf32, #tpu.memory_space<vmem>>, %arg2: memref<3x3x4x8xf32, #tpu.memory_space<vmem>>, %arg3: memref<1x16x16x8xf32, #tpu.memory_space<vmem>>, %arg4: memref<1x8x8xf32, #tpu.memory_space<vmem>>, %arg5: memref<1x18x24x4xf32, #tpu.memory_space<vmem>>) attributes {dimension_semantics = [#tpu.dimension_semantics<parallel>], iteration_bounds = array<i64: 2>, scalar_prefetch = 0 : i64, scratch_operands = 1 : i64, tpu.core_type = #tpu.core_type<tc>, window_params = [{transform_indices = @transform_0, window_bounds = array<i64: 1, 16, 16, 4>}, {pipeline_mode = #tpu.pipeline_mode<synchronous>, transform_indices = @transform_1, window_bounds = array<i64: 3, 3, 4, 8>}, {transform_indices = @transform_2, window_bounds = array<i64: 1, 16, 16, 8>}, {transform_indices = @transform_3, window_bounds = array<i64: 1, 8, 8>}]} {
    %c0 = arith.constant 0 : index
    %c0_0 = arith.constant 0 : index
    %c0_1 = arith.constant 0 : index
    %c0_2 = arith.constant 0 : index
    %0 = vector.load %arg1[%c0, %c0_0, %c0_1, %c0_2] : memref<1x16x16x4xf32, #tpu.memory_space<vmem>>, vector<1x16x16x4xf32>
    %cst = arith.constant 0.000000e+00 : f32
    %1 = vector.broadcast %cst : f32 to vector<1x1x24x4xf32>
    %c0_3 = arith.constant 0 : index
    %c0_4 = arith.constant 0 : index
    %c0_5 = arith.constant 0 : index
    %c0_6 = arith.constant 0 : index
    %2 = vector.load %arg5[%c0_3, %c0_4, %c0_5, %c0_6] : memref<1x18x24x4xf32, #tpu.memory_space<vmem>>, vector<1x1x24x4xf32>
    tpu.vector_store %arg5[%c0_3, %c0_4, %c0_5, %c0_6], %1 {strides = array<i32>} : memref<1x18x24x4xf32, #tpu.memory_space<vmem>>, vector<1x1x24x4xf32>,
    %cst_7 = arith.constant 0.000000e+00 : f32
    %3 = vector.broadcast %cst_7 : f32 to vector<1x1x24x4xf32>
    %c0_8 = arith.constant 0 : index
    %c17 = arith.constant 17 : index
    %c0_9 = arith.constant 0 : index
    %c0_10 = arith.constant 0 : index
    %4 = vector.load %arg5[%c0_8, %c17, %c0_9, %c0_10] : memref<1x18x24x4xf32, #tpu.memory_space<vmem>>, vector<1x1x24x4xf32>
    tpu.vector_store %arg5[%c0_8, %c17, %c0_9, %c0_10], %3 {strides = array<i32>} : memref<1x18x24x4xf32, #tpu.memory_space<vmem>>, vector<1x1x24x4xf32>,
    %cst_11 = arith.constant 0.000000e+00 : f32
    %5 = vector.broadcast %cst_11 : f32 to vector<1x18x1x4xf32>
    %c0_12 = arith.constant 0 : index
    %c0_13 = arith.constant 0 : index
    %c0_14 = arith.constant 0 : index
    %c0_15 = arith.constant 0 : index
    %6 = vector.load %arg5[%c0_12, %c0_13, %c0_14, %c0_15] : memref<1x18x24x4xf32, #tpu.memory_space<vmem>>, vector<1x18x1x4xf32>
    tpu.vector_store %arg5[%c0_12, %c0_13, %c0_14, %c0_15], %5 {strides = array<i32>} : memref<1x18x24x4xf32, #tpu.memory_space<vmem>>, vector<1x18x1x4xf32>,
    %cst_16 = arith.constant 0.000000e+00 : f32
    %7 = vector.broadcast %cst_16 : f32 to vector<1x18x7x4xf32>
    %c0_17 = arith.constant 0 : index
    %c0_18 = arith.constant 0 : index
    %c17_19 = arith.constant 17 : index
    %c0_20 = arith.constant 0 : index
    %8 = vector.load %arg5[%c0_17, %c0_18, %c17_19, %c0_20] : memref<1x18x24x4xf32, #tpu.memory_space<vmem>>, vector<1x18x7x4xf32>
    tpu.vector_store %arg5[%c0_17, %c0_18, %c17_19, %c0_20], %7 {strides = array<i32>} : memref<1x18x24x4xf32, #tpu.memory_space<vmem>>, vector<1x18x7x4xf32>,
    %c0_21 = arith.constant 0 : index
    %c1 = arith.constant 1 : index
    %c1_22 = arith.constant 1 : index
    %c0_23 = arith.constant 0 : index
    %9 = vector.load %arg5[%c0_21, %c1, %c1_22, %c0_23] : memref<1x18x24x4xf32, #tpu.memory_space<vmem>>, vector<1x16x16x4xf32>
    tpu.vector_store %arg5[%c0_21, %c1, %c1_22, %c0_23], %0 {strides = array<i32>} : memref<1x18x24x4xf32, #tpu.memory_space<vmem>>, vector<1x16x16x4xf32>,
    %c0_24 = arith.constant 0 : index
    %c0_25 = arith.constant 0 : index
    %c0_26 = arith.constant 0 : index
    %c0_27 = arith.constant 0 : index
    %10 = vector.load %arg2[%c0_24, %c0_25, %c0_26, %c0_27] : memref<3x3x4x8xf32, #tpu.memory_space<vmem>>, vector<3x3x4x8xf32>
    %cst_28 = arith.constant 0.000000e+00 : f32
    %11 = vector.broadcast %cst_28 : f32 to vector<256x8xf32>
    %c0_29 = arith.constant 0 : index
    %c0_30 = arith.constant 0 : index
    %c0_31 = arith.constant 0 : index
    %c0_32 = arith.constant 0 : index
    %12 = vector.load %arg5[%c0_29, %c0_30, %c0_31, %c0_32] : memref<1x18x24x4xf32, #tpu.memory_space<vmem>>, vector<1x16x16x4xf32>
    %13 = vector.shape_cast %12 : vector<1x16x16x4xf32> to vector<256x4xf32>
    %14 = vector.extract_strided_slice %10 {offsets = [0, 0, 0, 0], sizes = [1, 1, 4, 8], strides = [1, 1, 1, 1]} : vector<3x3x4x8xf32> to vector<1x1x4x8xf32>
    %15 = vector.shape_cast %14 : vector<1x1x4x8xf32> to vector<4x8xf32>
    %cst_33 = arith.constant dense<0.000000e+00> : vector<256x8xf32>
    %16 = tpu.matmul %13, %15, %cst_33 {dimension_numbers = #tpu.dot_dimension_numbers<[1], [0], [0], [1], [0, 0, 1, 1], [], []>} : vector<256x4xf32>, vector<4x8xf32>, vector<256x8xf32> -> vector<256x8xf32>
    %17 = arith.addf %11, %16 : vector<256x8xf32>
    %c0_34 = arith.constant 0 : index
    %c0_35 = arith.constant 0 : index
    %c1_36 = arith.constant 1 : index
    %c0_37 = arith.constant 0 : index
    %18 = vector.load %arg5[%c0_34, %c0_35, %c1_36, %c0_37] : memref<1x18x24x4xf32, #tpu.memory_space<vmem>>, vector<1x16x16x4xf32>
    %19 = vector.shape_cast %18 : vector<1x16x16x4xf32> to vector<256x4xf32>
    %20 = vector.extract_strided_slice %10 {offsets = [0, 1, 0, 0], sizes = [1, 1, 4, 8], strides = [1, 1, 1, 1]} : vector<3x3x4x8xf32> to vector<1x1x4x8xf32>
    %21 = vector.shape_cast %20 : vector<1x1x4x8xf32> to vector<4x8xf32>
    %cst_38 = arith.constant dense<0.000000e+00> : vector<256x8xf32>
    %22 = tpu.matmul %19, %21, %cst_38 {dimension_numbers = #tpu.dot_dimension_numbers<[1], [0], [0], [1], [0, 0, 1, 1], [], []>} : vector<256x4xf32>, vector<4x8xf32>, vector<256x8xf32> -> vector<256x8xf32>
    %23 = arith.addf %17, %22 : vector<256x8xf32>
    %c0_39 = arith.constant 0 : index
    %c0_40 = arith.constant 0 : index
    %c2 = arith.constant 2 : index
    %c0_41 = arith.constant 0 : index
    %24 = vector.load %arg5[%c0_39, %c0_40, %c2, %c0_41] : memref<1x18x24x4xf32, #tpu.memory_space<vmem>>, vector<1x16x16x4xf32>
    %25 = vector.shape_cast %24 : vector<1x16x16x4xf32> to vector<256x4xf32>
    %26 = vector.extract_strided_slice %10 {offsets = [0, 2, 0, 0], sizes = [1, 1, 4, 8], strides = [1, 1, 1, 1]} : vector<3x3x4x8xf32> to vector<1x1x4x8xf32>
    %27 = vector.shape_cast %26 : vector<1x1x4x8xf32> to vector<4x8xf32>
    %cst_42 = arith.constant dense<0.000000e+00> : vector<256x8xf32>
    %28 = tpu.matmul %25, %27, %cst_42 {dimension_numbers = #tpu.dot_dimension_numbers<[1], [0], [0], [1], [0, 0, 1, 1], [], []>} : vector<256x4xf32>, vector<4x8xf32>, vector<256x8xf32> -> vector<256x8xf32>
    %29 = arith.addf %23, %28 : vector<256x8xf32>
    %c0_43 = arith.constant 0 : index
    %c1_44 = arith.constant 1 : index
    %c0_45 = arith.constant 0 : index
    %c0_46 = arith.constant 0 : index
    %30 = vector.load %arg5[%c0_43, %c1_44, %c0_45, %c0_46] : memref<1x18x24x4xf32, #tpu.memory_space<vmem>>, vector<1x16x16x4xf32>
    %31 = vector.shape_cast %30 : vector<1x16x16x4xf32> to vector<256x4xf32>
    %32 = vector.extract_strided_slice %10 {offsets = [1, 0, 0, 0], sizes = [1, 1, 4, 8], strides = [1, 1, 1, 1]} : vector<3x3x4x8xf32> to vector<1x1x4x8xf32>
    %33 = vector.shape_cast %32 : vector<1x1x4x8xf32> to vector<4x8xf32>
    %cst_47 = arith.constant dense<0.000000e+00> : vector<256x8xf32>
    %34 = tpu.matmul %31, %33, %cst_47 {dimension_numbers = #tpu.dot_dimension_numbers<[1], [0], [0], [1], [0, 0, 1, 1], [], []>} : vector<256x4xf32>, vector<4x8xf32>, vector<256x8xf32> -> vector<256x8xf32>
    %35 = arith.addf %29, %34 : vector<256x8xf32>
    %c0_48 = arith.constant 0 : index
    %c1_49 = arith.constant 1 : index
    %c1_50 = arith.constant 1 : index
    %c0_51 = arith.constant 0 : index
    %36 = vector.load %arg5[%c0_48, %c1_49, %c1_50, %c0_51] : memref<1x18x24x4xf32, #tpu.memory_space<vmem>>, vector<1x16x16x4xf32>
    %37 = vector.shape_cast %36 : vector<1x16x16x4xf32> to vector<256x4xf32>
    %38 = vector.extract_strided_slice %10 {offsets = [1, 1, 0, 0], sizes = [1, 1, 4, 8], strides = [1, 1, 1, 1]} : vector<3x3x4x8xf32> to vector<1x1x4x8xf32>
    %39 = vector.shape_cast %38 : vector<1x1x4x8xf32> to vector<4x8xf32>
    %cst_52 = arith.constant dense<0.000000e+00> : vector<256x8xf32>
    %40 = tpu.matmul %37, %39, %cst_52 {dimension_numbers = #tpu.dot_dimension_numbers<[1], [0], [0], [1], [0, 0, 1, 1], [], []>} : vector<256x4xf32>, vector<4x8xf32>, vector<256x8xf32> -> vector<256x8xf32>
    %41 = arith.addf %35, %40 : vector<256x8xf32>
    %c0_53 = arith.constant 0 : index
    %c1_54 = arith.constant 1 : index
    %c2_55 = arith.constant 2 : index
    %c0_56 = arith.constant 0 : index
    %42 = vector.load %arg5[%c0_53, %c1_54, %c2_55, %c0_56] : memref<1x18x24x4xf32, #tpu.memory_space<vmem>>, vector<1x16x16x4xf32>
    %43 = vector.shape_cast %42 : vector<1x16x16x4xf32> to vector<256x4xf32>
    %44 = vector.extract_strided_slice %10 {offsets = [1, 2, 0, 0], sizes = [1, 1, 4, 8], strides = [1, 1, 1, 1]} : vector<3x3x4x8xf32> to vector<1x1x4x8xf32>
    %45 = vector.shape_cast %44 : vector<1x1x4x8xf32> to vector<4x8xf32>
    %cst_57 = arith.constant dense<0.000000e+00> : vector<256x8xf32>
    %46 = tpu.matmul %43, %45, %cst_57 {dimension_numbers = #tpu.dot_dimension_numbers<[1], [0], [0], [1], [0, 0, 1, 1], [], []>} : vector<256x4xf32>, vector<4x8xf32>, vector<256x8xf32> -> vector<256x8xf32>
    %47 = arith.addf %41, %46 : vector<256x8xf32>
    %c0_58 = arith.constant 0 : index
    %c2_59 = arith.constant 2 : index
    %c0_60 = arith.constant 0 : index
    %c0_61 = arith.constant 0 : index
    %48 = vector.load %arg5[%c0_58, %c2_59, %c0_60, %c0_61] : memref<1x18x24x4xf32, #tpu.memory_space<vmem>>, vector<1x16x16x4xf32>
    %49 = vector.shape_cast %48 : vector<1x16x16x4xf32> to vector<256x4xf32>
    %50 = vector.extract_strided_slice %10 {offsets = [2, 0, 0, 0], sizes = [1, 1, 4, 8], strides = [1, 1, 1, 1]} : vector<3x3x4x8xf32> to vector<1x1x4x8xf32>
    %51 = vector.shape_cast %50 : vector<1x1x4x8xf32> to vector<4x8xf32>
    %cst_62 = arith.constant dense<0.000000e+00> : vector<256x8xf32>
    %52 = tpu.matmul %49, %51, %cst_62 {dimension_numbers = #tpu.dot_dimension_numbers<[1], [0], [0], [1], [0, 0, 1, 1], [], []>} : vector<256x4xf32>, vector<4x8xf32>, vector<256x8xf32> -> vector<256x8xf32>
    %53 = arith.addf %47, %52 : vector<256x8xf32>
    %c0_63 = arith.constant 0 : index
    %c2_64 = arith.constant 2 : index
    %c1_65 = arith.constant 1 : index
    %c0_66 = arith.constant 0 : index
    %54 = vector.load %arg5[%c0_63, %c2_64, %c1_65, %c0_66] : memref<1x18x24x4xf32, #tpu.memory_space<vmem>>, vector<1x16x16x4xf32>
    %55 = vector.shape_cast %54 : vector<1x16x16x4xf32> to vector<256x4xf32>
    %56 = vector.extract_strided_slice %10 {offsets = [2, 1, 0, 0], sizes = [1, 1, 4, 8], strides = [1, 1, 1, 1]} : vector<3x3x4x8xf32> to vector<1x1x4x8xf32>
    %57 = vector.shape_cast %56 : vector<1x1x4x8xf32> to vector<4x8xf32>
    %cst_67 = arith.constant dense<0.000000e+00> : vector<256x8xf32>
    %58 = tpu.matmul %55, %57, %cst_67 {dimension_numbers = #tpu.dot_dimension_numbers<[1], [0], [0], [1], [0, 0, 1, 1], [], []>} : vector<256x4xf32>, vector<4x8xf32>, vector<256x8xf32> -> vector<256x8xf32>
    %59 = arith.addf %53, %58 : vector<256x8xf32>
    %c0_68 = arith.constant 0 : index
    %c2_69 = arith.constant 2 : index
    %c2_70 = arith.constant 2 : index
    %c0_71 = arith.constant 0 : index
    %60 = vector.load %arg5[%c0_68, %c2_69, %c2_70, %c0_71] : memref<1x18x24x4xf32, #tpu.memory_space<vmem>>, vector<1x16x16x4xf32>
    %61 = vector.shape_cast %60 : vector<1x16x16x4xf32> to vector<256x4xf32>
    %62 = vector.extract_strided_slice %10 {offsets = [2, 2, 0, 0], sizes = [1, 1, 4, 8], strides = [1, 1, 1, 1]} : vector<3x3x4x8xf32> to vector<1x1x4x8xf32>
    %63 = vector.shape_cast %62 : vector<1x1x4x8xf32> to vector<4x8xf32>
    %cst_72 = arith.constant dense<0.000000e+00> : vector<256x8xf32>
    %64 = tpu.matmul %61, %63, %cst_72 {dimension_numbers = #tpu.dot_dimension_numbers<[1], [0], [0], [1], [0, 0, 1, 1], [], []>} : vector<256x4xf32>, vector<4x8xf32>, vector<256x8xf32> -> vector<256x8xf32>
    %65 = arith.addf %59, %64 : vector<256x8xf32>
    %66 = vector.shape_cast %65 : vector<256x8xf32> to vector<1x16x16x8xf32>
    %c0_73 = arith.constant 0 : index
    %c0_74 = arith.constant 0 : index
    %c0_75 = arith.constant 0 : index
    %c0_76 = arith.constant 0 : index
    %67 = vector.load %arg3[%c0_73, %c0_74, %c0_75, %c0_76] : memref<1x16x16x8xf32, #tpu.memory_space<vmem>>, vector<1x16x16x8xf32>
    tpu.vector_store %arg3[%c0_73, %c0_74, %c0_75, %c0_76], %66 {strides = array<i32>} : memref<1x16x16x8xf32, #tpu.memory_space<vmem>>, vector<1x16x16x8xf32>,
    %cst_77 = arith.constant dense<0.000000e+00> : vector<8xf32>
    %68 = vector.multi_reduction <add>, %65, %cst_77 [0] : vector<256x8xf32> to vector<8xf32>
    %69 = vector.shape_cast %68 : vector<8xf32> to vector<1x8xf32>
    %70 = arith.mulf %65, %65 : vector<256x8xf32>
    %cst_78 = arith.constant dense<0.000000e+00> : vector<8xf32>
    %71 = vector.multi_reduction <add>, %70, %cst_78 [0] : vector<256x8xf32> to vector<8xf32>
    %72 = vector.shape_cast %71 : vector<8xf32> to vector<1x8xf32>
    %cst_79 = arith.constant 0.000000e+00 : f32
    %73 = vector.broadcast %cst_79 : f32 to vector<6x8xf32>
    %74 = tpu.concatenate %69, %72, %73 in 0 : vector<1x8xf32>, vector<1x8xf32>, vector<6x8xf32> -> vector<8x8xf32>
    %75 = vector.shape_cast %74 : vector<8x8xf32> to vector<1x8x8xf32>
    %c0_80 = arith.constant 0 : index
    %c0_81 = arith.constant 0 : index
    %c0_82 = arith.constant 0 : index
    %76 = vector.load %arg4[%c0_80, %c0_81, %c0_82] : memref<1x8x8xf32, #tpu.memory_space<vmem>>, vector<1x8x8xf32>
    tpu.vector_store %arg4[%c0_80, %c0_81, %c0_82], %75 {strides = array<i32>} : memref<1x8x8xf32, #tpu.memory_space<vmem>>, vector<1x8x8xf32>,
    return
  }
  func.func @transform_0(%arg0: i32) -> (i32, i32, i32, i32) {
    %c0_i32 = arith.constant 0 : i32
    %c0_i32_0 = arith.constant 0 : i32
    %c0_i32_1 = arith.constant 0 : i32
    %c0_i32_2 = arith.constant 0 : i32
    return %arg0, %c0_i32, %c0_i32_0, %c0_i32_1 : i32, i32, i32, i32
  }
  func.func @transform_1(%arg0: i32) -> (i32, i32, i32, i32) {
    %c0_i32 = arith.constant 0 : i32
    %c0_i32_0 = arith.constant 0 : i32
    %c0_i32_1 = arith.constant 0 : i32
    %c0_i32_2 = arith.constant 0 : i32
    %c0_i32_3 = arith.constant 0 : i32
    return %c0_i32, %c0_i32_0, %c0_i32_1, %c0_i32_2 : i32, i32, i32, i32
  }
  func.func @transform_2(%arg0: i32) -> (i32, i32, i32, i32) {
    %c0_i32 = arith.constant 0 : i32
    %c0_i32_0 = arith.constant 0 : i32
    %c0_i32_1 = arith.constant 0 : i32
    %c0_i32_2 = arith.constant 0 : i32
    return %arg0, %c0_i32, %c0_i32_0, %c0_i32_1 : i32, i32, i32, i32
  }
  func.func @transform_3(%arg0: i32) -> (i32, i32, i32) {
    %c0_i32 = arith.constant 0 : i32
    %c0_i32_0 = arith.constant 0 : i32
    %c0_i32_1 = arith.constant 0 : i32
    return %arg0, %c0_i32, %c0_i32_0 : i32, i32, i32
  }
}

</mosaic_0001>

<llo_original>
// kernel: tpu_custom_call.1
$region0: #{tpu_custom_call.1}
  #allocation0 [shape = 'u32[]', space=smem, size = 0x4, offset = 0x4, fixed_abs, tag = 'smem constant byte address 0x4 - core index']
  #allocation1 [shape = 'u32[144,128]{1,0:T(1,128)}', space=vmem, size = 0x12000, scoped, tag = 'internal scratch']
  #allocation2 [shape = 'f32[1,18,24,4]{3,2,1,0:T(8,128)}', space=vmem, size = 0x36000, scoped, tag = 'scratch operand']
  %s0 = inlined_call_operand.vmem [shape: f32[2,16,16,4], index: 0, kind: input, shape index: {}]
  %s1 = inlined_call_operand.vmem [shape: f32[3,3,4,8], index: 1, kind: input, shape index: {}]
  %s2 = inlined_call_operand.vmem [shape: f32[2,16,16,8], index: 2, kind: output, shape index: {0}]
  %s3 = inlined_call_operand.hbm [shape: f32[2,8,8], index: 3, kind: output, shape index: {1}]
  %4 = xla_tuple %s2, %s3
  %s5 = sld [smem:[#allocation0]]
  $region49: #{tpu_custom_call.1} parent=0
    _
  %s7 = ssub.s32 1, %s5
  %s8 = scalar_select 0, %s7, %s5
  $region1: #{tpu_custom_call.1} parent=0
    #allocation3 [shape = 'u8[8192]{0}', space=vmem, size = 0x2000, scoped, tag = 'output window, operand 1']
    #allocation4 [shape = 's32[2]{0}', space=sflag, size = 0x8, scoped, tag = 'scoped memory for tpu_custom_call.1']
    %9 = vsyncpa [#allocation4], 0
    %s10 = scalar_lea.sflag [#allocation4], 1
    %11 = vsyncpa %s10, 0
    loop: start=0, step=1, limit=4
    $region2: #{tpu_custom_call.1} parent=1 // loop_pre_header
      _
    $region3: #{tpu_custom_call.1} parent=1 // loop_header
      %s13 = sphi 0, %s17
      %p14 = scmp.ge.s32.totalorder %s13, 4
      %s23 = sphi 0, %s25
      %s26 = sphi 0, %s23
      %s27 = sphi 0, %s26
      %s43 = sphi 0, %s27
      %s47 = sphi 0, %s47
      %s49 = sphi 0, %s47
      %s50 = sphi 0, %s49
      %s64 = sphi 0, %s50
      %s70 = sphi 0, %s72
      %s73 = sphi 0, %s70
      %s74 = sphi 0, %s73
      %s90 = sphi 0, %s74
      %s96 = sphi 0, %s98
      %s99 = sphi 0, %s96
      %s100 = sphi 0, %s99
      %s116 = sphi 0, %s100
    $region4: #{tpu_custom_call.1} parent=1 // loop_header_branch
      %16 = sbr.rel (%p14) target = $region8
    $region5: #{tpu_custom_call.1} parent=1 // loop_body
      %s18 = ssub.s32 %s13, 1
      %s19 = ssub.s32 %s13, 2
      %s20 = sadd.s32 %s13, 1
      %s21 = ssub.s32 %s13, %s20
      %p22 = scmp.eq.s32.totalorder %s21, 0
      %s24 = sadd.s32 %s23, 1
      %s25 = scalar_select %p22, %s23, %s24
      %p28 = pneg %p22
      %p29 = scmp.eq.s32.totalorder %s13, 1
      %p30 = por %p28, %p29
      %p31 = scmp.ne.s32.totalorder %s23, %s26
      %p32 = scmp.eq.s32.totalorder %s13, 0
      %p33 = por %p31, %p32
      %p34 = scmp.ne.s32.totalorder %s23, %s26
      %p35 = scmp.eq.s32.totalorder %s18, 1
      %p36 = por %p34, %p35
      %p37 = scmp.ne.s32.totalorder %s26, %s27
      %p38 = scmp.eq.s32.totalorder %s18, 0
      %p39 = por %p37, %p38
      %p40 = scmp.ne.s32.totalorder %s26, %s27
      %p41 = scmp.eq.s32.totalorder %s19, 1
      %p42 = por %p40, %p41
      %p44 = scmp.ne.s32.totalorder %s27, %s43
      %p45 = scmp.eq.s32.totalorder %s19, 0
      %p46 = por %p44, %p45
      %s48 = sadd.s32 %s47, 1
      %p51 = scmp.eq.s32.totalorder %s13, 1
      %p52 = scmp.ne.s32.totalorder %s47, %s49
      %p53 = scmp.eq.s32.totalorder %s13, 0
      %p54 = por %p52, %p53
      %p55 = scmp.ne.s32.totalorder %s47, %s49
      %p56 = scmp.eq.s32.totalorder %s18, 1
      %p57 = por %p55, %p56
      %p58 = scmp.ne.s32.totalorder %s49, %s50
      %p59 = scmp.eq.s32.totalorder %s18, 0
      %p60 = por %p58, %p59
      %p61 = scmp.ne.s32.totalorder %s49, %s50
      %p62 = scmp.eq.s32.totalorder %s19, 1
      %p63 = por %p61, %p62
      %p65 = scmp.ne.s32.totalorder %s50, %s64
      %p66 = scmp.eq.s32.totalorder %s19, 0
      %p67 = por %p65, %p66
      %s68 = ssub.s32 %s13, %s20
      %p69 = scmp.eq.s32.totalorder %s68, 0
      %s71 = sadd.s32 %s70, 1
      %s72 = scalar_select %p69, %s70, %s71
      %p75 = pneg %p69
      %p76 = scmp.eq.s32.totalorder %s13, 1
      %p77 = por %p75, %p76
      %p78 = scmp.ne.s32.totalorder %s70, %s73
      %p79 = scmp.eq.s32.totalorder %s13, 0
      %p80 = por %p78, %p79
      %p81 = scmp.ne.s32.totalorder %s70, %s73
      %p82 = scmp.eq.s32.totalorder %s18, 1
      %p83 = por %p81, %p82
      %p84 = scmp.ne.s32.totalorder %s73, %s74
      %p85 = scmp.eq.s32.totalorder %s18, 0
      %p86 = por %p84, %p85
      %p87 = scmp.ne.s32.totalorder %s73, %s74
      %p88 = scmp.eq.s32.totalorder %s19, 1
      %p89 = por %p87, %p88
      %p91 = scmp.ne.s32.totalorder %s74, %s90
      %p92 = scmp.eq.s32.totalorder %s19, 0
      %p93 = por %p91, %p92
      %s94 = ssub.s32 %s13, %s20
      %p95 = scmp.eq.s32.totalorder %s94, 0
      %s97 = sadd.s32 %s96, 1
      %s98 = scalar_select %p95, %s96, %s97
      %p101 = pneg %p95
      %p102 = scmp.eq.s32.totalorder %s13, 1
      %p103 = por %p101, %p102
      %p104 = scmp.ne.s32.totalorder %s96, %s99
      %p105 = scmp.eq.s32.totalorder %s13, 0
      %p106 = por %p104, %p105
      %p107 = scmp.ne.s32.totalorder %s96, %s99
      %p108 = scmp.eq.s32.totalorder %s18, 1
      %p109 = por %p107, %p108
      %p110 = scmp.ne.s32.totalorder %s99, %s100
      %p111 = scmp.eq.s32.totalorder %s18, 0
      %p112 = por %p110, %p111
      %p113 = scmp.ne.s32.totalorder %s99, %s100
      %p114 = scmp.eq.s32.totalorder %s19, 1
      %p115 = por %p113, %p114
      %p117 = scmp.ne.s32.totalorder %s100, %s116
      %p118 = scmp.eq.s32.totalorder %s19, 0
      %p119 = por %p117, %p118
      %p120 = scmp.le.s32.totalorder 1, %s13
      %p121 = scmp.lt.s32.totalorder %s13, 3
      %p122 = pnand %p120, %p121
      %p123 = pneg %p122
      // Predicated region
      $region9: #{tpu_custom_call.1} parent=5 // pred_check
        _
      $region10: #{tpu_custom_call.1} parent=5 // pred_check_branch
        %125 = sbr.rel (%p122) target = $region12
      $region11: #{tpu_custom_call.1} parent=5 // pred_region
        %s126 = ssub.s32 %s13, 1
        // Predicated region
        $region13: #{tpu_custom_call.1} parent=11 // pred_check
          %p127 = pneg %p60
        $region14: #{tpu_custom_call.1} parent=11 // pred_check_branch
          %129 = sbr.rel (%p127) target = $region16
        $region15: #{tpu_custom_call.1} parent=11 // pred_region
          _
        $region16: #{tpu_custom_call.1} parent=11 // pred_fallthru
          _
      $region12: #{tpu_custom_call.1} parent=5 // pred_fallthru
        _
      %p130 = scmp.lt.s32.totalorder %s13, 2
      // Predicated region
      $region17: #{tpu_custom_call.1} parent=5 // pred_check
        %p131 = pneg %p130
      $region18: #{tpu_custom_call.1} parent=5 // pred_check_branch
        %133 = sbr.rel (%p131) target = $region20
      $region19: #{tpu_custom_call.1} parent=5 // pred_region
        // Predicated region
        $region21: #{tpu_custom_call.1} parent=19 // pred_check
          %p134 = pneg %p33
        $region22: #{tpu_custom_call.1} parent=19 // pred_check_branch
          %136 = sbr.rel (%p134) target = $region24
        $region23: #{tpu_custom_call.1} parent=19 // pred_region
          %p137 = scmp.lt.s32.totalorder %s13, 1
          %s138 = scalar_select %p137, %s13, 1
          %s139 = smul.addr %s138, 32
          %s140 = smul.addr %s139, 8
          %s141 = scalar_lea.vmem %s0, %s140
        $region24: #{tpu_custom_call.1} parent=19 // pred_fallthru
          _
      $region20: #{tpu_custom_call.1} parent=5 // pred_fallthru
        _
      %p142 = scmp.le.s32.totalorder 1, %s13
      %p143 = scmp.lt.s32.totalorder %s13, 3
      %p144 = pnand %p142, %p143
      %p145 = pneg %p144
      // Predicated region
      $region25: #{tpu_custom_call.1} parent=5 // pred_check
        _
      $region26: #{tpu_custom_call.1} parent=5 // pred_check_branch
        %147 = sbr.rel (%p144) target = $region28
      $region27: #{tpu_custom_call.1} parent=5 // pred_region
        %s148 = ssub.s32 %s13, 1
        %p149 = scmp.lt.s32.totalorder %s18, 1
        %s150 = scalar_select %p149, %s18, 1
        %s151 = smul.addr %s150, 32
        %s152 = smul.addr %s151, 8
        %s153 = scalar_lea.vmem %s0, %s152
        %p154 = pneg %p39
        %p155 = pneg %p36
        %p156 = pneg %p60
        %p157 = pneg %p57
        %p158 = pneg %p86
        %p159 = pneg %p83
        %p160 = scmp.lt.s32.totalorder %s18, 1
        %s161 = scalar_select %p160, %s18, 1
        %s162 = smul.addr %s161, 32
        %s163 = smul.addr %s162, 8
        %s164 = scalar_lea.vmem %s2, %s163
        %p165 = pneg %p112
        %p166 = pneg %p109
        %s167 = sand.u32 %s99, 1
        %s168 = scalar_lea.sflag [#allocation4], %s167
        %s169 = sand.u32 %s99, 1
        %s170 = smul.addr %s169, 8
        %s171 = scalar_lea.vmem [#allocation3], %s170
        %p172 = scmp.lt.s32.totalorder %s18, 1
        %s173 = scalar_select %p172, %s18, 1
        %s174 = smul.addr %s173, 32
        %s175 = smul.addr %s174, 8
        %s176 = scalar_lea.vmem %s0, %s175
        %p177 = scmp.lt.s32.totalorder %s18, 1
        %s178 = scalar_select %p177, %s18, 1
        %s179 = smul.addr %s178, 32
        %s180 = smul.addr %s179, 8
        %s181 = scalar_lea.vmem %s2, %s180
        %v182 = vld [vmem:[%s176] sm:$0xff]
        %v183 = vld [vmem:[%s176 + $0x8] sm:$0xff]
        %v184 = vld [vmem:[%s176 + $0x10] sm:$0xff]
        %v185 = vld [vmem:[%s176 + $0x18] sm:$0xff]
        %v186 = vld [vmem:[%s176 + $0x20] sm:$0xff]
        %v187 = vld [vmem:[%s176 + $0x28] sm:$0xff]
        %v188 = vld [vmem:[%s176 + $0x30] sm:$0xff]
        %v189 = vld [vmem:[%s176 + $0x38] sm:$0xff]
        %v190 = vld [vmem:[%s176 + $0x40] sm:$0xff]
        %v191 = vld [vmem:[%s176 + $0x48] sm:$0xff]
        %v192 = vld [vmem:[%s176 + $0x50] sm:$0xff]
        %v193 = vld [vmem:[%s176 + $0x58] sm:$0xff]
        %v194 = vld [vmem:[%s176 + $0x60] sm:$0xff]
        %v195 = vld [vmem:[%s176 + $0x68] sm:$0xff]
        %v196 = vld [vmem:[%s176 + $0x70] sm:$0xff]
        %v197 = vld [vmem:[%s176 + $0x78] sm:$0xff]
        %v198 = vld [vmem:[%s176 + $0x80] sm:$0xff]
        %v199 = vld [vmem:[%s176 + $0x88] sm:$0xff]
        %v200 = vld [vmem:[%s176 + $0x90] sm:$0xff]
        %v201 = vld [vmem:[%s176 + $0x98] sm:$0xff]
        %v202 = vld [vmem:[%s176 + $0xa0] sm:$0xff]
        %v203 = vld [vmem:[%s176 + $0xa8] sm:$0xff]
        %v204 = vld [vmem:[%s176 + $0xb0] sm:$0xff]
        %v205 = vld [vmem:[%s176 + $0xb8] sm:$0xff]
        %v206 = vld [vmem:[%s176 + $0xc0] sm:$0xff]
        %v207 = vld [vmem:[%s176 + $0xc8] sm:$0xff]
        %v208 = vld [vmem:[%s176 + $0xd0] sm:$0xff]
        %v209 = vld [vmem:[%s176 + $0xd8] sm:$0xff]
        %v210 = vld [vmem:[%s176 + $0xe0] sm:$0xff]
        %v211 = vld [vmem:[%s176 + $0xe8] sm:$0xff]
        %v212 = vld [vmem:[%s176 + $0xf0] sm:$0xff]
        %v213 = vld [vmem:[%s176 + $0xf8] sm:$0xff]
        %vm214 = vcmask 31744
        %215 = vst.msk [vmem:[#allocation2] sm:$0xff] %vm214, 0.0
        %216 = vst.msk [vmem:[#allocation2 + $0x8] sm:$0xff] %vm214, 0.0
        %217 = vst.msk [vmem:[#allocation2 + $0x10] sm:$0xff] %vm214, 0.0
        %s218 = scalar_lea.vmem [#allocation2], 408
        %219 = vst.msk [vmem:[%s218] sm:$0xff] %vm214, 0.0
        %220 = vst.msk [vmem:[%s218 + $0x8] sm:$0xff] %vm214, 0.0
        %221 = vst.msk [vmem:[%s218 + $0x10] sm:$0xff] %vm214, 0.0
        %vm222 = vcmask 24576
        %223 = vst.msk [vmem:[#allocation2] sm:$0x1] %vm222, 0.0
        %224 = vst.msk [vmem:[#allocation2 + $0x18] sm:$0x1] %vm222, 0.0
        %225 = vst.msk [vmem:[#allocation2 + $0x30] sm:$0x1] %vm222, 0.0
        %226 = vst.msk [vmem:[#allocation2 + $0x48] sm:$0x1] %vm222, 0.0
        %227 = vst.msk [vmem:[#allocation2 + $0x60] sm:$0x1] %vm222, 0.0
        %228 = vst.msk [vmem:[#allocation2 + $0x78] sm:$0x1] %vm222, 0.0
        %229 = vst.msk [vmem:[#allocation2 + $0x90] sm:$0x1] %vm222, 0.0
        %230 = vst.msk [vmem:[#allocation2 + $0xa8] sm:$0x1] %vm222, 0.0
        %231 = vst.msk [vmem:[#allocation2 + $0xc0] sm:$0x1] %vm222, 0.0
        %232 = vst.msk [vmem:[#allocation2 + $0xd8] sm:$0x1] %vm222, 0.0
        %233 = vst.msk [vmem:[#allocation2 + $0xf0] sm:$0x1] %vm222, 0.0
        %234 = vst.msk [vmem:[#allocation2 + $0x108] sm:$0x1] %vm222, 0.0
        %235 = vst.msk [vmem:[#allocation2 + $0x120] sm:$0x1] %vm222, 0.0
        %236 = vst.msk [vmem:[#allocation2 + $0x138] sm:$0x1] %vm222, 0.0
        %237 = vst.msk [vmem:[#allocation2 + $0x150] sm:$0x1] %vm222, 0.0
        %238 = vst.msk [vmem:[#allocation2 + $0x168] sm:$0x1] %vm222, 0.0
        %239 = vst.msk [vmem:[#allocation2 + $0x180] sm:$0x1] %vm222, 0.0
        %240 = vst.msk [vmem:[#allocation2 + $0x198] sm:$0x1] %vm222, 0.0
        %vm241 = vcmask 30720
        %242 = vst.msk [vmem:[#allocation2 + $0x11] sm:$0x7f] %vm241, 0.0
        %243 = vst.msk [vmem:[#allocation2 + $0x29] sm:$0x7f] %vm241, 0.0
        %244 = vst.msk [vmem:[#allocation2 + $0x41] sm:$0x7f] %vm241, 0.0
        %245 = vst.msk [vmem:[#allocation2 + $0x59] sm:$0x7f] %vm241, 0.0
        %246 = vst.msk [vmem:[#allocation2 + $0x71] sm:$0x7f] %vm241, 0.0
        %247 = vst.msk [vmem:[#allocation2 + $0x89] sm:$0x7f] %vm241, 0.0
        %248 = vst.msk [vmem:[#allocation2 + $0xa1] sm:$0x7f] %vm241, 0.0
        %249 = vst.msk [vmem:[#allocation2 + $0xb9] sm:$0x7f] %vm241, 0.0
        %250 = vst.msk [vmem:[#allocation2 + $0xd1] sm:$0x7f] %vm241, 0.0
        %251 = vst.msk [vmem:[#allocation2 + $0xe9] sm:$0x7f] %vm241, 0.0
        %252 = vst.msk [vmem:[#allocation2 + $0x101] sm:$0x7f] %vm241, 0.0
        %253 = vst.msk [vmem:[#allocation2 + $0x119] sm:$0x7f] %vm241, 0.0
        %254 = vst.msk [vmem:[#allocation2 + $0x131] sm:$0x7f] %vm241, 0.0
        %255 = vst.msk [vmem:[#allocation2 + $0x149] sm:$0x7f] %vm241, 0.0
        %256 = vst.msk [vmem:[#allocation2 + $0x161] sm:$0x7f] %vm241, 0.0
        %257 = vst.msk [vmem:[#allocation2 + $0x179] sm:$0x7f] %vm241, 0.0
        %258 = vst.msk [vmem:[#allocation2 + $0x191] sm:$0x7f] %vm241, 0.0
        %259 = vst.msk [vmem:[#allocation2 + $0x1a9] sm:$0x7f] %vm241, 0.0
        %s260 = scalar_lea.vmem [#allocation2], 24
        %261 = vst.msk [vmem:[%s260 + $0x1] sm:$0xff] %vm214, %v182
        %262 = vst.msk [vmem:[%s260 + $0x9] sm:$0xff] %vm214, %v183
        %263 = vst.msk [vmem:[%s260 + $0x19] sm:$0xff] %vm214, %v184
        %264 = vst.msk [vmem:[%s260 + $0x21] sm:$0xff] %vm214, %v185
        %265 = vst.msk [vmem:[%s260 + $0x31] sm:$0xff] %vm214, %v186
        %266 = vst.msk [vmem:[%s260 + $0x39] sm:$0xff] %vm214, %v187
        %267 = vst.msk [vmem:[%s260 + $0x49] sm:$0xff] %vm214, %v188
        %268 = vst.msk [vmem:[%s260 + $0x51] sm:$0xff] %vm214, %v189
        %269 = vst.msk [vmem:[%s260 + $0x61] sm:$0xff] %vm214, %v190
        %270 = vst.msk [vmem:[%s260 + $0x69] sm:$0xff] %vm214, %v191
        %271 = vst.msk [vmem:[%s260 + $0x79] sm:$0xff] %vm214, %v192
        %272 = vst.msk [vmem:[%s260 + $0x81] sm:$0xff] %vm214, %v193
        %273 = vst.msk [vmem:[%s260 + $0x91] sm:$0xff] %vm214, %v194
        %274 = vst.msk [vmem:[%s260 + $0x99] sm:$0xff] %vm214, %v195
        %275 = vst.msk [vmem:[%s260 + $0xa9] sm:$0xff] %vm214, %v196
        %276 = vst.msk [vmem:[%s260 + $0xb1] sm:$0xff] %vm214, %v197
        %277 = vst.msk [vmem:[%s260 + $0xc1] sm:$0xff] %vm214, %v198
        %278 = vst.msk [vmem:[%s260 + $0xc9] sm:$0xff] %vm214, %v199
        %279 = vst.msk [vmem:[%s260 + $0xd9] sm:$0xff] %vm214, %v200
        %280 = vst.msk [vmem:[%s260 + $0xe1] sm:$0xff] %vm214, %v201
        %281 = vst.msk [vmem:[%s260 + $0xf1] sm:$0xff] %vm214, %v202
        %282 = vst.msk [vmem:[%s260 + $0xf9] sm:$0xff] %vm214, %v203
        %283 = vst.msk [vmem:[%s260 + $0x109] sm:$0xff] %vm214, %v204
        %284 = vst.msk [vmem:[%s260 + $0x111] sm:$0xff] %vm214, %v205
        %285 = vst.msk [vmem:[%s260 + $0x121] sm:$0xff] %vm214, %v206
        %286 = vst.msk [vmem:[%s260 + $0x129] sm:$0xff] %vm214, %v207
        %287 = vst.msk [vmem:[%s260 + $0x139] sm:$0xff] %vm214, %v208
        %288 = vst.msk [vmem:[%s260 + $0x141] sm:$0xff] %vm214, %v209
        %289 = vst.msk [vmem:[%s260 + $0x151] sm:$0xff] %vm214, %v210
        %290 = vst.msk [vmem:[%s260 + $0x159] sm:$0xff] %vm214, %v211
        %291 = vst.msk [vmem:[%s260 + $0x169] sm:$0xff] %vm214, %v212
        %292 = vst.msk [vmem:[%s260 + $0x171] sm:$0xff] %vm214, %v213
        %v293 = vld [vmem:[%s1] sm:$0xf]
        %v294 = vld [vmem:[%s1 + $0x4] sm:$0xf]
        %v295 = vld [vmem:[%s1 + $0x8] sm:$0xf]
        %v296 = vld [vmem:[%s1 + $0xc] sm:$0xf]
        %v297 = vld [vmem:[%s1 + $0x10] sm:$0xf]
        %v298 = vld [vmem:[%s1 + $0x14] sm:$0xf]
        %v299 = vld [vmem:[%s1 + $0x18] sm:$0xf]
        %v300 = vld [vmem:[%s1 + $0x1c] sm:$0xf]
        %v301 = vld [vmem:[%s1 + $0x20] sm:$0xf]
        %v302 = vld [vmem:[#allocation2] sm:$0xff]
        %v303 = vld [vmem:[#allocation2 + $0x8] sm:$0xff]
        %v304 = vld [vmem:[#allocation2 + $0x18] sm:$0xff]
        %v305 = vld [vmem:[#allocation2 + $0x20] sm:$0xff]
        %v306 = vld [vmem:[#allocation2 + $0x30] sm:$0xff]
        %v307 = vld [vmem:[#allocation2 + $0x38] sm:$0xff]
        %v308 = vld [vmem:[#allocation2 + $0x48] sm:$0xff]
        %v309 = vld [vmem:[#allocation2 + $0x50] sm:$0xff]
        %v310 = vld [vmem:[#allocation2 + $0x60] sm:$0xff]
        %v311 = vld [vmem:[#allocation2 + $0x68] sm:$0xff]
        %v312 = vld [vmem:[#allocation2 + $0x78] sm:$0xff]
        %v313 = vld [vmem:[#allocation2 + $0x80] sm:$0xff]
        %v314 = vld [vmem:[#allocation2 + $0x90] sm:$0xff]
        %v315 = vld [vmem:[#allocation2 + $0x98] sm:$0xff]
        %v316 = vld [vmem:[#allocation2 + $0xa8] sm:$0xff]
        %v317 = vld [vmem:[#allocation2 + $0xb0] sm:$0xff]
        %v318 = vld [vmem:[#allocation2 + $0xc0] sm:$0xff]
        %v319 = vld [vmem:[#allocation2 + $0xc8] sm:$0xff]
        %v320 = vld [vmem:[#allocation2 + $0xd8] sm:$0xff]
        %v321 = vld [vmem:[#allocation2 + $0xe0] sm:$0xff]
        %v322 = vld [vmem:[#allocation2 + $0xf0] sm:$0xff]
        %v323 = vld [vmem:[#allocation2 + $0xf8] sm:$0xff]
        %v324 = vld [vmem:[#allocation2 + $0x108] sm:$0xff]
        %v325 = vld [vmem:[#allocation2 + $0x110] sm:$0xff]
        %v326 = vld [vmem:[#allocation2 + $0x120] sm:$0xff]
        %v327 = vld [vmem:[#allocation2 + $0x128] sm:$0xff]
        %v328 = vld [vmem:[#allocation2 + $0x138] sm:$0xff]
        %v329 = vld [vmem:[#allocation2 + $0x140] sm:$0xff]
        %v330 = vld [vmem:[#allocation2 + $0x150] sm:$0xff]
        %v331 = vld [vmem:[#allocation2 + $0x158] sm:$0xff]
        %v332 = vld [vmem:[#allocation2 + $0x168] sm:$0xff]
        %v333 = vld [vmem:[#allocation2 + $0x170] sm:$0xff]
        %v334 = vld [vmem:[#allocation2 + $0x1] sm:$0xff]
        %v335 = vld [vmem:[#allocation2 + $0x9] sm:$0xff]
        %v336 = vld [vmem:[#allocation2 + $0x19] sm:$0xff]
        %v337 = vld [vmem:[#allocation2 + $0x21] sm:$0xff]
        %v338 = vld [vmem:[#allocation2 + $0x31] sm:$0xff]
        %v339 = vld [vmem:[#allocation2 + $0x39] sm:$0xff]
        %v340 = vld [vmem:[#allocation2 + $0x49] sm:$0xff]
        %v341 = vld [vmem:[#allocation2 + $0x51] sm:$0xff]
        %v342 = vld [vmem:[#allocation2 + $0x61] sm:$0xff]
        %v343 = vld [vmem:[#allocation2 + $0x69] sm:$0xff]
        %v344 = vld [vmem:[#allocation2 + $0x79] sm:$0xff]
        %v345 = vld [vmem:[#allocation2 + $0x81] sm:$0xff]
        %v346 = vld [vmem:[#allocation2 + $0x91] sm:$0xff]
        %v347 = vld [vmem:[#allocation2 + $0x99] sm:$0xff]
        %v348 = vld [vmem:[#allocation2 + $0xa9] sm:$0xff]
        %v349 = vld [vmem:[#allocation2 + $0xb1] sm:$0xff]
        %v350 = vld [vmem:[#allocation2 + $0xc1] sm:$0xff]
        %v351 = vld [vmem:[#allocation2 + $0xc9] sm:$0xff]
        %v352 = vld [vmem:[#allocation2 + $0xd9] sm:$0xff]
        %v353 = vld [vmem:[#allocation2 + $0xe1] sm:$0xff]
        %v354 = vld [vmem:[#allocation2 + $0xf1] sm:$0xff]
        %v355 = vld [vmem:[#allocation2 + $0xf9] sm:$0xff]
        %v356 = vld [vmem:[#allocation2 + $0x109] sm:$0xff]
        %v357 = vld [vmem:[#allocation2 + $0x111] sm:$0xff]
        %v358 = vld [vmem:[#allocation2 + $0x121] sm:$0xff]
        %v359 = vld [vmem:[#allocation2 + $0x129] sm:$0xff]
        %v360 = vld [vmem:[#allocation2 + $0x139] sm:$0xff]
        %v361 = vld [vmem:[#allocation2 + $0x141] sm:$0xff]
        %v362 = vld [vmem:[#allocation2 + $0x151] sm:$0xff]
        %v363 = vld [vmem:[#allocation2 + $0x159] sm:$0xff]
        %v364 = vld [vmem:[#allocation2 + $0x169] sm:$0xff]
        %v365 = vld [vmem:[#allocation2 + $0x171] sm:$0xff]
        %v367 = vsel %vm214, %v334, 0
        %v370 = vsel %vm214, %v335, 0
        %v373 = vsel %vm214, %v336, 0
        %v376 = vsel %vm214, %v337, 0
        %v379 = vsel %vm214, %v338, 0
        %v382 = vsel %vm214, %v339, 0
        %v385 = vsel %vm214, %v340, 0
        %v388 = vsel %vm214, %v341, 0
        %v391 = vsel %vm214, %v342, 0
        %v394 = vsel %vm214, %v343, 0
        %v397 = vsel %vm214, %v344, 0
        %v400 = vsel %vm214, %v345, 0
        %v403 = vsel %vm214, %v346, 0
        %v406 = vsel %vm214, %v347, 0
        %v409 = vsel %vm214, %v348, 0
        %v412 = vsel %vm214, %v349, 0
        %v415 = vsel %vm214, %v350, 0
        %v418 = vsel %vm214, %v351, 0
        %v421 = vsel %vm214, %v352, 0
        %v424 = vsel %vm214, %v353, 0
        %v427 = vsel %vm214, %v354, 0
        %v430 = vsel %vm214, %v355, 0
        %v433 = vsel %vm214, %v356, 0
        %v436 = vsel %vm214, %v357, 0
        %v439 = vsel %vm214, %v358, 0
        %v442 = vsel %vm214, %v359, 0
        %v445 = vsel %vm214, %v360, 0
        %v448 = vsel %vm214, %v361, 0
        %v451 = vsel %vm214, %v362, 0
        %v454 = vsel %vm214, %v363, 0
        %v457 = vsel %vm214, %v364, 0
        %v460 = vsel %vm214, %v365, 0
        %vm462 = vcmask 1043456
        %v464 = vsel %vm462, %v294, 0
        %466 = vmatprep.subr.mxu0 0.0
        %467 = vmatpush1.msra.mxu0 %v464
        %468 = vmatprep.subr.mxu0 0.0
        %469 = vmatpush1.msra.mxu0 0.0
        %470 = vmatprep.subr.mxu0 0.0
        %471 = vmatpush1.msra.mxu0 0.0
        %472 = vmatprep.subr.mxu0 0.0
        %473 = vmatpush1.msra.mxu0 0.0
        %474 = vmatprep.subr.mxu0 0.0
        %475 = vmatpush1.msra.mxu0 0.0
        %476 = vmatprep.subr.mxu0 0.0
        %477 = vmatpush1.msra.mxu0 0.0
        %478 = vmatprep.subr.mxu0 0.0
        %479 = vmatpush1.msra.mxu0 0.0
        %480 = vmatprep.subr.mxu0 0.0
        %481 = vmatpush1.msra.mxu0 0.0
        %482 = vmatprep.subr.mxu0 0.0
        %483 = vmatpush1.msra.mxu0 0.0
        %484 = vmatprep.subr.mxu0 0.0
        %485 = vmatpush1.msra.mxu0 0.0
        %486 = vmatprep.subr.mxu0 0.0
        %487 = vmatpush1.msra.mxu0 0.0
        %488 = vmatprep.subr.mxu0 0.0
        %489 = vmatpush1.msra.mxu0 0.0
        %490 = vmatprep.subr.mxu0 0.0
        %491 = vmatpush1.msra.mxu0 0.0
        %492 = vmatprep.subr.mxu0 0.0
        %493 = vmatpush1.msra.mxu0 0.0
        %494 = vmatprep.subr.mxu0 0.0
        %495 = vmatpush1.msra.mxu0 0.0
        %496 = vmatprep.subr.mxu0 0.0
        %497 = vmatpush1.msra.mxu0 0.0
        %498 = vmatprep.subr.mxu0 0.0
        %499 = vmatpush1.msra.mxu0 0.0
        %500 = vmatprep.subr.mxu0 0.0
        %501 = vmatpush1.msra.mxu0 0.0
        %502 = vmatprep.subr.mxu0 0.0
        %503 = vmatpush1.msra.mxu0 0.0
        %504 = vmatprep.subr.mxu0 0.0
        %505 = vmatpush1.msra.mxu0 0.0
        %506 = vmatprep.subr.mxu0 0.0
        %507 = vmatpush1.msra.mxu0 0.0
        %508 = vmatprep.subr.mxu0 0.0
        %509 = vmatpush1.msra.mxu0 0.0
        %510 = vmatprep.subr.mxu0 0.0
        %511 = vmatpush1.msra.mxu0 0.0
        %512 = vmatprep.subr.mxu0 0.0
        %513 = vmatpush1.msra.mxu0 0.0
        %514 = vmatprep.subr.mxu0 0.0
        %515 = vmatpush1.msra.mxu0 0.0
        %516 = vmatprep.subr.mxu0 0.0
        %517 = vmatpush1.msra.mxu0 0.0
        %518 = vmatprep.subr.mxu0 0.0
        %519 = vmatpush1.msra.mxu0 0.0
        %520 = vmatprep.subr.mxu0 0.0
        %521 = vmatpush1.msra.mxu0 0.0
        %522 = vmatprep.subr.mxu0 0.0
        %523 = vmatpush1.msra.mxu0 0.0
        %524 = vmatprep.subr.mxu0 0.0
        %525 = vmatpush1.msra.mxu0 0.0
        %526 = vmatprep.subr.mxu0 0.0
        %527 = vmatpush1.msra.mxu0 0.0
        %528 = vmatprep.subr.mxu0 0.0
        %529 = vmatpush1.msra.mxu0 0.0
        %530 = vmatprep.mubr.f32.mxu0 0.0
        %531 = vmatmul.mubr.f32.gmra.mrb[0].mxu0 %v367
        %v532 = vpop.f32.mrb[0].mxu0
        %v533 = vadd.f32 0.0, %v532
        %v534 = vpop.f32.mrb[0].mxu0
        %535 = vmatprep.mubr.f32.mxu0 0.0
        %536 = vmatmul.mubr.f32.gmra.mrb[0].mxu0 %v370
        %v537 = vpop.f32.mrb[0].mxu0
        %v538 = vadd.f32 0.0, %v537
        %v539 = vpop.f32.mrb[0].mxu0
        %540 = vmatprep.mubr.f32.mxu0 0.0
        %541 = vmatmul.mubr.f32.gmra.mrb[0].mxu0 %v373
        %v542 = vpop.f32.mrb[0].mxu0
        %v543 = vadd.f32 0.0, %v542
        %v544 = vpop.f32.mrb[0].mxu0
        %545 = vmatprep.mubr.f32.mxu0 0.0
        %546 = vmatmul.mubr.f32.gmra.mrb[0].mxu0 %v376
        %v547 = vpop.f32.mrb[0].mxu0
        %v548 = vadd.f32 0.0, %v547
        %v549 = vpop.f32.mrb[0].mxu0
        %550 = vmatprep.mubr.f32.mxu0 0.0
        %551 = vmatmul.mubr.f32.gmra.mrb[0].mxu0 %v379
        %v552 = vpop.f32.mrb[0].mxu0
        %v553 = vadd.f32 0.0, %v552
        %v554 = vpop.f32.mrb[0].mxu0
        %555 = vmatprep.mubr.f32.mxu0 0.0
        %556 = vmatmul.mubr.f32.gmra.mrb[0].mxu0 %v382
        %v557 = vpop.f32.mrb[0].mxu0
        %v558 = vadd.f32 0.0, %v557
        %v559 = vpop.f32.mrb[0].mxu0
        %560 = vmatprep.mubr.f32.mxu0 0.0
        %561 = vmatmul.mubr.f32.gmra.mrb[0].mxu0 %v385
        %v562 = vpop.f32.mrb[0].mxu0
        %v563 = vadd.f32 0.0, %v562
        %v564 = vpop.f32.mrb[0].mxu0
        %565 = vmatprep.mubr.f32.mxu0 0.0
        %566 = vmatmul.mubr.f32.gmra.mrb[0].mxu0 %v388
        %v567 = vpop.f32.mrb[0].mxu0
        %v568 = vadd.f32 0.0, %v567
        %v569 = vpop.f32.mrb[0].mxu0
        %570 = vmatprep.mubr.f32.mxu0 0.0
        %571 = vmatmul.mubr.f32.gmra.mrb[0].mxu0 %v391
        %v572 = vpop.f32.mrb[0].mxu0
        %v573 = vadd.f32 0.0, %v572
        %v574 = vpop.f32.mrb[0].mxu0
        %575 = vmatprep.mubr.f32.mxu0 0.0
        %576 = vmatmul.mubr.f32.gmra.mrb[0].mxu0 %v394
        %v577 = vpop.f32.mrb[0].mxu0
        %v578 = vadd.f32 0.0, %v577
        %v579 = vpop.f32.mrb[0].mxu0
        %580 = vmatprep.mubr.f32.mxu0 0.0
        %581 = vmatmul.mubr.f32.gmra.mrb[0].mxu0 %v397
        %v582 = vpop.f32.mrb[0].mxu0
        %v583 = vadd.f32 0.0, %v582
        %v584 = vpop.f32.mrb[0].mxu0
        %585 = vmatprep.mubr.f32.mxu0 0.0
        %586 = vmatmul.mubr.f32.gmra.mrb[0].mxu0 %v400
        %v587 = vpop.f32.mrb[0].mxu0
        %v588 = vadd.f32 0.0, %v587
        %v589 = vpop.f32.mrb[0].mxu0
        %590 = vmatprep.mubr.f32.mxu0 0.0
        %591 = vmatmul.mubr.f32.gmra.mrb[0].mxu0 %v403
        %v592 = vpop.f32.mrb[0].mxu0
        %v593 = vadd.f32 0.0, %v592
        %v594 = vpop.f32.mrb[0].mxu0
        %595 = vmatprep.mubr.f32.mxu0 0.0
        %596 = vmatmul.mubr.f32.gmra.mrb[0].mxu0 %v406
        %v597 = vpop.f32.mrb[0].mxu0
        %v598 = vadd.f32 0.0, %v597
        %v599 = vpop.f32.mrb[0].mxu0
        %600 = vmatprep.mubr.f32.mxu0 0.0
        %601 = vmatmul.mubr.f32.gmra.mrb[0].mxu0 %v409
        %v602 = vpop.f32.mrb[0].mxu0
        %v603 = vadd.f32 0.0, %v602
        %v604 = vpop.f32.mrb[0].mxu0
        %605 = vmatprep.mubr.f32.mxu0 0.0
        %606 = vmatmul.mubr.f32.gmra.mrb[0].mxu0 %v412
        %v607 = vpop.f32.mrb[0].mxu0
        %v608 = vadd.f32 0.0, %v607
        %v609 = vpop.f32.mrb[0].mxu0
        %610 = vmatprep.mubr.f32.mxu0 0.0
        %611 = vmatmul.mubr.f32.gmra.mrb[0].mxu0 %v415
        %v612 = vpop.f32.mrb[0].mxu0
        %v613 = vadd.f32 0.0, %v612
        %v614 = vpop.f32.mrb[0].mxu0
        %615 = vmatprep.mubr.f32.mxu0 0.0
        %616 = vmatmul.mubr.f32.gmra.mrb[0].mxu0 %v418
        %v617 = vpop.f32.mrb[0].mxu0
        %v618 = vadd.f32 0.0, %v617
        %v619 = vpop.f32.mrb[0].mxu0
        %620 = vmatprep.mubr.f32.mxu0 0.0
        %621 = vmatmul.mubr.f32.gmra.mrb[0].mxu0 %v421
        %v622 = vpop.f32.mrb[0].mxu0
        %v623 = vadd.f32 0.0, %v622
        %v624 = vpop.f32.mrb[0].mxu0
        %625 = vmatprep.mubr.f32.mxu0 0.0
        %626 = vmatmul.mubr.f32.gmra.mrb[0].mxu0 %v424
        %v627 = vpop.f32.mrb[0].mxu0
        %v628 = vadd.f32 0.0, %v627
        %v629 = vpop.f32.mrb[0].mxu0
        %630 = vmatprep.mubr.f32.mxu0 0.0
        %631 = vmatmul.mubr.f32.gmra.mrb[0].mxu0 %v427
        %v632 = vpop.f32.mrb[0].mxu0
        %v633 = vadd.f32 0.0, %v632
        %v634 = vpop.f32.mrb[0].mxu0
        %635 = vmatprep.mubr.f32.mxu0 0.0
        %636 = vmatmul.mubr.f32.gmra.mrb[0].mxu0 %v430
        %v637 = vpop.f32.mrb[0].mxu0
        %v638 = vadd.f32 0.0, %v637
        %v639 = vpop.f32.mrb[0].mxu0
        %640 = vmatprep.mubr.f32.mxu0 0.0
        %641 = vmatmul.mubr.f32.gmra.mrb[0].mxu0 %v433
        %v642 = vpop.f32.mrb[0].mxu0
        %v643 = vadd.f32 0.0, %v642
        %v644 = vpop.f32.mrb[0].mxu0
        %645 = vmatprep.mubr.f32.mxu0 0.0
        %646 = vmatmul.mubr.f32.gmra.mrb[0].mxu0 %v436
        %v647 = vpop.f32.mrb[0].mxu0
        %v648 = vadd.f32 0.0, %v647
        %v649 = vpop.f32.mrb[0].mxu0
        %650 = vmatprep.mubr.f32.mxu0 0.0
        %651 = vmatmul.mubr.f32.gmra.mrb[0].mxu0 %v439
        %v652 = vpop.f32.mrb[0].mxu0
        %v653 = vadd.f32 0.0, %v652
        %v654 = vpop.f32.mrb[0].mxu0
        %655 = vmatprep.mubr.f32.mxu0 0.0
        %656 = vmatmul.mubr.f32.gmra.mrb[0].mxu0 %v442
        %v657 = vpop.f32.mrb[0].mxu0
        %v658 = vadd.f32 0.0, %v657
        %v659 = vpop.f32.mrb[0].mxu0
        %660 = vmatprep.mubr.f32.mxu0 0.0
        %661 = vmatmul.mubr.f32.gmra.mrb[0].mxu0 %v445
        %v662 = vpop.f32.mrb[0].mxu0
        %v663 = vadd.f32 0.0, %v662
        %v664 = vpop.f32.mrb[0].mxu0
        %665 = vmatprep.mubr.f32.mxu0 0.0
        %666 = vmatmul.mubr.f32.gmra.mrb[0].mxu0 %v448
        %v667 = vpop.f32.mrb[0].mxu0
        %v668 = vadd.f32 0.0, %v667
        %v669 = vpop.f32.mrb[0].mxu0
        %670 = vmatprep.mubr.f32.mxu0 0.0
        %671 = vmatmul.mubr.f32.gmra.mrb[0].mxu0 %v451
        %v672 = vpop.f32.mrb[0].mxu0
        %v673 = vadd.f32 0.0, %v672
        %v674 = vpop.f32.mrb[0].mxu0
        %675 = vmatprep.mubr.f32.mxu0 0.0
        %676 = vmatmul.mubr.f32.gmra.mrb[0].mxu0 %v454
        %v677 = vpop.f32.mrb[0].mxu0
        %v678 = vadd.f32 0.0, %v677
        %v679 = vpop.f32.mrb[0].mxu0
        %680 = vmatprep.mubr.f32.mxu0 0.0
        %681 = vmatmul.mubr.f32.gmra.mrb[0].mxu0 %v457
        %v682 = vpop.f32.mrb[0].mxu0
        %v683 = vadd.f32 0.0, %v682
        %v684 = vpop.f32.mrb[0].mxu0
        %685 = vmatprep.mubr.f32.mxu0 0.0
        %686 = vmatmul.mubr.f32.gmra.mrb[0].mxu0 %v460
        %v687 = vpop.f32.mrb[0].mxu0
        %v688 = vadd.f32 0.0, %v687
        %v689 = vpop.f32.mrb[0].mxu0
        %690 = vdwg.mxu0
        %v692 = vsel %vm214, %v302, 0
        %v695 = vsel %vm214, %v303, 0
        %v698 = vsel %vm214, %v304, 0
        %v701 = vsel %vm214, %v305, 0
        %v704 = vsel %vm214, %v306, 0
        %v707 = vsel %vm214, %v307, 0
        %v710 = vsel %vm214, %v308, 0
        %v713 = vsel %vm214, %v309, 0
        %v716 = vsel %vm214, %v310, 0
        %v719 = vsel %vm214, %v311, 0
        %v722 = vsel %vm214, %v312, 0
        %v725 = vsel %vm214, %v313, 0
        %v728 = vsel %vm214, %v314, 0
        %v731 = vsel %vm214, %v315, 0
        %v734 = vsel %vm214, %v316, 0
        %v737 = vsel %vm214, %v317, 0
        %v740 = vsel %vm214, %v318, 0
        %v743 = vsel %vm214, %v319, 0
        %v746 = vsel %vm214, %v320, 0
        %v749 = vsel %vm214, %v321, 0
        %v752 = vsel %vm214, %v322, 0
        %v755 = vsel %vm214, %v323, 0
        %v758 = vsel %vm214, %v324, 0
        %v761 = vsel %vm214, %v325, 0
        %v764 = vsel %vm214, %v326, 0
        %v767 = vsel %vm214, %v327, 0
        %v770 = vsel %vm214, %v328, 0
        %v773 = vsel %vm214, %v329, 0
        %v776 = vsel %vm214, %v330, 0
        %v779 = vsel %vm214, %v331, 0
        %v782 = vsel %vm214, %v332, 0
        %v785 = vsel %vm214, %v333, 0
        %v788 = vsel %vm462, %v293, 0
        %790 = vmatprep.subr.mxu0 0.0
        %791 = vmatpush1.msra.mxu0 %v788
        %792 = vmatprep.subr.mxu0 0.0
        %793 = vmatpush1.msra.mxu0 0.0
        %794 = vmatprep.subr.mxu0 0.0
        %795 = vmatpush1.msra.mxu0 0.0
        %796 = vmatprep.subr.mxu0 0.0
        %797 = vmatpush1.msra.mxu0 0.0
        %798 = vmatprep.subr.mxu0 0.0
        %799 = vmatpush1.msra.mxu0 0.0
        %800 = vmatprep.subr.mxu0 0.0
        %801 = vmatpush1.msra.mxu0 0.0
        %802 = vmatprep.subr.mxu0 0.0
        %803 = vmatpush1.msra.mxu0 0.0
        %804 = vmatprep.subr.mxu0 0.0
        %805 = vmatpush1.msra.mxu0 0.0
        %806 = vmatprep.subr.mxu0 0.0
        %807 = vmatpush1.msra.mxu0 0.0
        %808 = vmatprep.subr.mxu0 0.0
        %809 = vmatpush1.msra.mxu0 0.0
        %810 = vmatprep.subr.mxu0 0.0
        %811 = vmatpush1.msra.mxu0 0.0
        %812 = vmatprep.subr.mxu0 0.0
        %813 = vmatpush1.msra.mxu0 0.0
        %814 = vmatprep.subr.mxu0 0.0
        %815 = vmatpush1.msra.mxu0 0.0
        %816 = vmatprep.subr.mxu0 0.0
        %817 = vmatpush1.msra.mxu0 0.0
        %818 = vmatprep.subr.mxu0 0.0
        %819 = vmatpush1.msra.mxu0 0.0
        %820 = vmatprep.subr.mxu0 0.0
        %821 = vmatpush1.msra.mxu0 0.0
        %822 = vmatprep.subr.mxu0 0.0
        %823 = vmatpush1.msra.mxu0 0.0
        %824 = vmatprep.subr.mxu0 0.0
        %825 = vmatpush1.msra.mxu0 0.0
        %826 = vmatprep.subr.mxu0 0.0
        %827 = vmatpush1.msra.mxu0 0.0
        %828 = vmatprep.subr.mxu0 0.0
        %829 = vmatpush1.msra.mxu0 0.0
        %830 = vmatprep.subr.mxu0 0.0
        %831 = vmatpush1.msra.mxu0 0.0
        %832 = vmatprep.subr.mxu0 0.0
        %833 = vmatpush1.msra.mxu0 0.0
        %834 = vmatprep.subr.mxu0 0.0
        %835 = vmatpush1.msra.mxu0 0.0
        %836 = vmatprep.subr.mxu0 0.0
        %837 = vmatpush1.msra.mxu0 0.0
        %838 = vmatprep.subr.mxu0 0.0
        %839 = vmatpush1.msra.mxu0 0.0
        %840 = vmatprep.subr.mxu0 0.0
        %841 = vmatpush1.msra.mxu0 0.0
        %842 = vmatprep.subr.mxu0 0.0
        %843 = vmatpush1.msra.mxu0 0.0
        %844 = vmatprep.subr.mxu0 0.0
        %845 = vmatpush1.msra.mxu0 0.0
        %846 = vmatprep.subr.mxu0 0.0
        %847 = vmatpush1.msra.mxu0 0.0
        %848 = vmatprep.subr.mxu0 0.0
        %849 = vmatpush1.msra.mxu0 0.0
        %850 = vmatprep.subr.mxu0 0.0
        %851 = vmatpush1.msra.mxu0 0.0
        %852 = vmatprep.subr.mxu0 0.0
        %853 = vmatpush1.msra.mxu0 0.0
        %854 = vmatprep.mubr.f32.mxu0 0.0
        %855 = vmatmul.mubr.f32.gmra.mrb[0].mxu0 %v692
        %v856 = vpop.f32.mrb[0].mxu0
        %v857 = vadd.f32 %v533, %v856
        %v858 = vpop.f32.mrb[0].mxu0
        %859 = vmatprep.mubr.f32.mxu0 0.0
        %860 = vmatmul.mubr.f32.gmra.mrb[0].mxu0 %v695
        %v861 = vpop.f32.mrb[0].mxu0
        %v862 = vadd.f32 %v538, %v861
        %v863 = vpop.f32.mrb[0].mxu0
        %864 = vmatprep.mubr.f32.mxu0 0.0
        %865 = vmatmul.mubr.f32.gmra.mrb[0].mxu0 %v698
        %v866 = vpop.f32.mrb[0].mxu0
        %v867 = vadd.f32 %v543, %v866
        %v868 = vpop.f32.mrb[0].mxu0
        %869 = vmatprep.mubr.f32.mxu0 0.0
        %870 = vmatmul.mubr.f32.gmra.mrb[0].mxu0 %v701
        %v871 = vpop.f32.mrb[0].mxu0
        %v872 = vadd.f32 %v548, %v871
        %v873 = vpop.f32.mrb[0].mxu0
        %874 = vmatprep.mubr.f32.mxu0 0.0
        %875 = vmatmul.mubr.f32.gmra.mrb[0].mxu0 %v704
        %v876 = vpop.f32.mrb[0].mxu0
        %v877 = vadd.f32 %v553, %v876
        %v878 = vpop.f32.mrb[0].mxu0
        %879 = vmatprep.mubr.f32.mxu0 0.0
        %880 = vmatmul.mubr.f32.gmra.mrb[0].mxu0 %v707
        %v881 = vpop.f32.mrb[0].mxu0
        %v882 = vadd.f32 %v558, %v881
        %v883 = vpop.f32.mrb[0].mxu0
        %884 = vmatprep.mubr.f32.mxu0 0.0
        %885 = vmatmul.mubr.f32.gmra.mrb[0].mxu0 %v710
        %v886 = vpop.f32.mrb[0].mxu0
        %v887 = vadd.f32 %v563, %v886
        %v888 = vpop.f32.mrb[0].mxu0
        %889 = vmatprep.mubr.f32.mxu0 0.0
        %890 = vmatmul.mubr.f32.gmra.mrb[0].mxu0 %v713
        %v891 = vpop.f32.mrb[0].mxu0
        %v892 = vadd.f32 %v568, %v891
        %v893 = vpop.f32.mrb[0].mxu0
        %894 = vmatprep.mubr.f32.mxu0 0.0
        %895 = vmatmul.mubr.f32.gmra.mrb[0].mxu0 %v716
        %v896 = vpop.f32.mrb[0].mxu0
        %v897 = vadd.f32 %v573, %v896
        %v898 = vpop.f32.mrb[0].mxu0
        %899 = vmatprep.mubr.f32.mxu0 0.0
        %900 = vmatmul.mubr.f32.gmra.mrb[0].mxu0 %v719
        %v901 = vpop.f32.mrb[0].mxu0
        %v902 = vadd.f32 %v578, %v901
        %v903 = vpop.f32.mrb[0].mxu0
        %904 = vmatprep.mubr.f32.mxu0 0.0
        %905 = vmatmul.mubr.f32.gmra.mrb[0].mxu0 %v722
        %v906 = vpop.f32.mrb[0].mxu0
        %v907 = vadd.f32 %v583, %v906
        %v908 = vpop.f32.mrb[0].mxu0
        %909 = vmatprep.mubr.f32.mxu0 0.0
        %910 = vmatmul.mubr.f32.gmra.mrb[0].mxu0 %v725
        %v911 = vpop.f32.mrb[0].mxu0
        %v912 = vadd.f32 %v588, %v911
        %v913 = vpop.f32.mrb[0].mxu0
        %914 = vmatprep.mubr.f32.mxu0 0.0
        %915 = vmatmul.mubr.f32.gmra.mrb[0].mxu0 %v728
        %v916 = vpop.f32.mrb[0].mxu0
        %v917 = vadd.f32 %v593, %v916
        %v918 = vpop.f32.mrb[0].mxu0
        %919 = vmatprep.mubr.f32.mxu0 0.0
        %920 = vmatmul.mubr.f32.gmra.mrb[0].mxu0 %v731
        %v921 = vpop.f32.mrb[0].mxu0
        %v922 = vadd.f32 %v598, %v921
        %v923 = vpop.f32.mrb[0].mxu0
        %924 = vmatprep.mubr.f32.mxu0 0.0
        %925 = vmatmul.mubr.f32.gmra.mrb[0].mxu0 %v734
        %v926 = vpop.f32.mrb[0].mxu0
        %v927 = vadd.f32 %v603, %v926
        %v928 = vpop.f32.mrb[0].mxu0
        %929 = vmatprep.mubr.f32.mxu0 0.0
        %930 = vmatmul.mubr.f32.gmra.mrb[0].mxu0 %v737
        %v931 = vpop.f32.mrb[0].mxu0
        %v932 = vadd.f32 %v608, %v931
        %v933 = vpop.f32.mrb[0].mxu0
        %934 = vmatprep.mubr.f32.mxu0 0.0
        %935 = vmatmul.mubr.f32.gmra.mrb[0].mxu0 %v740
        %v936 = vpop.f32.mrb[0].mxu0
        %v937 = vadd.f32 %v613, %v936
        %v938 = vpop.f32.mrb[0].mxu0
        %939 = vmatprep.mubr.f32.mxu0 0.0
        %940 = vmatmul.mubr.f32.gmra.mrb[0].mxu0 %v743
        %v941 = vpop.f32.mrb[0].mxu0
        %v942 = vadd.f32 %v618, %v941
        %v943 = vpop.f32.mrb[0].mxu0
        %944 = vmatprep.mubr.f32.mxu0 0.0
        %945 = vmatmul.mubr.f32.gmra.mrb[0].mxu0 %v746
        %v946 = vpop.f32.mrb[0].mxu0
        %v947 = vadd.f32 %v623, %v946
        %v948 = vpop.f32.mrb[0].mxu0
        %949 = vmatprep.mubr.f32.mxu0 0.0
        %950 = vmatmul.mubr.f32.gmra.mrb[0].mxu0 %v749
        %v951 = vpop.f32.mrb[0].mxu0
        %v952 = vadd.f32 %v628, %v951
        %v953 = vpop.f32.mrb[0].mxu0
        %954 = vmatprep.mubr.f32.mxu0 0.0
        %955 = vmatmul.mubr.f32.gmra.mrb[0].mxu0 %v752
        %v956 = vpop.f32.mrb[0].mxu0
        %v957 = vadd.f32 %v633, %v956
        %v958 = vpop.f32.mrb[0].mxu0
        %959 = vmatprep.mubr.f32.mxu0 0.0
        %960 = vmatmul.mubr.f32.gmra.mrb[0].mxu0 %v755
        %v961 = vpop.f32.mrb[0].mxu0
        %v962 = vadd.f32 %v638, %v961
        %v963 = vpop.f32.mrb[0].mxu0
        %964 = vmatprep.mubr.f32.mxu0 0.0
        %965 = vmatmul.mubr.f32.gmra.mrb[0].mxu0 %v758
        %v966 = vpop.f32.mrb[0].mxu0
        %v967 = vadd.f32 %v643, %v966
        %v968 = vpop.f32.mrb[0].mxu0
        %969 = vmatprep.mubr.f32.mxu0 0.0
        %970 = vmatmul.mubr.f32.gmra.mrb[0].mxu0 %v761
        %v971 = vpop.f32.mrb[0].mxu0
        %v972 = vadd.f32 %v648, %v971
        %v973 = vpop.f32.mrb[0].mxu0
        %974 = vmatprep.mubr.f32.mxu0 0.0
        %975 = vmatmul.mubr.f32.gmra.mrb[0].mxu0 %v764
        %v976 = vpop.f32.mrb[0].mxu0
        %v977 = vadd.f32 %v653, %v976
        %v978 = vpop.f32.mrb[0].mxu0
        %979 = vmatprep.mubr.f32.mxu0 0.0
        %980 = vmatmul.mubr.f32.gmra.mrb[0].mxu0 %v767
        %v981 = vpop.f32.mrb[0].mxu0
        %v982 = vadd.f32 %v658, %v981
        %v983 = vpop.f32.mrb[0].mxu0
        %984 = vmatprep.mubr.f32.mxu0 0.0
        %985 = vmatmul.mubr.f32.gmra.mrb[0].mxu0 %v770
        %v986 = vpop.f32.mrb[0].mxu0
        %v987 = vadd.f32 %v663, %v986
        %v988 = vpop.f32.mrb[0].mxu0
        %989 = vmatprep.mubr.f32.mxu0 0.0
        %990 = vmatmul.mubr.f32.gmra.mrb[0].mxu0 %v773
        %v991 = vpop.f32.mrb[0].mxu0
        %v992 = vadd.f32 %v668, %v991
        %v993 = vpop.f32.mrb[0].mxu0
        %994 = vmatprep.mubr.f32.mxu0 0.0
        %995 = vmatmul.mubr.f32.gmra.mrb[0].mxu0 %v776
        %v996 = vpop.f32.mrb[0].mxu0
        %v997 = vadd.f32 %v673, %v996
        %v998 = vpop.f32.mrb[0].mxu0
        %999 = vmatprep.mubr.f32.mxu0 0.0
        %1000 = vmatmul.mubr.f32.gmra.mrb[0].mxu0 %v779
        %v1001 = vpop.f32.mrb[0].mxu0
        %v1002 = vadd.f32 %v678, %v1001
        %v1003 = vpop.f32.mrb[0].mxu0
        %1004 = vmatprep.mubr.f32.mxu0 0.0
        %1005 = vmatmul.mubr.f32.gmra.mrb[0].mxu0 %v782
        %v1006 = vpop.f32.mrb[0].mxu0
        %v1007 = vadd.f32 %v683, %v1006
        %v1008 = vpop.f32.mrb[0].mxu0
        %1009 = vmatprep.mubr.f32.mxu0 0.0
        %1010 = vmatmul.mubr.f32.gmra.mrb[0].mxu0 %v785
        %v1011 = vpop.f32.mrb[0].mxu0
        %v1012 = vadd.f32 %v688, %v1011
        %v1013 = vpop.f32.mrb[0].mxu0
        %1014 = vdwg.mxu0
        %v1015 = vld [vmem:[#allocation2 + $0x2] sm:$0xff]
        %v1016 = vld [vmem:[#allocation2 + $0xa] sm:$0xff]
        %v1017 = vld [vmem:[#allocation2 + $0x1a] sm:$0xff]
        %v1018 = vld [vmem:[#allocation2 + $0x22] sm:$0xff]
        %v1019 = vld [vmem:[#allocation2 + $0x32] sm:$0xff]
        %v1020 = vld [vmem:[#allocation2 + $0x3a] sm:$0xff]
        %v1021 = vld [vmem:[#allocation2 + $0x4a] sm:$0xff]
        %v1022 = vld [vmem:[#allocation2 + $0x52] sm:$0xff]
        %v1023 = vld [vmem:[#allocation2 + $0x62] sm:$0xff]
        %v1024 = vld [vmem:[#allocation2 + $0x6a] sm:$0xff]
        %v1025 = vld [vmem:[#allocation2 + $0x7a] sm:$0xff]
        %v1026 = vld [vmem:[#allocation2 + $0x82] sm:$0xff]
        %v1027 = vld [vmem:[#allocation2 + $0x92] sm:$0xff]
        %v1028 = vld [vmem:[#allocation2 + $0x9a] sm:$0xff]
        %v1029 = vld [vmem:[#allocation2 + $0xaa] sm:$0xff]
        %v1030 = vld [vmem:[#allocation2 + $0xb2] sm:$0xff]
        %v1031 = vld [vmem:[#allocation2 + $0xc2] sm:$0xff]
        %v1032 = vld [vmem:[#allocation2 + $0xca] sm:$0xff]
        %v1033 = vld [vmem:[#allocation2 + $0xda] sm:$0xff]
        %v1034 = vld [vmem:[#allocation2 + $0xe2] sm:$0xff]
        %v1035 = vld [vmem:[#allocation2 + $0xf2] sm:$0xff]
        %v1036 = vld [vmem:[#allocation2 + $0xfa] sm:$0xff]
        %v1037 = vld [vmem:[#allocation2 + $0x10a] sm:$0xff]
        %v1038 = vld [vmem:[#allocation2 + $0x112] sm:$0xff]
        %v1039 = vld [vmem:[#allocation2 + $0x122] sm:$0xff]
        %v1040 = vld [vmem:[#allocation2 + $0x12a] sm:$0xff]
        %v1041 = vld [vmem:[#allocation2 + $0x13a] sm:$0xff]
        %v1042 = vld [vmem:[#allocation2 + $0x142] sm:$0xff]
        %v1043 = vld [vmem:[#allocation2 + $0x152] sm:$0xff]
        %v1044 = vld [vmem:[#allocation2 + $0x15a] sm:$0xff]
        %v1045 = vld [vmem:[#allocation2 + $0x16a] sm:$0xff]
        %v1046 = vld [vmem:[#allocation2 + $0x172] sm:$0xff]
        %v1048 = vsel %vm214, %v1015, 0
        %v1051 = vsel %vm214, %v1016, 0
        %v1054 = vsel %vm214, %v1017, 0
        %v1057 = vsel %vm214, %v1018, 0
        %v1060 = vsel %vm214, %v1019, 0
        %v1063 = vsel %vm214, %v1020, 0
        %v1066 = vsel %vm214, %v1021, 0
        %v1069 = vsel %vm214, %v1022, 0
        %v1072 = vsel %vm214, %v1023, 0
        %v1075 = vsel %vm214, %v1024, 0
        %v1078 = vsel %vm214, %v1025, 0
        %v1081 = vsel %vm214, %v1026, 0
        %v1084 = vsel %vm214, %v1027, 0
        %v1087 = vsel %vm214, %v1028, 0
        %v1090 = vsel %vm214, %v1029, 0
        %v1093 = vsel %vm214, %v1030, 0
        %v1096 = vsel %vm214, %v1031, 0
        %v1099 = vsel %vm214, %v1032, 0
        %v1102 = vsel %vm214, %v1033, 0
        %v1105 = vsel %vm214, %v1034, 0
        %v1108 = vsel %vm214, %v1035, 0
        %v1111 = vsel %vm214, %v1036, 0
        %v1114 = vsel %vm214, %v1037, 0
        %v1117 = vsel %vm214, %v1038, 0
        %v1120 = vsel %vm214, %v1039, 0
        %v1123 = vsel %vm214, %v1040, 0
        %v1126 = vsel %vm214, %v1041, 0
        %v1129 = vsel %vm214, %v1042, 0
        %v1132 = vsel %vm214, %v1043, 0
        %v1135 = vsel %vm214, %v1044, 0
        %v1138 = vsel %vm214, %v1045, 0
        %v1141 = vsel %vm214, %v1046, 0
        %v1144 = vsel %vm462, %v295, 0
        %1146 = vmatprep.subr.mxu0 0.0
        %1147 = vmatpush1.msra.mxu0 %v1144
        %1148 = vmatprep.subr.mxu0 0.0
        %1149 = vmatpush1.msra.mxu0 0.0
        %1150 = vmatprep.subr.mxu0 0.0
        %1151 = vmatpush1.msra.mxu0 0.0
        %1152 = vmatprep.subr.mxu0 0.0
        %1153 = vmatpush1.msra.mxu0 0.0
        %1154 = vmatprep.subr.mxu0 0.0
        %1155 = vmatpush1.msra.mxu0 0.0
        %1156 = vmatprep.subr.mxu0 0.0
        %1157 = vmatpush1.msra.mxu0 0.0
        %1158 = vmatprep.subr.mxu0 0.0
        %1159 = vmatpush1.msra.mxu0 0.0
        %1160 = vmatprep.subr.mxu0 0.0
        %1161 = vmatpush1.msra.mxu0 0.0
        %1162 = vmatprep.subr.mxu0 0.0
        %1163 = vmatpush1.msra.mxu0 0.0
        %1164 = vmatprep.subr.mxu0 0.0
        %1165 = vmatpush1.msra.mxu0 0.0
        %1166 = vmatprep.subr.mxu0 0.0
        %1167 = vmatpush1.msra.mxu0 0.0
        %1168 = vmatprep.subr.mxu0 0.0
        %1169 = vmatpush1.msra.mxu0 0.0
        %1170 = vmatprep.subr.mxu0 0.0
        %1171 = vmatpush1.msra.mxu0 0.0
        %1172 = vmatprep.subr.mxu0 0.0
        %1173 = vmatpush1.msra.mxu0 0.0
        %1174 = vmatprep.subr.mxu0 0.0
        %1175 = vmatpush1.msra.mxu0 0.0
        %1176 = vmatprep.subr.mxu0 0.0
        %1177 = vmatpush1.msra.mxu0 0.0
        %1178 = vmatprep.subr.mxu0 0.0
        %1179 = vmatpush1.msra.mxu0 0.0
        %1180 = vmatprep.subr.mxu0 0.0
        %1181 = vmatpush1.msra.mxu0 0.0
        %1182 = vmatprep.subr.mxu0 0.0
        %1183 = vmatpush1.msra.mxu0 0.0
        %1184 = vmatprep.subr.mxu0 0.0
        %1185 = vmatpush1.msra.mxu0 0.0
        %1186 = vmatprep.subr.mxu0 0.0
        %1187 = vmatpush1.msra.mxu0 0.0
        %1188 = vmatprep.subr.mxu0 0.0
        %1189 = vmatpush1.msra.mxu0 0.0
        %1190 = vmatprep.subr.mxu0 0.0
        %1191 = vmatpush1.msra.mxu0 0.0
        %1192 = vmatprep.subr.mxu0 0.0
        %1193 = vmatpush1.msra.mxu0 0.0
        %1194 = vmatprep.subr.mxu0 0.0
        %1195 = vmatpush1.msra.mxu0 0.0
        %1196 = vmatprep.subr.mxu0 0.0
        %1197 = vmatpush1.msra.mxu0 0.0
        %1198 = vmatprep.subr.mxu0 0.0
        %1199 = vmatpush1.msra.mxu0 0.0
        %1200 = vmatprep.subr.mxu0 0.0
        %1201 = vmatpush1.msra.mxu0 0.0
        %1202 = vmatprep.subr.mxu0 0.0
        %1203 = vmatpush1.msra.mxu0 0.0
        %1204 = vmatprep.subr.mxu0 0.0
        %1205 = vmatpush1.msra.mxu0 0.0
        %1206 = vmatprep.subr.mxu0 0.0
        %1207 = vmatpush1.msra.mxu0 0.0
        %1208 = vmatprep.subr.mxu0 0.0
        %1209 = vmatpush1.msra.mxu0 0.0
        %1210 = vmatprep.mubr.f32.mxu0 0.0
        %1211 = vmatmul.mubr.f32.gmra.mrb[0].mxu0 %v1048
        %v1212 = vpop.f32.mrb[0].mxu0
        %v1213 = vadd.f32 0.0, %v1212
        %v1214 = vpop.f32.mrb[0].mxu0
        %1215 = vmatprep.mubr.f32.mxu0 0.0
        %1216 = vmatmul.mubr.f32.gmra.mrb[0].mxu0 %v1051
        %v1217 = vpop.f32.mrb[0].mxu0
        %v1218 = vadd.f32 0.0, %v1217
        %v1219 = vpop.f32.mrb[0].mxu0
        %1220 = vmatprep.mubr.f32.mxu0 0.0
        %1221 = vmatmul.mubr.f32.gmra.mrb[0].mxu0 %v1054
        %v1222 = vpop.f32.mrb[0].mxu0
        %v1223 = vadd.f32 0.0, %v1222
        %v1224 = vpop.f32.mrb[0].mxu0
        %1225 = vmatprep.mubr.f32.mxu0 0.0
        %1226 = vmatmul.mubr.f32.gmra.mrb[0].mxu0 %v1057
        %v1227 = vpop.f32.mrb[0].mxu0
        %v1228 = vadd.f32 0.0, %v1227
        %v1229 = vpop.f32.mrb[0].mxu0
        %1230 = vmatprep.mubr.f32.mxu0 0.0
        %1231 = vmatmul.mubr.f32.gmra.mrb[0].mxu0 %v1060
        %v1232 = vpop.f32.mrb[0].mxu0
        %v1233 = vadd.f32 0.0, %v1232
        %v1234 = vpop.f32.mrb[0].mxu0
        %1235 = vmatprep.mubr.f32.mxu0 0.0
        %1236 = vmatmul.mubr.f32.gmra.mrb[0].mxu0 %v1063
        %v1237 = vpop.f32.mrb[0].mxu0
        %v1238 = vadd.f32 0.0, %v1237
        %v1239 = vpop.f32.mrb[0].mxu0
        %1240 = vmatprep.mubr.f32.mxu0 0.0
        %1241 = vmatmul.mubr.f32.gmra.mrb[0].mxu0 %v1066
        %v1242 = vpop.f32.mrb[0].mxu0
        %v1243 = vadd.f32 0.0, %v1242
        %v1244 = vpop.f32.mrb[0].mxu0
        %1245 = vmatprep.mubr.f32.mxu0 0.0
        %1246 = vmatmul.mubr.f32.gmra.mrb[0].mxu0 %v1069
        %v1247 = vpop.f32.mrb[0].mxu0
        %v1248 = vadd.f32 0.0, %v1247
        %v1249 = vpop.f32.mrb[0].mxu0
        %1250 = vmatprep.mubr.f32.mxu0 0.0
        %1251 = vmatmul.mubr.f32.gmra.mrb[0].mxu0 %v1072
        %v1252 = vpop.f32.mrb[0].mxu0
        %v1253 = vadd.f32 0.0, %v1252
        %v1254 = vpop.f32.mrb[0].mxu0
        %1255 = vmatprep.mubr.f32.mxu0 0.0
        %1256 = vmatmul.mubr.f32.gmra.mrb[0].mxu0 %v1075
        %v1257 = vpop.f32.mrb[0].mxu0
        %v1258 = vadd.f32 0.0, %v1257
        %v1259 = vpop.f32.mrb[0].mxu0
        %1260 = vmatprep.mubr.f32.mxu0 0.0
        %1261 = vmatmul.mubr.f32.gmra.mrb[0].mxu0 %v1078
        %v1262 = vpop.f32.mrb[0].mxu0
        %v1263 = vadd.f32 0.0, %v1262
        %v1264 = vpop.f32.mrb[0].mxu0
        %1265 = vmatprep.mubr.f32.mxu0 0.0
        %1266 = vmatmul.mubr.f32.gmra.mrb[0].mxu0 %v1081
        %v1267 = vpop.f32.mrb[0].mxu0
        %v1268 = vadd.f32 0.0, %v1267
        %v1269 = vpop.f32.mrb[0].mxu0
        %1270 = vmatprep.mubr.f32.mxu0 0.0
        %1271 = vmatmul.mubr.f32.gmra.mrb[0].mxu0 %v1084
        %v1272 = vpop.f32.mrb[0].mxu0
        %v1273 = vadd.f32 0.0, %v1272
        %v1274 = vpop.f32.mrb[0].mxu0
        %1275 = vmatprep.mubr.f32.mxu0 0.0
        %1276 = vmatmul.mubr.f32.gmra.mrb[0].mxu0 %v1087
        %v1277 = vpop.f32.mrb[0].mxu0
        %v1278 = vadd.f32 0.0, %v1277
        %v1279 = vpop.f32.mrb[0].mxu0
        %1280 = vmatprep.mubr.f32.mxu0 0.0
        %1281 = vmatmul.mubr.f32.gmra.mrb[0].mxu0 %v1090
        %v1282 = vpop.f32.mrb[0].mxu0
        %v1283 = vadd.f32 0.0, %v1282
        %v1284 = vpop.f32.mrb[0].mxu0
        %1285 = vmatprep.mubr.f32.mxu0 0.0
        %1286 = vmatmul.mubr.f32.gmra.mrb[0].mxu0 %v1093
        %v1287 = vpop.f32.mrb[0].mxu0
        %v1288 = vadd.f32 0.0, %v1287
        %v1289 = vpop.f32.mrb[0].mxu0
        %1290 = vmatprep.mubr.f32.mxu0 0.0
        %1291 = vmatmul.mubr.f32.gmra.mrb[0].mxu0 %v1096
        %v1292 = vpop.f32.mrb[0].mxu0
        %v1293 = vadd.f32 0.0, %v1292
        %v1294 = vpop.f32.mrb[0].mxu0
        %1295 = vmatprep.mubr.f32.mxu0 0.0
        %1296 = vmatmul.mubr.f32.gmra.mrb[0].mxu0 %v1099
        %v1297 = vpop.f32.mrb[0].mxu0
        %v1298 = vadd.f32 0.0, %v1297
        %v1299 = vpop.f32.mrb[0].mxu0
        %1300 = vmatprep.mubr.f32.mxu0 0.0
        %1301 = vmatmul.mubr.f32.gmra.mrb[0].mxu0 %v1102
        %v1302 = vpop.f32.mrb[0].mxu0
        %v1303 = vadd.f32 0.0, %v1302
        %v1304 = vpop.f32.mrb[0].mxu0
        %1305 = vmatprep.mubr.f32.mxu0 0.0
        %1306 = vmatmul.mubr.f32.gmra.mrb[0].mxu0 %v1105
        %v1307 = vpop.f32.mrb[0].mxu0
        %v1308 = vadd.f32 0.0, %v1307
        %v1309 = vpop.f32.mrb[0].mxu0
        %1310 = vmatprep.mubr.f32.mxu0 0.0
        %1311 = vmatmul.mubr.f32.gmra.mrb[0].mxu0 %v1108
        %v1312 = vpop.f32.mrb[0].mxu0
        %v1313 = vadd.f32 0.0, %v1312
        %v1314 = vpop.f32.mrb[0].mxu0
        %1315 = vmatprep.mubr.f32.mxu0 0.0
        %1316 = vmatmul.mubr.f32.gmra.mrb[0].mxu0 %v1111
        %v1317 = vpop.f32.mrb[0].mxu0
        %v1318 = vadd.f32 0.0, %v1317
        %v1319 = vpop.f32.mrb[0].mxu0
        %1320 = vmatprep.mubr.f32.mxu0 0.0
        %1321 = vmatmul.mubr.f32.gmra.mrb[0].mxu0 %v1114
        %v1322 = vpop.f32.mrb[0].mxu0
        %v1323 = vadd.f32 0.0, %v1322
        %v1324 = vpop.f32.mrb[0].mxu0
        %1325 = vmatprep.mubr.f32.mxu0 0.0
        %1326 = vmatmul.mubr.f32.gmra.mrb[0].mxu0 %v1117
        %v1327 = vpop.f32.mrb[0].mxu0
        %v1328 = vadd.f32 0.0, %v1327
        %v1329 = vpop.f32.mrb[0].mxu0
        %1330 = vmatprep.mubr.f32.mxu0 0.0
        %1331 = vmatmul.mubr.f32.gmra.mrb[0].mxu0 %v1120
        %v1332 = vpop.f32.mrb[0].mxu0
        %v1333 = vadd.f32 0.0, %v1332
        %v1334 = vpop.f32.mrb[0].mxu0
        %1335 = vmatprep.mubr.f32.mxu0 0.0
        %1336 = vmatmul.mubr.f32.gmra.mrb[0].mxu0 %v1123
        %v1337 = vpop.f32.mrb[0].mxu0
        %v1338 = vadd.f32 0.0, %v1337
        %v1339 = vpop.f32.mrb[0].mxu0
        %1340 = vmatprep.mubr.f32.mxu0 0.0
        %1341 = vmatmul.mubr.f32.gmra.mrb[0].mxu0 %v1126
        %v1342 = vpop.f32.mrb[0].mxu0
        %v1343 = vadd.f32 0.0, %v1342
        %v1344 = vpop.f32.mrb[0].mxu0
        %1345 = vmatprep.mubr.f32.mxu0 0.0
        %1346 = vmatmul.mubr.f32.gmra.mrb[0].mxu0 %v1129
        %v1347 = vpop.f32.mrb[0].mxu0
        %v1348 = vadd.f32 0.0, %v1347
        %v1349 = vpop.f32.mrb[0].mxu0
        %1350 = vmatprep.mubr.f32.mxu0 0.0
        %1351 = vmatmul.mubr.f32.gmra.mrb[0].mxu0 %v1132
        %v1352 = vpop.f32.mrb[0].mxu0
        %v1353 = vadd.f32 0.0, %v1352
        %v1354 = vpop.f32.mrb[0].mxu0
        %1355 = vmatprep.mubr.f32.mxu0 0.0
        %1356 = vmatmul.mubr.f32.gmra.mrb[0].mxu0 %v1135
        %v1357 = vpop.f32.mrb[0].mxu0
        %v1358 = vadd.f32 0.0, %v1357
        %v1359 = vpop.f32.mrb[0].mxu0
        %1360 = vmatprep.mubr.f32.mxu0 0.0
        %1361 = vmatmul.mubr.f32.gmra.mrb[0].mxu0 %v1138
        %v1362 = vpop.f32.mrb[0].mxu0
        %v1363 = vadd.f32 0.0, %v1362
        %v1364 = vpop.f32.mrb[0].mxu0
        %1365 = vmatprep.mubr.f32.mxu0 0.0
        %1366 = vmatmul.mubr.f32.gmra.mrb[0].mxu0 %v1141
        %v1367 = vpop.f32.mrb[0].mxu0
        %v1368 = vadd.f32 0.0, %v1367
        %v1369 = vpop.f32.mrb[0].mxu0
        %1370 = vdwg.mxu0
        %v1371 = vadd.f32 %v857, %v1213
        %v1372 = vadd.f32 %v862, %v1218
        %v1373 = vadd.f32 %v867, %v1223
        %v1374 = vadd.f32 %v872, %v1228
        %v1375 = vadd.f32 %v877, %v1233
        %v1376 = vadd.f32 %v882, %v1238
        %v1377 = vadd.f32 %v887, %v1243
        %v1378 = vadd.f32 %v892, %v1248
        %v1379 = vadd.f32 %v897, %v1253
        %v1380 = vadd.f32 %v902, %v1258
        %v1381 = vadd.f32 %v907, %v1263
        %v1382 = vadd.f32 %v912, %v1268
        %v1383 = vadd.f32 %v917, %v1273
        %v1384 = vadd.f32 %v922, %v1278
        %v1385 = vadd.f32 %v927, %v1283
        %v1386 = vadd.f32 %v932, %v1288
        %v1387 = vadd.f32 %v937, %v1293
        %v1388 = vadd.f32 %v942, %v1298
        %v1389 = vadd.f32 %v947, %v1303
        %v1390 = vadd.f32 %v952, %v1308
        %v1391 = vadd.f32 %v957, %v1313
        %v1392 = vadd.f32 %v962, %v1318
        %v1393 = vadd.f32 %v967, %v1323
        %v1394 = vadd.f32 %v972, %v1328
        %v1395 = vadd.f32 %v977, %v1333
        %v1396 = vadd.f32 %v982, %v1338
        %v1397 = vadd.f32 %v987, %v1343
        %v1398 = vadd.f32 %v992, %v1348
        %v1399 = vadd.f32 %v997, %v1353
        %v1400 = vadd.f32 %v1002, %v1358
        %v1401 = vadd.f32 %v1007, %v1363
        %v1402 = vadd.f32 %v1012, %v1368
        %v1403 = vld [vmem:[%s260] sm:$0xff]
        %v1404 = vld [vmem:[%s260 + $0x8] sm:$0xff]
        %v1405 = vld [vmem:[%s260 + $0x18] sm:$0xff]
        %v1406 = vld [vmem:[%s260 + $0x20] sm:$0xff]
        %v1407 = vld [vmem:[%s260 + $0x30] sm:$0xff]
        %v1408 = vld [vmem:[%s260 + $0x38] sm:$0xff]
        %v1409 = vld [vmem:[%s260 + $0x48] sm:$0xff]
        %v1410 = vld [vmem:[%s260 + $0x50] sm:$0xff]
        %v1411 = vld [vmem:[%s260 + $0x60] sm:$0xff]
        %v1412 = vld [vmem:[%s260 + $0x68] sm:$0xff]
        %v1413 = vld [vmem:[%s260 + $0x78] sm:$0xff]
        %v1414 = vld [vmem:[%s260 + $0x80] sm:$0xff]
        %v1415 = vld [vmem:[%s260 + $0x90] sm:$0xff]
        %v1416 = vld [vmem:[%s260 + $0x98] sm:$0xff]
        %v1417 = vld [vmem:[%s260 + $0xa8] sm:$0xff]
        %v1418 = vld [vmem:[%s260 + $0xb0] sm:$0xff]
        %v1419 = vld [vmem:[%s260 + $0xc0] sm:$0xff]
        %v1420 = vld [vmem:[%s260 + $0xc8] sm:$0xff]
        %v1421 = vld [vmem:[%s260 + $0xd8] sm:$0xff]
        %v1422 = vld [vmem:[%s260 + $0xe0] sm:$0xff]
        %v1423 = vld [vmem:[%s260 + $0xf0] sm:$0xff]
        %v1424 = vld [vmem:[%s260 + $0xf8] sm:$0xff]
        %v1425 = vld [vmem:[%s260 + $0x108] sm:$0xff]
        %v1426 = vld [vmem:[%s260 + $0x110] sm:$0xff]
        %v1427 = vld [vmem:[%s260 + $0x120] sm:$0xff]
        %v1428 = vld [vmem:[%s260 + $0x128] sm:$0xff]
        %v1429 = vld [vmem:[%s260 + $0x138] sm:$0xff]
        %v1430 = vld [vmem:[%s260 + $0x140] sm:$0xff]
        %v1431 = vld [vmem:[%s260 + $0x150] sm:$0xff]
        %v1432 = vld [vmem:[%s260 + $0x158] sm:$0xff]
        %v1433 = vld [vmem:[%s260 + $0x168] sm:$0xff]
        %v1434 = vld [vmem:[%s260 + $0x170] sm:$0xff]
        %v1436 = vsel %vm214, %v1403, 0
        %v1439 = vsel %vm214, %v1404, 0
        %v1442 = vsel %vm214, %v1405, 0
        %v1445 = vsel %vm214, %v1406, 0
        %v1448 = vsel %vm214, %v1407, 0
        %v1451 = vsel %vm214, %v1408, 0
        %v1454 = vsel %vm214, %v1409, 0
        %v1457 = vsel %vm214, %v1410, 0
        %v1460 = vsel %vm214, %v1411, 0
        %v1463 = vsel %vm214, %v1412, 0
        %v1466 = vsel %vm214, %v1413, 0
        %v1469 = vsel %vm214, %v1414, 0
        %v1472 = vsel %vm214, %v1415, 0
        %v1475 = vsel %vm214, %v1416, 0
        %v1478 = vsel %vm214, %v1417, 0
        %v1481 = vsel %vm214, %v1418, 0
        %v1484 = vsel %vm214, %v1419, 0
        %v1487 = vsel %vm214, %v1420, 0
        %v1490 = vsel %vm214, %v1421, 0
        %v1493 = vsel %vm214, %v1422, 0
        %v1496 = vsel %vm214, %v1423, 0
        %v1499 = vsel %vm214, %v1424, 0
        %v1502 = vsel %vm214, %v1425, 0
        %v1505 = vsel %vm214, %v1426, 0
        %v1508 = vsel %vm214, %v1427, 0
        %v1511 = vsel %vm214, %v1428, 0
        %v1514 = vsel %vm214, %v1429, 0
        %v1517 = vsel %vm214, %v1430, 0
        %v1520 = vsel %vm214, %v1431, 0
        %v1523 = vsel %vm214, %v1432, 0
        %v1526 = vsel %vm214, %v1433, 0
        %v1529 = vsel %vm214, %v1434, 0
        %v1532 = vsel %vm462, %v296, 0
        %1534 = vmatprep.subr.mxu0 0.0
        %1535 = vmatpush1.msra.mxu0 %v1532
        %1536 = vmatprep.subr.mxu0 0.0
        %1537 = vmatpush1.msra.mxu0 0.0
        %1538 = vmatprep.subr.mxu0 0.0
        %1539 = vmatpush1.msra.mxu0 0.0
        %1540 = vmatprep.subr.mxu0 0.0
        %1541 = vmatpush1.msra.mxu0 0.0
        %1542 = vmatprep.subr.mxu0 0.0
        %1543 = vmatpush1.msra.mxu0 0.0
        %1544 = vmatprep.subr.mxu0 0.0
        %1545 = vmatpush1.msra.mxu0 0.0
        %1546 = vmatprep.subr.mxu0 0.0
        %1547 = vmatpush1.msra.mxu0 0.0
        %1548 = vmatprep.subr.mxu0 0.0
        %1549 = vmatpush1.msra.mxu0 0.0
        %1550 = vmatprep.subr.mxu0 0.0
        %1551 = vmatpush1.msra.mxu0 0.0
        %1552 = vmatprep.subr.mxu0 0.0
        %1553 = vmatpush1.msra.mxu0 0.0
        %1554 = vmatprep.subr.mxu0 0.0
        %1555 = vmatpush1.msra.mxu0 0.0
        %1556 = vmatprep.subr.mxu0 0.0
        %1557 = vmatpush1.msra.mxu0 0.0
        %1558 = vmatprep.subr.mxu0 0.0
        %1559 = vmatpush1.msra.mxu0 0.0
        %1560 = vmatprep.subr.mxu0 0.0
        %1561 = vmatpush1.msra.mxu0 0.0
        %1562 = vmatprep.subr.mxu0 0.0
        %1563 = vmatpush1.msra.mxu0 0.0
        %1564 = vmatprep.subr.mxu0 0.0
        %1565 = vmatpush1.msra.mxu0 0.0
        %1566 = vmatprep.subr.mxu0 0.0
        %1567 = vmatpush1.msra.mxu0 0.0
        %1568 = vmatprep.subr.mxu0 0.0
        %1569 = vmatpush1.msra.mxu0 0.0
        %1570 = vmatprep.subr.mxu0 0.0
        %1571 = vmatpush1.msra.mxu0 0.0
        %1572 = vmatprep.subr.mxu0 0.0
        %1573 = vmatpush1.msra.mxu0 0.0
        %1574 = vmatprep.subr.mxu0 0.0
        %1575 = vmatpush1.msra.mxu0 0.0
        %1576 = vmatprep.subr.mxu0 0.0
        %1577 = vmatpush1.msra.mxu0 0.0
        %1578 = vmatprep.subr.mxu0 0.0
        %1579 = vmatpush1.msra.mxu0 0.0
        %1580 = vmatprep.subr.mxu0 0.0
        %1581 = vmatpush1.msra.mxu0 0.0
        %1582 = vmatprep.subr.mxu0 0.0
        %1583 = vmatpush1.msra.mxu0 0.0
        %1584 = vmatprep.subr.mxu0 0.0
        %1585 = vmatpush1.msra.mxu0 0.0
        %1586 = vmatprep.subr.mxu0 0.0
        %1587 = vmatpush1.msra.mxu0 0.0
        %1588 = vmatprep.subr.mxu0 0.0
        %1589 = vmatpush1.msra.mxu0 0.0
        %1590 = vmatprep.subr.mxu0 0.0
        %1591 = vmatpush1.msra.mxu0 0.0
        %1592 = vmatprep.subr.mxu0 0.0
        %1593 = vmatpush1.msra.mxu0 0.0
        %1594 = vmatprep.subr.mxu0 0.0
        %1595 = vmatpush1.msra.mxu0 0.0
        %1596 = vmatprep.subr.mxu0 0.0
        %1597 = vmatpush1.msra.mxu0 0.0
        %1598 = vmatprep.mubr.f32.mxu0 0.0
        %1599 = vmatmul.mubr.f32.gmra.mrb[0].mxu0 %v1436
        %v1600 = vpop.f32.mrb[0].mxu0
        %v1601 = vadd.f32 0.0, %v1600
        %v1602 = vpop.f32.mrb[0].mxu0
        %1603 = vmatprep.mubr.f32.mxu0 0.0
        %1604 = vmatmul.mubr.f32.gmra.mrb[0].mxu0 %v1439
        %v1605 = vpop.f32.mrb[0].mxu0
        %v1606 = vadd.f32 0.0, %v1605
        %v1607 = vpop.f32.mrb[0].mxu0
        %1608 = vmatprep.mubr.f32.mxu0 0.0
        %1609 = vmatmul.mubr.f32.gmra.mrb[0].mxu0 %v1442
        %v1610 = vpop.f32.mrb[0].mxu0
        %v1611 = vadd.f32 0.0, %v1610
        %v1612 = vpop.f32.mrb[0].mxu0
        %1613 = vmatprep.mubr.f32.mxu0 0.0
        %1614 = vmatmul.mubr.f32.gmra.mrb[0].mxu0 %v1445
        %v1615 = vpop.f32.mrb[0].mxu0
        %v1616 = vadd.f32 0.0, %v1615
        %v1617 = vpop.f32.mrb[0].mxu0
        %1618 = vmatprep.mubr.f32.mxu0 0.0
        %1619 = vmatmul.mubr.f32.gmra.mrb[0].mxu0 %v1448
        %v1620 = vpop.f32.mrb[0].mxu0
        %v1621 = vadd.f32 0.0, %v1620
        %v1622 = vpop.f32.mrb[0].mxu0
        %1623 = vmatprep.mubr.f32.mxu0 0.0
        %1624 = vmatmul.mubr.f32.gmra.mrb[0].mxu0 %v1451
        %v1625 = vpop.f32.mrb[0].mxu0
        %v1626 = vadd.f32 0.0, %v1625
        %v1627 = vpop.f32.mrb[0].mxu0
        %1628 = vmatprep.mubr.f32.mxu0 0.0
        %1629 = vmatmul.mubr.f32.gmra.mrb[0].mxu0 %v1454
        %v1630 = vpop.f32.mrb[0].mxu0
        %v1631 = vadd.f32 0.0, %v1630
        %v1632 = vpop.f32.mrb[0].mxu0
        %1633 = vmatprep.mubr.f32.mxu0 0.0
        %1634 = vmatmul.mubr.f32.gmra.mrb[0].mxu0 %v1457
        %v1635 = vpop.f32.mrb[0].mxu0
        %v1636 = vadd.f32 0.0, %v1635
        %v1637 = vpop.f32.mrb[0].mxu0
        %1638 = vmatprep.mubr.f32.mxu0 0.0
        %1639 = vmatmul.mubr.f32.gmra.mrb[0].mxu0 %v1460
        %v1640 = vpop.f32.mrb[0].mxu0
        %v1641 = vadd.f32 0.0, %v1640
        %v1642 = vpop.f32.mrb[0].mxu0
        %1643 = vmatprep.mubr.f32.mxu0 0.0
        %1644 = vmatmul.mubr.f32.gmra.mrb[0].mxu0 %v1463
        %v1645 = vpop.f32.mrb[0].mxu0
        %v1646 = vadd.f32 0.0, %v1645
        %v1647 = vpop.f32.mrb[0].mxu0
        %1648 = vmatprep.mubr.f32.mxu0 0.0
        %1649 = vmatmul.mubr.f32.gmra.mrb[0].mxu0 %v1466
        %v1650 = vpop.f32.mrb[0].mxu0
        %v1651 = vadd.f32 0.0, %v1650
        %v1652 = vpop.f32.mrb[0].mxu0
        %1653 = vmatprep.mubr.f32.mxu0 0.0
        %1654 = vmatmul.mubr.f32.gmra.mrb[0].mxu0 %v1469
        %v1655 = vpop.f32.mrb[0].mxu0
        %v1656 = vadd.f32 0.0, %v1655
        %v1657 = vpop.f32.mrb[0].mxu0
        %1658 = vmatprep.mubr.f32.mxu0 0.0
        %1659 = vmatmul.mubr.f32.gmra.mrb[0].mxu0 %v1472
        %v1660 = vpop.f32.mrb[0].mxu0
        %v1661 = vadd.f32 0.0, %v1660
        %v1662 = vpop.f32.mrb[0].mxu0
        %1663 = vmatprep.mubr.f32.mxu0 0.0
        %1664 = vmatmul.mubr.f32.gmra.mrb[0].mxu0 %v1475
        %v1665 = vpop.f32.mrb[0].mxu0
        %v1666 = vadd.f32 0.0, %v1665
        %v1667 = vpop.f32.mrb[0].mxu0
        %1668 = vmatprep.mubr.f32.mxu0 0.0
        %1669 = vmatmul.mubr.f32.gmra.mrb[0].mxu0 %v1478
        %v1670 = vpop.f32.mrb[0].mxu0
        %v1671 = vadd.f32 0.0, %v1670
        %v1672 = vpop.f32.mrb[0].mxu0
        %1673 = vmatprep.mubr.f32.mxu0 0.0
        %1674 = vmatmul.mubr.f32.gmra.mrb[0].mxu0 %v1481
        %v1675 = vpop.f32.mrb[0].mxu0
        %v1676 = vadd.f32 0.0, %v1675
        %v1677 = vpop.f32.mrb[0].mxu0
        %1678 = vmatprep.mubr.f32.mxu0 0.0
        %1679 = vmatmul.mubr.f32.gmra.mrb[0].mxu0 %v1484
        %v1680 = vpop.f32.mrb[0].mxu0
        %v1681 = vadd.f32 0.0, %v1680
        %v1682 = vpop.f32.mrb[0].mxu0
        %1683 = vmatprep.mubr.f32.mxu0 0.0
        %1684 = vmatmul.mubr.f32.gmra.mrb[0].mxu0 %v1487
        %v1685 = vpop.f32.mrb[0].mxu0
        %v1686 = vadd.f32 0.0, %v1685
        %v1687 = vpop.f32.mrb[0].mxu0
        %1688 = vmatprep.mubr.f32.mxu0 0.0
        %1689 = vmatmul.mubr.f32.gmra.mrb[0].mxu0 %v1490
        %v1690 = vpop.f32.mrb[0].mxu0
        %v1691 = vadd.f32 0.0, %v1690
        %v1692 = vpop.f32.mrb[0].mxu0
        %1693 = vmatprep.mubr.f32.mxu0 0.0
        %1694 = vmatmul.mubr.f32.gmra.mrb[0].mxu0 %v1493
        %v1695 = vpop.f32.mrb[0].mxu0
        %v1696 = vadd.f32 0.0, %v1695
        %v1697 = vpop.f32.mrb[0].mxu0
        %1698 = vmatprep.mubr.f32.mxu0 0.0
        %1699 = vmatmul.mubr.f32.gmra.mrb[0].mxu0 %v1496
        %v1700 = vpop.f32.mrb[0].mxu0
        %v1701 = vadd.f32 0.0, %v1700
        %v1702 = vpop.f32.mrb[0].mxu0
        %1703 = vmatprep.mubr.f32.mxu0 0.0
        %1704 = vmatmul.mubr.f32.gmra.mrb[0].mxu0 %v1499
        %v1705 = vpop.f32.mrb[0].mxu0
        %v1706 = vadd.f32 0.0, %v1705
        %v1707 = vpop.f32.mrb[0].mxu0
        %1708 = vmatprep.mubr.f32.mxu0 0.0
        %1709 = vmatmul.mubr.f32.gmra.mrb[0].mxu0 %v1502
        %v1710 = vpop.f32.mrb[0].mxu0
        %v1711 = vadd.f32 0.0, %v1710
        %v1712 = vpop.f32.mrb[0].mxu0
        %1713 = vmatprep.mubr.f32.mxu0 0.0
        %1714 = vmatmul.mubr.f32.gmra.mrb[0].mxu0 %v1505
        %v1715 = vpop.f32.mrb[0].mxu0
        %v1716 = vadd.f32 0.0, %v1715
        %v1717 = vpop.f32.mrb[0].mxu0
        %1718 = vmatprep.mubr.f32.mxu0 0.0
        %1719 = vmatmul.mubr.f32.gmra.mrb[0].mxu0 %v1508
        %v1720 = vpop.f32.mrb[0].mxu0
        %v1721 = vadd.f32 0.0, %v1720
        %v1722 = vpop.f32.mrb[0].mxu0
        %1723 = vmatprep.mubr.f32.mxu0 0.0
        %1724 = vmatmul.mubr.f32.gmra.mrb[0].mxu0 %v1511
        %v1725 = vpop.f32.mrb[0].mxu0
        %v1726 = vadd.f32 0.0, %v1725
        %v1727 = vpop.f32.mrb[0].mxu0
        %1728 = vmatprep.mubr.f32.mxu0 0.0
        %1729 = vmatmul.mubr.f32.gmra.mrb[0].mxu0 %v1514
        %v1730 = vpop.f32.mrb[0].mxu0
        %v1731 = vadd.f32 0.0, %v1730
        %v1732 = vpop.f32.mrb[0].mxu0
        %1733 = vmatprep.mubr.f32.mxu0 0.0
        %1734 = vmatmul.mubr.f32.gmra.mrb[0].mxu0 %v1517
        %v1735 = vpop.f32.mrb[0].mxu0
        %v1736 = vadd.f32 0.0, %v1735
        %v1737 = vpop.f32.mrb[0].mxu0
        %1738 = vmatprep.mubr.f32.mxu0 0.0
        %1739 = vmatmul.mubr.f32.gmra.mrb[0].mxu0 %v1520
        %v1740 = vpop.f32.mrb[0].mxu0
        %v1741 = vadd.f32 0.0, %v1740
        %v1742 = vpop.f32.mrb[0].mxu0
        %1743 = vmatprep.mubr.f32.mxu0 0.0
        %1744 = vmatmul.mubr.f32.gmra.mrb[0].mxu0 %v1523
        %v1745 = vpop.f32.mrb[0].mxu0
        %v1746 = vadd.f32 0.0, %v1745
        %v1747 = vpop.f32.mrb[0].mxu0
        %1748 = vmatprep.mubr.f32.mxu0 0.0
        %1749 = vmatmul.mubr.f32.gmra.mrb[0].mxu0 %v1526
        %v1750 = vpop.f32.mrb[0].mxu0
        %v1751 = vadd.f32 0.0, %v1750
        %v1752 = vpop.f32.mrb[0].mxu0
        %1753 = vmatprep.mubr.f32.mxu0 0.0
        %1754 = vmatmul.mubr.f32.gmra.mrb[0].mxu0 %v1529
        %v1755 = vpop.f32.mrb[0].mxu0
        %v1756 = vadd.f32 0.0, %v1755
        %v1757 = vpop.f32.mrb[0].mxu0
        %1758 = vdwg.mxu0
        %v1759 = vadd.f32 %v1371, %v1601
        %v1760 = vadd.f32 %v1372, %v1606
        %v1761 = vadd.f32 %v1373, %v1611
        %v1762 = vadd.f32 %v1374, %v1616
        %v1763 = vadd.f32 %v1375, %v1621
        %v1764 = vadd.f32 %v1376, %v1626
        %v1765 = vadd.f32 %v1377, %v1631
        %v1766 = vadd.f32 %v1378, %v1636
        %v1767 = vadd.f32 %v1379, %v1641
        %v1768 = vadd.f32 %v1380, %v1646
        %v1769 = vadd.f32 %v1381, %v1651
        %v1770 = vadd.f32 %v1382, %v1656
        %v1771 = vadd.f32 %v1383, %v1661
        %v1772 = vadd.f32 %v1384, %v1666
        %v1773 = vadd.f32 %v1385, %v1671
        %v1774 = vadd.f32 %v1386, %v1676
        %v1775 = vadd.f32 %v1387, %v1681
        %v1776 = vadd.f32 %v1388, %v1686
        %v1777 = vadd.f32 %v1389, %v1691
        %v1778 = vadd.f32 %v1390, %v1696
        %v1779 = vadd.f32 %v1391, %v1701
        %v1780 = vadd.f32 %v1392, %v1706
        %v1781 = vadd.f32 %v1393, %v1711
        %v1782 = vadd.f32 %v1394, %v1716
        %v1783 = vadd.f32 %v1395, %v1721
        %v1784 = vadd.f32 %v1396, %v1726
        %v1785 = vadd.f32 %v1397, %v1731
        %v1786 = vadd.f32 %v1398, %v1736
        %v1787 = vadd.f32 %v1399, %v1741
        %v1788 = vadd.f32 %v1400, %v1746
        %v1789 = vadd.f32 %v1401, %v1751
        %v1790 = vadd.f32 %v1402, %v1756
        %v1791 = vld [vmem:[%s260 + $0x1] sm:$0xff]
        %v1792 = vld [vmem:[%s260 + $0x9] sm:$0xff]
        %v1793 = vld [vmem:[%s260 + $0x19] sm:$0xff]
        %v1794 = vld [vmem:[%s260 + $0x21] sm:$0xff]
        %v1795 = vld [vmem:[%s260 + $0x31] sm:$0xff]
        %v1796 = vld [vmem:[%s260 + $0x39] sm:$0xff]
        %v1797 = vld [vmem:[%s260 + $0x49] sm:$0xff]
        %v1798 = vld [vmem:[%s260 + $0x51] sm:$0xff]
        %v1799 = vld [vmem:[%s260 + $0x61] sm:$0xff]
        %v1800 = vld [vmem:[%s260 + $0x69] sm:$0xff]
        %v1801 = vld [vmem:[%s260 + $0x79] sm:$0xff]
        %v1802 = vld [vmem:[%s260 + $0x81] sm:$0xff]
        %v1803 = vld [vmem:[%s260 + $0x91] sm:$0xff]
        %v1804 = vld [vmem:[%s260 + $0x99] sm:$0xff]
        %v1805 = vld [vmem:[%s260 + $0xa9] sm:$0xff]
        %v1806 = vld [vmem:[%s260 + $0xb1] sm:$0xff]
        %v1807 = vld [vmem:[%s260 + $0xc1] sm:$0xff]
        %v1808 = vld [vmem:[%s260 + $0xc9] sm:$0xff]
        %v1809 = vld [vmem:[%s260 + $0xd9] sm:$0xff]
        %v1810 = vld [vmem:[%s260 + $0xe1] sm:$0xff]
        %v1811 = vld [vmem:[%s260 + $0xf1] sm:$0xff]
        %v1812 = vld [vmem:[%s260 + $0xf9] sm:$0xff]
        %v1813 = vld [vmem:[%s260 + $0x109] sm:$0xff]
        %v1814 = vld [vmem:[%s260 + $0x111] sm:$0xff]
        %v1815 = vld [vmem:[%s260 + $0x121] sm:$0xff]
        %v1816 = vld [vmem:[%s260 + $0x129] sm:$0xff]
        %v1817 = vld [vmem:[%s260 + $0x139] sm:$0xff]
        %v1818 = vld [vmem:[%s260 + $0x141] sm:$0xff]
        %v1819 = vld [vmem:[%s260 + $0x151] sm:$0xff]
        %v1820 = vld [vmem:[%s260 + $0x159] sm:$0xff]
        %v1821 = vld [vmem:[%s260 + $0x169] sm:$0xff]
        %v1822 = vld [vmem:[%s260 + $0x171] sm:$0xff]
        %v1824 = vsel %vm214, %v1791, 0
        %v1827 = vsel %vm214, %v1792, 0
        %v1830 = vsel %vm214, %v1793, 0
        %v1833 = vsel %vm214, %v1794, 0
        %v1836 = vsel %vm214, %v1795, 0
        %v1839 = vsel %vm214, %v1796, 0
        %v1842 = vsel %vm214, %v1797, 0
        %v1845 = vsel %vm214, %v1798, 0
        %v1848 = vsel %vm214, %v1799, 0
        %v1851 = vsel %vm214, %v1800, 0
        %v1854 = vsel %vm214, %v1801, 0
        %v1857 = vsel %vm214, %v1802, 0
        %v1860 = vsel %vm214, %v1803, 0
        %v1863 = vsel %vm214, %v1804, 0
        %v1866 = vsel %vm214, %v1805, 0
        %v1869 = vsel %vm214, %v1806, 0
        %v1872 = vsel %vm214, %v1807, 0
        %v1875 = vsel %vm214, %v1808, 0
        %v1878 = vsel %vm214, %v1809, 0
        %v1881 = vsel %vm214, %v1810, 0
        %v1884 = vsel %vm214, %v1811, 0
        %v1887 = vsel %vm214, %v1812, 0
        %v1890 = vsel %vm214, %v1813, 0
        %v1893 = vsel %vm214, %v1814, 0
        %v1896 = vsel %vm214, %v1815, 0
        %v1899 = vsel %vm214, %v1816, 0
        %v1902 = vsel %vm214, %v1817, 0
        %v1905 = vsel %vm214, %v1818, 0
        %v1908 = vsel %vm214, %v1819, 0
        %v1911 = vsel %vm214, %v1820, 0
        %v1914 = vsel %vm214, %v1821, 0
        %v1917 = vsel %vm214, %v1822, 0
        %v1920 = vsel %vm462, %v297, 0
        %1922 = vmatprep.subr.mxu0 0.0
        %1923 = vmatpush1.msra.mxu0 %v1920
        %1924 = vmatprep.subr.mxu0 0.0
        %1925 = vmatpush1.msra.mxu0 0.0
        %1926 = vmatprep.subr.mxu0 0.0
        %1927 = vmatpush1.msra.mxu0 0.0
        %1928 = vmatprep.subr.mxu0 0.0
        %1929 = vmatpush1.msra.mxu0 0.0
        %1930 = vmatprep.subr.mxu0 0.0
        %1931 = vmatpush1.msra.mxu0 0.0
        %1932 = vmatprep.subr.mxu0 0.0
        %1933 = vmatpush1.msra.mxu0 0.0
        %1934 = vmatprep.subr.mxu0 0.0
        %1935 = vmatpush1.msra.mxu0 0.0
        %1936 = vmatprep.subr.mxu0 0.0
        %1937 = vmatpush1.msra.mxu0 0.0
        %1938 = vmatprep.subr.mxu0 0.0
        %1939 = vmatpush1.msra.mxu0 0.0
        %1940 = vmatprep.subr.mxu0 0.0
        %1941 = vmatpush1.msra.mxu0 0.0
        %1942 = vmatprep.subr.mxu0 0.0
        %1943 = vmatpush1.msra.mxu0 0.0
        %1944 = vmatprep.subr.mxu0 0.0
        %1945 = vmatpush1.msra.mxu0 0.0
        %1946 = vmatprep.subr.mxu0 0.0
        %1947 = vmatpush1.msra.mxu0 0.0
        %1948 = vmatprep.subr.mxu0 0.0
        %1949 = vmatpush1.msra.mxu0 0.0
        %1950 = vmatprep.subr.mxu0 0.0
        %1951 = vmatpush1.msra.mxu0 0.0
        %1952 = vmatprep.subr.mxu0 0.0
        %1953 = vmatpush1.msra.mxu0 0.0
        %1954 = vmatprep.subr.mxu0 0.0
        %1955 = vmatpush1.msra.mxu0 0.0
        %1956 = vmatprep.subr.mxu0 0.0
        %1957 = vmatpush1.msra.mxu0 0.0
        %1958 = vmatprep.subr.mxu0 0.0
        %1959 = vmatpush1.msra.mxu0 0.0
        %1960 = vmatprep.subr.mxu0 0.0
        %1961 = vmatpush1.msra.mxu0 0.0
        %1962 = vmatprep.subr.mxu0 0.0
        %1963 = vmatpush1.msra.mxu0 0.0
        %1964 = vmatprep.subr.mxu0 0.0
        %1965 = vmatpush1.msra.mxu0 0.0
        %1966 = vmatprep.subr.mxu0 0.0
        %1967 = vmatpush1.msra.mxu0 0.0
        %1968 = vmatprep.subr.mxu0 0.0
        %1969 = vmatpush1.msra.mxu0 0.0
        %1970 = vmatprep.subr.mxu0 0.0
        %1971 = vmatpush1.msra.mxu0 0.0
        %1972 = vmatprep.subr.mxu0 0.0
        %1973 = vmatpush1.msra.mxu0 0.0
        %1974 = vmatprep.subr.mxu0 0.0
        %1975 = vmatpush1.msra.mxu0 0.0
        %1976 = vmatprep.subr.mxu0 0.0
        %1977 = vmatpush1.msra.mxu0 0.0
        %1978 = vmatprep.subr.mxu0 0.0
        %1979 = vmatpush1.msra.mxu0 0.0
        %1980 = vmatprep.subr.mxu0 0.0
        %1981 = vmatpush1.msra.mxu0 0.0
        %1982 = vmatprep.subr.mxu0 0.0
        %1983 = vmatpush1.msra.mxu0 0.0
        %1984 = vmatprep.subr.mxu0 0.0
        %1985 = vmatpush1.msra.mxu0 0.0
        %1986 = vmatprep.mubr.f32.mxu0 0.0
        %1987 = vmatmul.mubr.f32.gmra.mrb[0].mxu0 %v1824
        %v1988 = vpop.f32.mrb[0].mxu0
        %v1989 = vadd.f32 0.0, %v1988
        %v1990 = vpop.f32.mrb[0].mxu0
        %1991 = vmatprep.mubr.f32.mxu0 0.0
        %1992 = vmatmul.mubr.f32.gmra.mrb[0].mxu0 %v1827
        %v1993 = vpop.f32.mrb[0].mxu0
        %v1994 = vadd.f32 0.0, %v1993
        %v1995 = vpop.f32.mrb[0].mxu0
        %1996 = vmatprep.mubr.f32.mxu0 0.0
        %1997 = vmatmul.mubr.f32.gmra.mrb[0].mxu0 %v1830
        %v1998 = vpop.f32.mrb[0].mxu0
        %v1999 = vadd.f32 0.0, %v1998
        %v2000 = vpop.f32.mrb[0].mxu0
        %2001 = vmatprep.mubr.f32.mxu0 0.0
        %2002 = vmatmul.mubr.f32.gmra.mrb[0].mxu0 %v1833
        %v2003 = vpop.f32.mrb[0].mxu0
        %v2004 = vadd.f32 0.0, %v2003
        %v2005 = vpop.f32.mrb[0].mxu0
        %2006 = vmatprep.mubr.f32.mxu0 0.0
        %2007 = vmatmul.mubr.f32.gmra.mrb[0].mxu0 %v1836
        %v2008 = vpop.f32.mrb[0].mxu0
        %v2009 = vadd.f32 0.0, %v2008
        %v2010 = vpop.f32.mrb[0].mxu0
        %2011 = vmatprep.mubr.f32.mxu0 0.0
        %2012 = vmatmul.mubr.f32.gmra.mrb[0].mxu0 %v1839
        %v2013 = vpop.f32.mrb[0].mxu0
        %v2014 = vadd.f32 0.0, %v2013
        %v2015 = vpop.f32.mrb[0].mxu0
        %2016 = vmatprep.mubr.f32.mxu0 0.0
        %2017 = vmatmul.mubr.f32.gmra.mrb[0].mxu0 %v1842
        %v2018 = vpop.f32.mrb[0].mxu0
        %v2019 = vadd.f32 0.0, %v2018
        %v2020 = vpop.f32.mrb[0].mxu0
        %2021 = vmatprep.mubr.f32.mxu0 0.0
        %2022 = vmatmul.mubr.f32.gmra.mrb[0].mxu0 %v1845
        %v2023 = vpop.f32.mrb[0].mxu0
        %v2024 = vadd.f32 0.0, %v2023
        %v2025 = vpop.f32.mrb[0].mxu0
        %2026 = vmatprep.mubr.f32.mxu0 0.0
        %2027 = vmatmul.mubr.f32.gmra.mrb[0].mxu0 %v1848
        %v2028 = vpop.f32.mrb[0].mxu0
        %v2029 = vadd.f32 0.0, %v2028
        %v2030 = vpop.f32.mrb[0].mxu0
        %2031 = vmatprep.mubr.f32.mxu0 0.0
        %2032 = vmatmul.mubr.f32.gmra.mrb[0].mxu0 %v1851
        %v2033 = vpop.f32.mrb[0].mxu0
        %v2034 = vadd.f32 0.0, %v2033
        %v2035 = vpop.f32.mrb[0].mxu0
        %2036 = vmatprep.mubr.f32.mxu0 0.0
        %2037 = vmatmul.mubr.f32.gmra.mrb[0].mxu0 %v1854
        %v2038 = vpop.f32.mrb[0].mxu0
        %v2039 = vadd.f32 0.0, %v2038
        %v2040 = vpop.f32.mrb[0].mxu0
        %2041 = vmatprep.mubr.f32.mxu0 0.0
        %2042 = vmatmul.mubr.f32.gmra.mrb[0].mxu0 %v1857
        %v2043 = vpop.f32.mrb[0].mxu0
        %v2044 = vadd.f32 0.0, %v2043
        %v2045 = vpop.f32.mrb[0].mxu0
        %2046 = vmatprep.mubr.f32.mxu0 0.0
        %2047 = vmatmul.mubr.f32.gmra.mrb[0].mxu0 %v1860
        %v2048 = vpop.f32.mrb[0].mxu0
        %v2049 = vadd.f32 0.0, %v2048
        %v2050 = vpop.f32.mrb[0].mxu0
        %2051 = vmatprep.mubr.f32.mxu0 0.0
        %2052 = vmatmul.mubr.f32.gmra.mrb[0].mxu0 %v1863
        %v2053 = vpop.f32.mrb[0].mxu0
        %v2054 = vadd.f32 0.0, %v2053
        %v2055 = vpop.f32.mrb[0].mxu0
        %2056 = vmatprep.mubr.f32.mxu0 0.0
        %2057 = vmatmul.mubr.f32.gmra.mrb[0].mxu0 %v1866
        %v2058 = vpop.f32.mrb[0].mxu0
        %v2059 = vadd.f32 0.0, %v2058
        %v2060 = vpop.f32.mrb[0].mxu0
        %2061 = vmatprep.mubr.f32.mxu0 0.0
        %2062 = vmatmul.mubr.f32.gmra.mrb[0].mxu0 %v1869
        %v2063 = vpop.f32.mrb[0].mxu0
        %v2064 = vadd.f32 0.0, %v2063
        %v2065 = vpop.f32.mrb[0].mxu0
        %2066 = vmatprep.mubr.f32.mxu0 0.0
        %2067 = vmatmul.mubr.f32.gmra.mrb[0].mxu0 %v1872
        %v2068 = vpop.f32.mrb[0].mxu0
        %v2069 = vadd.f32 0.0, %v2068
        %v2070 = vpop.f32.mrb[0].mxu0
        %2071 = vmatprep.mubr.f32.mxu0 0.0
        %2072 = vmatmul.mubr.f32.gmra.mrb[0].mxu0 %v1875
        %v2073 = vpop.f32.mrb[0].mxu0
        %v2074 = vadd.f32 0.0, %v2073
        %v2075 = vpop.f32.mrb[0].mxu0
        %2076 = vmatprep.mubr.f32.mxu0 0.0
        %2077 = vmatmul.mubr.f32.gmra.mrb[0].mxu0 %v1878
        %v2078 = vpop.f32.mrb[0].mxu0
        %v2079 = vadd.f32 0.0, %v2078
        %v2080 = vpop.f32.mrb[0].mxu0
        %2081 = vmatprep.mubr.f32.mxu0 0.0
        %2082 = vmatmul.mubr.f32.gmra.mrb[0].mxu0 %v1881
        %v2083 = vpop.f32.mrb[0].mxu0
        %v2084 = vadd.f32 0.0, %v2083
        %v2085 = vpop.f32.mrb[0].mxu0
        %2086 = vmatprep.mubr.f32.mxu0 0.0
        %2087 = vmatmul.mubr.f32.gmra.mrb[0].mxu0 %v1884
        %v2088 = vpop.f32.mrb[0].mxu0
        %v2089 = vadd.f32 0.0, %v2088
        %v2090 = vpop.f32.mrb[0].mxu0
        %2091 = vmatprep.mubr.f32.mxu0 0.0
        %2092 = vmatmul.mubr.f32.gmra.mrb[0].mxu0 %v1887
        %v2093 = vpop.f32.mrb[0].mxu0
        %v2094 = vadd.f32 0.0, %v2093
        %v2095 = vpop.f32.mrb[0].mxu0
        %2096 = vmatprep.mubr.f32.mxu0 0.0
        %2097 = vmatmul.mubr.f32.gmra.mrb[0].mxu0 %v1890
        %v2098 = vpop.f32.mrb[0].mxu0
        %v2099 = vadd.f32 0.0, %v2098
        %v2100 = vpop.f32.mrb[0].mxu0
        %2101 = vmatprep.mubr.f32.mxu0 0.0
        %2102 = vmatmul.mubr.f32.gmra.mrb[0].mxu0 %v1893
        %v2103 = vpop.f32.mrb[0].mxu0
        %v2104 = vadd.f32 0.0, %v2103
        %v2105 = vpop.f32.mrb[0].mxu0
        %2106 = vmatprep.mubr.f32.mxu0 0.0
        %2107 = vmatmul.mubr.f32.gmra.mrb[0].mxu0 %v1896
        %v2108 = vpop.f32.mrb[0].mxu0
        %v2109 = vadd.f32 0.0, %v2108
        %v2110 = vpop.f32.mrb[0].mxu0
        %2111 = vmatprep.mubr.f32.mxu0 0.0
        %2112 = vmatmul.mubr.f32.gmra.mrb[0].mxu0 %v1899
        %v2113 = vpop.f32.mrb[0].mxu0
        %v2114 = vadd.f32 0.0, %v2113
        %v2115 = vpop.f32.mrb[0].mxu0
        %2116 = vmatprep.mubr.f32.mxu0 0.0
        %2117 = vmatmul.mubr.f32.gmra.mrb[0].mxu0 %v1902
        %v2118 = vpop.f32.mrb[0].mxu0
        %v2119 = vadd.f32 0.0, %v2118
        %v2120 = vpop.f32.mrb[0].mxu0
        %2121 = vmatprep.mubr.f32.mxu0 0.0
        %2122 = vmatmul.mubr.f32.gmra.mrb[0].mxu0 %v1905
        %v2123 = vpop.f32.mrb[0].mxu0
        %v2124 = vadd.f32 0.0, %v2123
        %v2125 = vpop.f32.mrb[0].mxu0
        %2126 = vmatprep.mubr.f32.mxu0 0.0
        %2127 = vmatmul.mubr.f32.gmra.mrb[0].mxu0 %v1908
        %v2128 = vpop.f32.mrb[0].mxu0
        %v2129 = vadd.f32 0.0, %v2128
        %v2130 = vpop.f32.mrb[0].mxu0
        %2131 = vmatprep.mubr.f32.mxu0 0.0
        %2132 = vmatmul.mubr.f32.gmra.mrb[0].mxu0 %v1911
        %v2133 = vpop.f32.mrb[0].mxu0
        %v2134 = vadd.f32 0.0, %v2133
        %v2135 = vpop.f32.mrb[0].mxu0
        %2136 = vmatprep.mubr.f32.mxu0 0.0
        %2137 = vmatmul.mubr.f32.gmra.mrb[0].mxu0 %v1914
        %v2138 = vpop.f32.mrb[0].mxu0
        %v2139 = vadd.f32 0.0, %v2138
        %v2140 = vpop.f32.mrb[0].mxu0
        %2141 = vmatprep.mubr.f32.mxu0 0.0
        %2142 = vmatmul.mubr.f32.gmra.mrb[0].mxu0 %v1917
        %v2143 = vpop.f32.mrb[0].mxu0
        %v2144 = vadd.f32 0.0, %v2143
        %v2145 = vpop.f32.mrb[0].mxu0
        %2146 = vdwg.mxu0
        %v2147 = vadd.f32 %v1759, %v1989
        %v2148 = vadd.f32 %v1760, %v1994
        %v2149 = vadd.f32 %v1761, %v1999
        %v2150 = vadd.f32 %v1762, %v2004
        %v2151 = vadd.f32 %v1763, %v2009
        %v2152 = vadd.f32 %v1764, %v2014
        %v2153 = vadd.f32 %v1765, %v2019
        %v2154 = vadd.f32 %v1766, %v2024
        %v2155 = vadd.f32 %v1767, %v2029
        %v2156 = vadd.f32 %v1768, %v2034
        %v2157 = vadd.f32 %v1769, %v2039
        %v2158 = vadd.f32 %v1770, %v2044
        %v2159 = vadd.f32 %v1771, %v2049
        %v2160 = vadd.f32 %v1772, %v2054
        %v2161 = vadd.f32 %v1773, %v2059
        %v2162 = vadd.f32 %v1774, %v2064
        %v2163 = vadd.f32 %v1775, %v2069
        %v2164 = vadd.f32 %v1776, %v2074
        %v2165 = vadd.f32 %v1777, %v2079
        %v2166 = vadd.f32 %v1778, %v2084
        %v2167 = vadd.f32 %v1779, %v2089
        %v2168 = vadd.f32 %v1780, %v2094
        %v2169 = vadd.f32 %v1781, %v2099
        %v2170 = vadd.f32 %v1782, %v2104
        %v2171 = vadd.f32 %v1783, %v2109
        %v2172 = vadd.f32 %v1784, %v2114
        %v2173 = vadd.f32 %v1785, %v2119
        %v2174 = vadd.f32 %v1786, %v2124
        %v2175 = vadd.f32 %v1787, %v2129
        %v2176 = vadd.f32 %v1788, %v2134
        %v2177 = vadd.f32 %v1789, %v2139
        %v2178 = vadd.f32 %v1790, %v2144
        %v2179 = vld [vmem:[%s260 + $0x2] sm:$0xff]
        %v2180 = vld [vmem:[%s260 + $0xa] sm:$0xff]
        %v2181 = vld [vmem:[%s260 + $0x1a] sm:$0xff]
        %v2182 = vld [vmem:[%s260 + $0x22] sm:$0xff]
        %v2183 = vld [vmem:[%s260 + $0x32] sm:$0xff]
        %v2184 = vld [vmem:[%s260 + $0x3a] sm:$0xff]
        %v2185 = vld [vmem:[%s260 + $0x4a] sm:$0xff]
        %v2186 = vld [vmem:[%s260 + $0x52] sm:$0xff]
        %v2187 = vld [vmem:[%s260 + $0x62] sm:$0xff]
        %v2188 = vld [vmem:[%s260 + $0x6a] sm:$0xff]
        %v2189 = vld [vmem:[%s260 + $0x7a] sm:$0xff]
        %v2190 = vld [vmem:[%s260 + $0x82] sm:$0xff]
        %v2191 = vld [vmem:[%s260 + $0x92] sm:$0xff]
        %v2192 = vld [vmem:[%s260 + $0x9a] sm:$0xff]
        %v2193 = vld [vmem:[%s260 + $0xaa] sm:$0xff]
        %v2194 = vld [vmem:[%s260 + $0xb2] sm:$0xff]
        %v2195 = vld [vmem:[%s260 + $0xc2] sm:$0xff]
        %v2196 = vld [vmem:[%s260 + $0xca] sm:$0xff]
        %v2197 = vld [vmem:[%s260 + $0xda] sm:$0xff]
        %v2198 = vld [vmem:[%s260 + $0xe2] sm:$0xff]
        %v2199 = vld [vmem:[%s260 + $0xf2] sm:$0xff]
        %v2200 = vld [vmem:[%s260 + $0xfa] sm:$0xff]
        %v2201 = vld [vmem:[%s260 + $0x10a] sm:$0xff]
        %v2202 = vld [vmem:[%s260 + $0x112] sm:$0xff]
        %v2203 = vld [vmem:[%s260 + $0x122] sm:$0xff]
        %v2204 = vld [vmem:[%s260 + $0x12a] sm:$0xff]
        %v2205 = vld [vmem:[%s260 + $0x13a] sm:$0xff]
        %v2206 = vld [vmem:[%s260 + $0x142] sm:$0xff]
        %v2207 = vld [vmem:[%s260 + $0x152] sm:$0xff]
        %v2208 = vld [vmem:[%s260 + $0x15a] sm:$0xff]
        %v2209 = vld [vmem:[%s260 + $0x16a] sm:$0xff]
        %v2210 = vld [vmem:[%s260 + $0x172] sm:$0xff]
        %v2212 = vsel %vm214, %v2179, 0
        %v2215 = vsel %vm214, %v2180, 0
        %v2218 = vsel %vm214, %v2181, 0
        %v2221 = vsel %vm214, %v2182, 0
        %v2224 = vsel %vm214, %v2183, 0
        %v2227 = vsel %vm214, %v2184, 0
        %v2230 = vsel %vm214, %v2185, 0
        %v2233 = vsel %vm214, %v2186, 0
        %v2236 = vsel %vm214, %v2187, 0
        %v2239 = vsel %vm214, %v2188, 0
        %v2242 = vsel %vm214, %v2189, 0
        %v2245 = vsel %vm214, %v2190, 0
        %v2248 = vsel %vm214, %v2191, 0
        %v2251 = vsel %vm214, %v2192, 0
        %v2254 = vsel %vm214, %v2193, 0
        %v2257 = vsel %vm214, %v2194, 0
        %v2260 = vsel %vm214, %v2195, 0
        %v2263 = vsel %vm214, %v2196, 0
        %v2266 = vsel %vm214, %v2197, 0
        %v2269 = vsel %vm214, %v2198, 0
        %v2272 = vsel %vm214, %v2199, 0
        %v2275 = vsel %vm214, %v2200, 0
        %v2278 = vsel %vm214, %v2201, 0
        %v2281 = vsel %vm214, %v2202, 0
        %v2284 = vsel %vm214, %v2203, 0
        %v2287 = vsel %vm214, %v2204, 0
        %v2290 = vsel %vm214, %v2205, 0
        %v2293 = vsel %vm214, %v2206, 0
        %v2296 = vsel %vm214, %v2207, 0
        %v2299 = vsel %vm214, %v2208, 0
        %v2302 = vsel %vm214, %v2209, 0
        %v2305 = vsel %vm214, %v2210, 0
        %v2308 = vsel %vm462, %v298, 0
        %2310 = vmatprep.subr.mxu0 0.0
        %2311 = vmatpush1.msra.mxu0 %v2308
        %2312 = vmatprep.subr.mxu0 0.0
        %2313 = vmatpush1.msra.mxu0 0.0
        %2314 = vmatprep.subr.mxu0 0.0
        %2315 = vmatpush1.msra.mxu0 0.0
        %2316 = vmatprep.subr.mxu0 0.0
        %2317 = vmatpush1.msra.mxu0 0.0
        %2318 = vmatprep.subr.mxu0 0.0
        %2319 = vmatpush1.msra.mxu0 0.0
        %2320 = vmatprep.subr.mxu0 0.0
        %2321 = vmatpush1.msra.mxu0 0.0
        %2322 = vmatprep.subr.mxu0 0.0
        %2323 = vmatpush1.msra.mxu0 0.0
        %2324 = vmatprep.subr.mxu0 0.0
        %2325 = vmatpush1.msra.mxu0 0.0
        %2326 = vmatprep.subr.mxu0 0.0
        %2327 = vmatpush1.msra.mxu0 0.0
        %2328 = vmatprep.subr.mxu0 0.0
        %2329 = vmatpush1.msra.mxu0 0.0
        %2330 = vmatprep.subr.mxu0 0.0
        %2331 = vmatpush1.msra.mxu0 0.0
        %2332 = vmatprep.subr.mxu0 0.0
        %2333 = vmatpush1.msra.mxu0 0.0
        %2334 = vmatprep.subr.mxu0 0.0
        %2335 = vmatpush1.msra.mxu0 0.0
        %2336 = vmatprep.subr.mxu0 0.0
        %2337 = vmatpush1.msra.mxu0 0.0
        %2338 = vmatprep.subr.mxu0 0.0
        %2339 = vmatpush1.msra.mxu0 0.0
        %2340 = vmatprep.subr.mxu0 0.0
        %2341 = vmatpush1.msra.mxu0 0.0
        %2342 = vmatprep.subr.mxu0 0.0
        %2343 = vmatpush1.msra.mxu0 0.0
        %2344 = vmatprep.subr.mxu0 0.0
        %2345 = vmatpush1.msra.mxu0 0.0
        %2346 = vmatprep.subr.mxu0 0.0
        %2347 = vmatpush1.msra.mxu0 0.0
        %2348 = vmatprep.subr.mxu0 0.0
        %2349 = vmatpush1.msra.mxu0 0.0
        %2350 = vmatprep.subr.mxu0 0.0
        %2351 = vmatpush1.msra.mxu0 0.0
        %2352 = vmatprep.subr.mxu0 0.0
        %2353 = vmatpush1.msra.mxu0 0.0
        %2354 = vmatprep.subr.mxu0 0.0
        %2355 = vmatpush1.msra.mxu0 0.0
        %2356 = vmatprep.subr.mxu0 0.0
        %2357 = vmatpush1.msra.mxu0 0.0
        %2358 = vmatprep.subr.mxu0 0.0
        %2359 = vmatpush1.msra.mxu0 0.0
        %2360 = vmatprep.subr.mxu0 0.0
        %2361 = vmatpush1.msra.mxu0 0.0
        %2362 = vmatprep.subr.mxu0 0.0
        %2363 = vmatpush1.msra.mxu0 0.0
        %2364 = vmatprep.subr.mxu0 0.0
        %2365 = vmatpush1.msra.mxu0 0.0
        %2366 = vmatprep.subr.mxu0 0.0
        %2367 = vmatpush1.msra.mxu0 0.0
        %2368 = vmatprep.subr.mxu0 0.0
        %2369 = vmatpush1.msra.mxu0 0.0
        %2370 = vmatprep.subr.mxu0 0.0
        %2371 = vmatpush1.msra.mxu0 0.0
        %2372 = vmatprep.subr.mxu0 0.0
        %2373 = vmatpush1.msra.mxu0 0.0
        %2374 = vmatprep.mubr.f32.mxu0 0.0
        %2375 = vmatmul.mubr.f32.gmra.mrb[0].mxu0 %v2212
        %v2376 = vpop.f32.mrb[0].mxu0
        %v2377 = vadd.f32 0.0, %v2376
        %v2378 = vpop.f32.mrb[0].mxu0
        %2379 = vmatprep.mubr.f32.mxu0 0.0
        %2380 = vmatmul.mubr.f32.gmra.mrb[0].mxu0 %v2215
        %v2381 = vpop.f32.mrb[0].mxu0
        %v2382 = vadd.f32 0.0, %v2381
        %v2383 = vpop.f32.mrb[0].mxu0
        %2384 = vmatprep.mubr.f32.mxu0 0.0
        %2385 = vmatmul.mubr.f32.gmra.mrb[0].mxu0 %v2218
        %v2386 = vpop.f32.mrb[0].mxu0
        %v2387 = vadd.f32 0.0, %v2386
        %v2388 = vpop.f32.mrb[0].mxu0
        %2389 = vmatprep.mubr.f32.mxu0 0.0
        %2390 = vmatmul.mubr.f32.gmra.mrb[0].mxu0 %v2221
        %v2391 = vpop.f32.mrb[0].mxu0
        %v2392 = vadd.f32 0.0, %v2391
        %v2393 = vpop.f32.mrb[0].mxu0
        %2394 = vmatprep.mubr.f32.mxu0 0.0
        %2395 = vmatmul.mubr.f32.gmra.mrb[0].mxu0 %v2224
        %v2396 = vpop.f32.mrb[0].mxu0
        %v2397 = vadd.f32 0.0, %v2396
        %v2398 = vpop.f32.mrb[0].mxu0
        %2399 = vmatprep.mubr.f32.mxu0 0.0
        %2400 = vmatmul.mubr.f32.gmra.mrb[0].mxu0 %v2227
        %v2401 = vpop.f32.mrb[0].mxu0
        %v2402 = vadd.f32 0.0, %v2401
        %v2403 = vpop.f32.mrb[0].mxu0
        %2404 = vmatprep.mubr.f32.mxu0 0.0
        %2405 = vmatmul.mubr.f32.gmra.mrb[0].mxu0 %v2230
        %v2406 = vpop.f32.mrb[0].mxu0
        %v2407 = vadd.f32 0.0, %v2406
        %v2408 = vpop.f32.mrb[0].mxu0
        %2409 = vmatprep.mubr.f32.mxu0 0.0
        %2410 = vmatmul.mubr.f32.gmra.mrb[0].mxu0 %v2233
        %v2411 = vpop.f32.mrb[0].mxu0
        %v2412 = vadd.f32 0.0, %v2411
        %v2413 = vpop.f32.mrb[0].mxu0
        %2414 = vmatprep.mubr.f32.mxu0 0.0
        %2415 = vmatmul.mubr.f32.gmra.mrb[0].mxu0 %v2236
        %v2416 = vpop.f32.mrb[0].mxu0
        %v2417 = vadd.f32 0.0, %v2416
        %v2418 = vpop.f32.mrb[0].mxu0
        %2419 = vmatprep.mubr.f32.mxu0 0.0
        %2420 = vmatmul.mubr.f32.gmra.mrb[0].mxu0 %v2239
        %v2421 = vpop.f32.mrb[0].mxu0
        %v2422 = vadd.f32 0.0, %v2421
        %v2423 = vpop.f32.mrb[0].mxu0
        %2424 = vmatprep.mubr.f32.mxu0 0.0
        %2425 = vmatmul.mubr.f32.gmra.mrb[0].mxu0 %v2242
        %v2426 = vpop.f32.mrb[0].mxu0
        %v2427 = vadd.f32 0.0, %v2426
        %v2428 = vpop.f32.mrb[0].mxu0
        %2429 = vmatprep.mubr.f32.mxu0 0.0
        %2430 = vmatmul.mubr.f32.gmra.mrb[0].mxu0 %v2245
        %v2431 = vpop.f32.mrb[0].mxu0
        %v2432 = vadd.f32 0.0, %v2431
        %v2433 = vpop.f32.mrb[0].mxu0
        %2434 = vmatprep.mubr.f32.mxu0 0.0
        %2435 = vmatmul.mubr.f32.gmra.mrb[0].mxu0 %v2248
        %v2436 = vpop.f32.mrb[0].mxu0
        %v2437 = vadd.f32 0.0, %v2436
        %v2438 = vpop.f32.mrb[0].mxu0
        %2439 = vmatprep.mubr.f32.mxu0 0.0
        %2440 = vmatmul.mubr.f32.gmra.mrb[0].mxu0 %v2251
        %v2441 = vpop.f32.mrb[0].mxu0
        %v2442 = vadd.f32 0.0, %v2441
        %v2443 = vpop.f32.mrb[0].mxu0
        %2444 = vmatprep.mubr.f32.mxu0 0.0
        %2445 = vmatmul.mubr.f32.gmra.mrb[0].mxu0 %v2254
        %v2446 = vpop.f32.mrb[0].mxu0
        %v2447 = vadd.f32 0.0, %v2446
        %v2448 = vpop.f32.mrb[0].mxu0
        %2449 = vmatprep.mubr.f32.mxu0 0.0
        %2450 = vmatmul.mubr.f32.gmra.mrb[0].mxu0 %v2257
        %v2451 = vpop.f32.mrb[0].mxu0
        %v2452 = vadd.f32 0.0, %v2451
        %v2453 = vpop.f32.mrb[0].mxu0
        %2454 = vmatprep.mubr.f32.mxu0 0.0
        %2455 = vmatmul.mubr.f32.gmra.mrb[0].mxu0 %v2260
        %v2456 = vpop.f32.mrb[0].mxu0
        %v2457 = vadd.f32 0.0, %v2456
        %v2458 = vpop.f32.mrb[0].mxu0
        %2459 = vmatprep.mubr.f32.mxu0 0.0
        %2460 = vmatmul.mubr.f32.gmra.mrb[0].mxu0 %v2263
        %v2461 = vpop.f32.mrb[0].mxu0
        %v2462 = vadd.f32 0.0, %v2461
        %v2463 = vpop.f32.mrb[0].mxu0
        %2464 = vmatprep.mubr.f32.mxu0 0.0
        %2465 = vmatmul.mubr.f32.gmra.mrb[0].mxu0 %v2266
        %v2466 = vpop.f32.mrb[0].mxu0
        %v2467 = vadd.f32 0.0, %v2466
        %v2468 = vpop.f32.mrb[0].mxu0
        %2469 = vmatprep.mubr.f32.mxu0 0.0
        %2470 = vmatmul.mubr.f32.gmra.mrb[0].mxu0 %v2269
        %v2471 = vpop.f32.mrb[0].mxu0
        %v2472 = vadd.f32 0.0, %v2471
        %v2473 = vpop.f32.mrb[0].mxu0
        %2474 = vmatprep.mubr.f32.mxu0 0.0
        %2475 = vmatmul.mubr.f32.gmra.mrb[0].mxu0 %v2272
        %v2476 = vpop.f32.mrb[0].mxu0
        %v2477 = vadd.f32 0.0, %v2476
        %v2478 = vpop.f32.mrb[0].mxu0
        %2479 = vmatprep.mubr.f32.mxu0 0.0
        %2480 = vmatmul.mubr.f32.gmra.mrb[0].mxu0 %v2275
        %v2481 = vpop.f32.mrb[0].mxu0
        %v2482 = vadd.f32 0.0, %v2481
        %v2483 = vpop.f32.mrb[0].mxu0
        %2484 = vmatprep.mubr.f32.mxu0 0.0
        %2485 = vmatmul.mubr.f32.gmra.mrb[0].mxu0 %v2278
        %v2486 = vpop.f32.mrb[0].mxu0
        %v2487 = vadd.f32 0.0, %v2486
        %v2488 = vpop.f32.mrb[0].mxu0
        %2489 = vmatprep.mubr.f32.mxu0 0.0
        %2490 = vmatmul.mubr.f32.gmra.mrb[0].mxu0 %v2281
        %v2491 = vpop.f32.mrb[0].mxu0
        %v2492 = vadd.f32 0.0, %v2491
        %v2493 = vpop.f32.mrb[0].mxu0
        %2494 = vmatprep.mubr.f32.mxu0 0.0
        %2495 = vmatmul.mubr.f32.gmra.mrb[0].mxu0 %v2284
        %v2496 = vpop.f32.mrb[0].mxu0
        %v2497 = vadd.f32 0.0, %v2496
        %v2498 = vpop.f32.mrb[0].mxu0
        %2499 = vmatprep.mubr.f32.mxu0 0.0
        %2500 = vmatmul.mubr.f32.gmra.mrb[0].mxu0 %v2287
        %v2501 = vpop.f32.mrb[0].mxu0
        %v2502 = vadd.f32 0.0, %v2501
        %v2503 = vpop.f32.mrb[0].mxu0
        %2504 = vmatprep.mubr.f32.mxu0 0.0
        %2505 = vmatmul.mubr.f32.gmra.mrb[0].mxu0 %v2290
        %v2506 = vpop.f32.mrb[0].mxu0
        %v2507 = vadd.f32 0.0, %v2506
        %v2508 = vpop.f32.mrb[0].mxu0
        %2509 = vmatprep.mubr.f32.mxu0 0.0
        %2510 = vmatmul.mubr.f32.gmra.mrb[0].mxu0 %v2293
        %v2511 = vpop.f32.mrb[0].mxu0
        %v2512 = vadd.f32 0.0, %v2511
        %v2513 = vpop.f32.mrb[0].mxu0
        %2514 = vmatprep.mubr.f32.mxu0 0.0
        %2515 = vmatmul.mubr.f32.gmra.mrb[0].mxu0 %v2296
        %v2516 = vpop.f32.mrb[0].mxu0
        %v2517 = vadd.f32 0.0, %v2516
        %v2518 = vpop.f32.mrb[0].mxu0
        %2519 = vmatprep.mubr.f32.mxu0 0.0
        %2520 = vmatmul.mubr.f32.gmra.mrb[0].mxu0 %v2299
        %v2521 = vpop.f32.mrb[0].mxu0
        %v2522 = vadd.f32 0.0, %v2521
        %v2523 = vpop.f32.mrb[0].mxu0
        %2524 = vmatprep.mubr.f32.mxu0 0.0
        %2525 = vmatmul.mubr.f32.gmra.mrb[0].mxu0 %v2302
        %v2526 = vpop.f32.mrb[0].mxu0
        %v2527 = vadd.f32 0.0, %v2526
        %v2528 = vpop.f32.mrb[0].mxu0
        %2529 = vmatprep.mubr.f32.mxu0 0.0
        %2530 = vmatmul.mubr.f32.gmra.mrb[0].mxu0 %v2305
        %v2531 = vpop.f32.mrb[0].mxu0
        %v2532 = vadd.f32 0.0, %v2531
        %v2533 = vpop.f32.mrb[0].mxu0
        %2534 = vdwg.mxu0
        %v2535 = vadd.f32 %v2147, %v2377
        %v2536 = vadd.f32 %v2148, %v2382
        %v2537 = vadd.f32 %v2149, %v2387
        %v2538 = vadd.f32 %v2150, %v2392
        %v2539 = vadd.f32 %v2151, %v2397
        %v2540 = vadd.f32 %v2152, %v2402
        %v2541 = vadd.f32 %v2153, %v2407
        %v2542 = vadd.f32 %v2154, %v2412
        %v2543 = vadd.f32 %v2155, %v2417
        %v2544 = vadd.f32 %v2156, %v2422
        %v2545 = vadd.f32 %v2157, %v2427
        %v2546 = vadd.f32 %v2158, %v2432
        %v2547 = vadd.f32 %v2159, %v2437
        %v2548 = vadd.f32 %v2160, %v2442
        %v2549 = vadd.f32 %v2161, %v2447
        %v2550 = vadd.f32 %v2162, %v2452
        %v2551 = vadd.f32 %v2163, %v2457
        %v2552 = vadd.f32 %v2164, %v2462
        %v2553 = vadd.f32 %v2165, %v2467
        %v2554 = vadd.f32 %v2166, %v2472
        %v2555 = vadd.f32 %v2167, %v2477
        %v2556 = vadd.f32 %v2168, %v2482
        %v2557 = vadd.f32 %v2169, %v2487
        %v2558 = vadd.f32 %v2170, %v2492
        %v2559 = vadd.f32 %v2171, %v2497
        %v2560 = vadd.f32 %v2172, %v2502
        %v2561 = vadd.f32 %v2173, %v2507
        %v2562 = vadd.f32 %v2174, %v2512
        %v2563 = vadd.f32 %v2175, %v2517
        %v2564 = vadd.f32 %v2176, %v2522
        %v2565 = vadd.f32 %v2177, %v2527
        %v2566 = vadd.f32 %v2178, %v2532
        %s2567 = scalar_lea.vmem [#allocation2], 48
        %v2568 = vld [vmem:[%s2567] sm:$0xff]
        %v2569 = vld [vmem:[%s2567 + $0x8] sm:$0xff]
        %v2570 = vld [vmem:[%s2567 + $0x18] sm:$0xff]
        %v2571 = vld [vmem:[%s2567 + $0x20] sm:$0xff]
        %v2572 = vld [vmem:[%s2567 + $0x30] sm:$0xff]
        %v2573 = vld [vmem:[%s2567 + $0x38] sm:$0xff]
        %v2574 = vld [vmem:[%s2567 + $0x48] sm:$0xff]
        %v2575 = vld [vmem:[%s2567 + $0x50] sm:$0xff]
        %v2576 = vld [vmem:[%s2567 + $0x60] sm:$0xff]
        %v2577 = vld [vmem:[%s2567 + $0x68] sm:$0xff]
        %v2578 = vld [vmem:[%s2567 + $0x78] sm:$0xff]
        %v2579 = vld [vmem:[%s2567 + $0x80] sm:$0xff]
        %v2580 = vld [vmem:[%s2567 + $0x90] sm:$0xff]
        %v2581 = vld [vmem:[%s2567 + $0x98] sm:$0xff]
        %v2582 = vld [vmem:[%s2567 + $0xa8] sm:$0xff]
        %v2583 = vld [vmem:[%s2567 + $0xb0] sm:$0xff]
        %v2584 = vld [vmem:[%s2567 + $0xc0] sm:$0xff]
        %v2585 = vld [vmem:[%s2567 + $0xc8] sm:$0xff]
        %v2586 = vld [vmem:[%s2567 + $0xd8] sm:$0xff]
        %v2587 = vld [vmem:[%s2567 + $0xe0] sm:$0xff]
        %v2588 = vld [vmem:[%s2567 + $0xf0] sm:$0xff]
        %v2589 = vld [vmem:[%s2567 + $0xf8] sm:$0xff]
        %v2590 = vld [vmem:[%s2567 + $0x108] sm:$0xff]
        %v2591 = vld [vmem:[%s2567 + $0x110] sm:$0xff]
        %v2592 = vld [vmem:[%s2567 + $0x120] sm:$0xff]
        %v2593 = vld [vmem:[%s2567 + $0x128] sm:$0xff]
        %v2594 = vld [vmem:[%s2567 + $0x138] sm:$0xff]
        %v2595 = vld [vmem:[%s2567 + $0x140] sm:$0xff]
        %v2596 = vld [vmem:[%s2567 + $0x150] sm:$0xff]
        %v2597 = vld [vmem:[%s2567 + $0x158] sm:$0xff]
        %v2598 = vld [vmem:[%s2567 + $0x168] sm:$0xff]
        %v2599 = vld [vmem:[%s2567 + $0x170] sm:$0xff]
        %v2601 = vsel %vm214, %v2568, 0
        %v2604 = vsel %vm214, %v2569, 0
        %v2607 = vsel %vm214, %v2570, 0
        %v2610 = vsel %vm214, %v2571, 0
        %v2613 = vsel %vm214, %v2572, 0
        %v2616 = vsel %vm214, %v2573, 0
        %v2619 = vsel %vm214, %v2574, 0
        %v2622 = vsel %vm214, %v2575, 0
        %v2625 = vsel %vm214, %v2576, 0
        %v2628 = vsel %vm214, %v2577, 0
        %v2631 = vsel %vm214, %v2578, 0
        %v2634 = vsel %vm214, %v2579, 0
        %v2637 = vsel %vm214, %v2580, 0
        %v2640 = vsel %vm214, %v2581, 0
        %v2643 = vsel %vm214, %v2582, 0
        %v2646 = vsel %vm214, %v2583, 0
        %v2649 = vsel %vm214, %v2584, 0
        %v2652 = vsel %vm214, %v2585, 0
        %v2655 = vsel %vm214, %v2586, 0
        %v2658 = vsel %vm214, %v2587, 0
        %v2661 = vsel %vm214, %v2588, 0
        %v2664 = vsel %vm214, %v2589, 0
        %v2667 = vsel %vm214, %v2590, 0
        %v2670 = vsel %vm214, %v2591, 0
        %v2673 = vsel %vm214, %v2592, 0
        %v2676 = vsel %vm214, %v2593, 0
        %v2679 = vsel %vm214, %v2594, 0
        %v2682 = vsel %vm214, %v2595, 0
        %v2685 = vsel %vm214, %v2596, 0
        %v2688 = vsel %vm214, %v2597, 0
        %v2691 = vsel %vm214, %v2598, 0
        %v2694 = vsel %vm214, %v2599, 0
        %v2697 = vsel %vm462, %v299, 0
        %2699 = vmatprep.subr.mxu0 0.0
        %2700 = vmatpush1.msra.mxu0 %v2697
        %2701 = vmatprep.subr.mxu0 0.0
        %2702 = vmatpush1.msra.mxu0 0.0
        %2703 = vmatprep.subr.mxu0 0.0
        %2704 = vmatpush1.msra.mxu0 0.0
        %2705 = vmatprep.subr.mxu0 0.0
        %2706 = vmatpush1.msra.mxu0 0.0
        %2707 = vmatprep.subr.mxu0 0.0
        %2708 = vmatpush1.msra.mxu0 0.0
        %2709 = vmatprep.subr.mxu0 0.0
        %2710 = vmatpush1.msra.mxu0 0.0
        %2711 = vmatprep.subr.mxu0 0.0
        %2712 = vmatpush1.msra.mxu0 0.0
        %2713 = vmatprep.subr.mxu0 0.0
        %2714 = vmatpush1.msra.mxu0 0.0
        %2715 = vmatprep.subr.mxu0 0.0
        %2716 = vmatpush1.msra.mxu0 0.0
        %2717 = vmatprep.subr.mxu0 0.0
        %2718 = vmatpush1.msra.mxu0 0.0
        %2719 = vmatprep.subr.mxu0 0.0
        %2720 = vmatpush1.msra.mxu0 0.0
        %2721 = vmatprep.subr.mxu0 0.0
        %2722 = vmatpush1.msra.mxu0 0.0
        %2723 = vmatprep.subr.mxu0 0.0
        %2724 = vmatpush1.msra.mxu0 0.0
        %2725 = vmatprep.subr.mxu0 0.0
        %2726 = vmatpush1.msra.mxu0 0.0
        %2727 = vmatprep.subr.mxu0 0.0
        %2728 = vmatpush1.msra.mxu0 0.0
        %2729 = vmatprep.subr.mxu0 0.0
        %2730 = vmatpush1.msra.mxu0 0.0
        %2731 = vmatprep.subr.mxu0 0.0
        %2732 = vmatpush1.msra.mxu0 0.0
        %2733 = vmatprep.subr.mxu0 0.0
        %2734 = vmatpush1.msra.mxu0 0.0
        %2735 = vmatprep.subr.mxu0 0.0
        %2736 = vmatpush1.msra.mxu0 0.0
        %2737 = vmatprep.subr.mxu0 0.0
        %2738 = vmatpush1.msra.mxu0 0.0
        %2739 = vmatprep.subr.mxu0 0.0
        %2740 = vmatpush1.msra.mxu0 0.0
        %2741 = vmatprep.subr.mxu0 0.0
        %2742 = vmatpush1.msra.mxu0 0.0
        %2743 = vmatprep.subr.mxu0 0.0
        %2744 = vmatpush1.msra.mxu0 0.0
        %2745 = vmatprep.subr.mxu0 0.0
        %2746 = vmatpush1.msra.mxu0 0.0
        %2747 = vmatprep.subr.mxu0 0.0
        %2748 = vmatpush1.msra.mxu0 0.0
        %2749 = vmatprep.subr.mxu0 0.0
        %2750 = vmatpush1.msra.mxu0 0.0
        %2751 = vmatprep.subr.mxu0 0.0
        %2752 = vmatpush1.msra.mxu0 0.0
        %2753 = vmatprep.subr.mxu0 0.0
        %2754 = vmatpush1.msra.mxu0 0.0
        %2755 = vmatprep.subr.mxu0 0.0
        %2756 = vmatpush1.msra.mxu0 0.0
        %2757 = vmatprep.subr.mxu0 0.0
        %2758 = vmatpush1.msra.mxu0 0.0
        %2759 = vmatprep.subr.mxu0 0.0
        %2760 = vmatpush1.msra.mxu0 0.0
        %2761 = vmatprep.subr.mxu0 0.0
        %2762 = vmatpush1.msra.mxu0 0.0
        %2763 = vmatprep.mubr.f32.mxu0 0.0
        %2764 = vmatmul.mubr.f32.gmra.mrb[0].mxu0 %v2601
        %v2765 = vpop.f32.mrb[0].mxu0
        %v2766 = vadd.f32 0.0, %v2765
        %v2767 = vpop.f32.mrb[0].mxu0
        %2768 = vmatprep.mubr.f32.mxu0 0.0
        %2769 = vmatmul.mubr.f32.gmra.mrb[0].mxu0 %v2604
        %v2770 = vpop.f32.mrb[0].mxu0
        %v2771 = vadd.f32 0.0, %v2770
        %v2772 = vpop.f32.mrb[0].mxu0
        %2773 = vmatprep.mubr.f32.mxu0 0.0
        %2774 = vmatmul.mubr.f32.gmra.mrb[0].mxu0 %v2607
        %v2775 = vpop.f32.mrb[0].mxu0
        %v2776 = vadd.f32 0.0, %v2775
        %v2777 = vpop.f32.mrb[0].mxu0
        %2778 = vmatprep.mubr.f32.mxu0 0.0
        %2779 = vmatmul.mubr.f32.gmra.mrb[0].mxu0 %v2610
        %v2780 = vpop.f32.mrb[0].mxu0
        %v2781 = vadd.f32 0.0, %v2780
        %v2782 = vpop.f32.mrb[0].mxu0
        %2783 = vmatprep.mubr.f32.mxu0 0.0
        %2784 = vmatmul.mubr.f32.gmra.mrb[0].mxu0 %v2613
        %v2785 = vpop.f32.mrb[0].mxu0
        %v2786 = vadd.f32 0.0, %v2785
        %v2787 = vpop.f32.mrb[0].mxu0
        %2788 = vmatprep.mubr.f32.mxu0 0.0
        %2789 = vmatmul.mubr.f32.gmra.mrb[0].mxu0 %v2616
        %v2790 = vpop.f32.mrb[0].mxu0
        %v2791 = vadd.f32 0.0, %v2790
        %v2792 = vpop.f32.mrb[0].mxu0
        %2793 = vmatprep.mubr.f32.mxu0 0.0
        %2794 = vmatmul.mubr.f32.gmra.mrb[0].mxu0 %v2619
        %v2795 = vpop.f32.mrb[0].mxu0
        %v2796 = vadd.f32 0.0, %v2795
        %v2797 = vpop.f32.mrb[0].mxu0
        %2798 = vmatprep.mubr.f32.mxu0 0.0
        %2799 = vmatmul.mubr.f32.gmra.mrb[0].mxu0 %v2622
        %v2800 = vpop.f32.mrb[0].mxu0
        %v2801 = vadd.f32 0.0, %v2800
        %v2802 = vpop.f32.mrb[0].mxu0
        %2803 = vmatprep.mubr.f32.mxu0 0.0
        %2804 = vmatmul.mubr.f32.gmra.mrb[0].mxu0 %v2625
        %v2805 = vpop.f32.mrb[0].mxu0
        %v2806 = vadd.f32 0.0, %v2805
        %v2807 = vpop.f32.mrb[0].mxu0
        %2808 = vmatprep.mubr.f32.mxu0 0.0
        %2809 = vmatmul.mubr.f32.gmra.mrb[0].mxu0 %v2628
        %v2810 = vpop.f32.mrb[0].mxu0
        %v2811 = vadd.f32 0.0, %v2810
        %v2812 = vpop.f32.mrb[0].mxu0
        %2813 = vmatprep.mubr.f32.mxu0 0.0
        %2814 = vmatmul.mubr.f32.gmra.mrb[0].mxu0 %v2631
        %v2815 = vpop.f32.mrb[0].mxu0
        %v2816 = vadd.f32 0.0, %v2815
        %v2817 = vpop.f32.mrb[0].mxu0
        %2818 = vmatprep.mubr.f32.mxu0 0.0
        %2819 = vmatmul.mubr.f32.gmra.mrb[0].mxu0 %v2634
        %v2820 = vpop.f32.mrb[0].mxu0
        %v2821 = vadd.f32 0.0, %v2820
        %v2822 = vpop.f32.mrb[0].mxu0
        %2823 = vmatprep.mubr.f32.mxu0 0.0
        %2824 = vmatmul.mubr.f32.gmra.mrb[0].mxu0 %v2637
        %v2825 = vpop.f32.mrb[0].mxu0
        %v2826 = vadd.f32 0.0, %v2825
        %v2827 = vpop.f32.mrb[0].mxu0
        %2828 = vmatprep.mubr.f32.mxu0 0.0
        %2829 = vmatmul.mubr.f32.gmra.mrb[0].mxu0 %v2640
        %v2830 = vpop.f32.mrb[0].mxu0
        %v2831 = vadd.f32 0.0, %v2830
        %v2832 = vpop.f32.mrb[0].mxu0
        %2833 = vmatprep.mubr.f32.mxu0 0.0
        %2834 = vmatmul.mubr.f32.gmra.mrb[0].mxu0 %v2643
        %v2835 = vpop.f32.mrb[0].mxu0
        %v2836 = vadd.f32 0.0, %v2835
        %v2837 = vpop.f32.mrb[0].mxu0
        %2838 = vmatprep.mubr.f32.mxu0 0.0
        %2839 = vmatmul.mubr.f32.gmra.mrb[0].mxu0 %v2646
        %v2840 = vpop.f32.mrb[0].mxu0
        %v2841 = vadd.f32 0.0, %v2840
        %v2842 = vpop.f32.mrb[0].mxu0
        %2843 = vmatprep.mubr.f32.mxu0 0.0
        %2844 = vmatmul.mubr.f32.gmra.mrb[0].mxu0 %v2649
        %v2845 = vpop.f32.mrb[0].mxu0
        %v2846 = vadd.f32 0.0, %v2845
        %v2847 = vpop.f32.mrb[0].mxu0
        %2848 = vmatprep.mubr.f32.mxu0 0.0
        %2849 = vmatmul.mubr.f32.gmra.mrb[0].mxu0 %v2652
        %v2850 = vpop.f32.mrb[0].mxu0
        %v2851 = vadd.f32 0.0, %v2850
        %v2852 = vpop.f32.mrb[0].mxu0
        %2853 = vmatprep.mubr.f32.mxu0 0.0
        %2854 = vmatmul.mubr.f32.gmra.mrb[0].mxu0 %v2655
        %v2855 = vpop.f32.mrb[0].mxu0
        %v2856 = vadd.f32 0.0, %v2855
        %v2857 = vpop.f32.mrb[0].mxu0
        %2858 = vmatprep.mubr.f32.mxu0 0.0
        %2859 = vmatmul.mubr.f32.gmra.mrb[0].mxu0 %v2658
        %v2860 = vpop.f32.mrb[0].mxu0
        %v2861 = vadd.f32 0.0, %v2860
        %v2862 = vpop.f32.mrb[0].mxu0
        %2863 = vmatprep.mubr.f32.mxu0 0.0
        %2864 = vmatmul.mubr.f32.gmra.mrb[0].mxu0 %v2661
        %v2865 = vpop.f32.mrb[0].mxu0
        %v2866 = vadd.f32 0.0, %v2865
        %v2867 = vpop.f32.mrb[0].mxu0
        %2868 = vmatprep.mubr.f32.mxu0 0.0
        %2869 = vmatmul.mubr.f32.gmra.mrb[0].mxu0 %v2664
        %v2870 = vpop.f32.mrb[0].mxu0
        %v2871 = vadd.f32 0.0, %v2870
        %v2872 = vpop.f32.mrb[0].mxu0
        %2873 = vmatprep.mubr.f32.mxu0 0.0
        %2874 = vmatmul.mubr.f32.gmra.mrb[0].mxu0 %v2667
        %v2875 = vpop.f32.mrb[0].mxu0
        %v2876 = vadd.f32 0.0, %v2875
        %v2877 = vpop.f32.mrb[0].mxu0
        %2878 = vmatprep.mubr.f32.mxu0 0.0
        %2879 = vmatmul.mubr.f32.gmra.mrb[0].mxu0 %v2670
        %v2880 = vpop.f32.mrb[0].mxu0
        %v2881 = vadd.f32 0.0, %v2880
        %v2882 = vpop.f32.mrb[0].mxu0
        %2883 = vmatprep.mubr.f32.mxu0 0.0
        %2884 = vmatmul.mubr.f32.gmra.mrb[0].mxu0 %v2673
        %v2885 = vpop.f32.mrb[0].mxu0
        %v2886 = vadd.f32 0.0, %v2885
        %v2887 = vpop.f32.mrb[0].mxu0
        %2888 = vmatprep.mubr.f32.mxu0 0.0
        %2889 = vmatmul.mubr.f32.gmra.mrb[0].mxu0 %v2676
        %v2890 = vpop.f32.mrb[0].mxu0
        %v2891 = vadd.f32 0.0, %v2890
        %v2892 = vpop.f32.mrb[0].mxu0
        %2893 = vmatprep.mubr.f32.mxu0 0.0
        %2894 = vmatmul.mubr.f32.gmra.mrb[0].mxu0 %v2679
        %v2895 = vpop.f32.mrb[0].mxu0
        %v2896 = vadd.f32 0.0, %v2895
        %v2897 = vpop.f32.mrb[0].mxu0
        %2898 = vmatprep.mubr.f32.mxu0 0.0
        %2899 = vmatmul.mubr.f32.gmra.mrb[0].mxu0 %v2682
        %v2900 = vpop.f32.mrb[0].mxu0
        %v2901 = vadd.f32 0.0, %v2900
        %v2902 = vpop.f32.mrb[0].mxu0
        %2903 = vmatprep.mubr.f32.mxu0 0.0
        %2904 = vmatmul.mubr.f32.gmra.mrb[0].mxu0 %v2685
        %v2905 = vpop.f32.mrb[0].mxu0
        %v2906 = vadd.f32 0.0, %v2905
        %v2907 = vpop.f32.mrb[0].mxu0
        %2908 = vmatprep.mubr.f32.mxu0 0.0
        %2909 = vmatmul.mubr.f32.gmra.mrb[0].mxu0 %v2688
        %v2910 = vpop.f32.mrb[0].mxu0
        %v2911 = vadd.f32 0.0, %v2910
        %v2912 = vpop.f32.mrb[0].mxu0
        %2913 = vmatprep.mubr.f32.mxu0 0.0
        %2914 = vmatmul.mubr.f32.gmra.mrb[0].mxu0 %v2691
        %v2915 = vpop.f32.mrb[0].mxu0
        %v2916 = vadd.f32 0.0, %v2915
        %v2917 = vpop.f32.mrb[0].mxu0
        %2918 = vmatprep.mubr.f32.mxu0 0.0
        %2919 = vmatmul.mubr.f32.gmra.mrb[0].mxu0 %v2694
        %v2920 = vpop.f32.mrb[0].mxu0
        %v2921 = vadd.f32 0.0, %v2920
        %v2922 = vpop.f32.mrb[0].mxu0
        %2923 = vdwg.mxu0
        %v2924 = vadd.f32 %v2535, %v2766
        %v2925 = vadd.f32 %v2536, %v2771
        %v2926 = vadd.f32 %v2537, %v2776
        %v2927 = vadd.f32 %v2538, %v2781
        %v2928 = vadd.f32 %v2539, %v2786
        %v2929 = vadd.f32 %v2540, %v2791
        %v2930 = vadd.f32 %v2541, %v2796
        %v2931 = vadd.f32 %v2542, %v2801
        %v2932 = vadd.f32 %v2543, %v2806
        %v2933 = vadd.f32 %v2544, %v2811
        %v2934 = vadd.f32 %v2545, %v2816
        %v2935 = vadd.f32 %v2546, %v2821
        %v2936 = vadd.f32 %v2547, %v2826
        %v2937 = vadd.f32 %v2548, %v2831
        %v2938 = vadd.f32 %v2549, %v2836
        %v2939 = vadd.f32 %v2550, %v2841
        %v2940 = vadd.f32 %v2551, %v2846
        %v2941 = vadd.f32 %v2552, %v2851
        %v2942 = vadd.f32 %v2553, %v2856
        %v2943 = vadd.f32 %v2554, %v2861
        %v2944 = vadd.f32 %v2555, %v2866
        %v2945 = vadd.f32 %v2556, %v2871
        %v2946 = vadd.f32 %v2557, %v2876
        %v2947 = vadd.f32 %v2558, %v2881
        %v2948 = vadd.f32 %v2559, %v2886
        %v2949 = vadd.f32 %v2560, %v2891
        %v2950 = vadd.f32 %v2561, %v2896
        %v2951 = vadd.f32 %v2562, %v2901
        %v2952 = vadd.f32 %v2563, %v2906
        %v2953 = vadd.f32 %v2564, %v2911
        %v2954 = vadd.f32 %v2565, %v2916
        %v2955 = vadd.f32 %v2566, %v2921
        %v2956 = vld [vmem:[%s2567 + $0x1] sm:$0xff]
        %v2957 = vld [vmem:[%s2567 + $0x9] sm:$0xff]
        %v2958 = vld [vmem:[%s2567 + $0x19] sm:$0xff]
        %v2959 = vld [vmem:[%s2567 + $0x21] sm:$0xff]
        %v2960 = vld [vmem:[%s2567 + $0x31] sm:$0xff]
        %v2961 = vld [vmem:[%s2567 + $0x39] sm:$0xff]
        %v2962 = vld [vmem:[%s2567 + $0x49] sm:$0xff]
        %v2963 = vld [vmem:[%s2567 + $0x51] sm:$0xff]
        %v2964 = vld [vmem:[%s2567 + $0x61] sm:$0xff]
        %v2965 = vld [vmem:[%s2567 + $0x69] sm:$0xff]
        %v2966 = vld [vmem:[%s2567 + $0x79] sm:$0xff]
        %v2967 = vld [vmem:[%s2567 + $0x81] sm:$0xff]
        %v2968 = vld [vmem:[%s2567 + $0x91] sm:$0xff]
        %v2969 = vld [vmem:[%s2567 + $0x99] sm:$0xff]
        %v2970 = vld [vmem:[%s2567 + $0xa9] sm:$0xff]
        %v2971 = vld [vmem:[%s2567 + $0xb1] sm:$0xff]
        %v2972 = vld [vmem:[%s2567 + $0xc1] sm:$0xff]
        %v2973 = vld [vmem:[%s2567 + $0xc9] sm:$0xff]
        %v2974 = vld [vmem:[%s2567 + $0xd9] sm:$0xff]
        %v2975 = vld [vmem:[%s2567 + $0xe1] sm:$0xff]
        %v2976 = vld [vmem:[%s2567 + $0xf1] sm:$0xff]
        %v2977 = vld [vmem:[%s2567 + $0xf9] sm:$0xff]
        %v2978 = vld [vmem:[%s2567 + $0x109] sm:$0xff]
        %v2979 = vld [vmem:[%s2567 + $0x111] sm:$0xff]
        %v2980 = vld [vmem:[%s2567 + $0x121] sm:$0xff]
        %v2981 = vld [vmem:[%s2567 + $0x129] sm:$0xff]
        %v2982 = vld [vmem:[%s2567 + $0x139] sm:$0xff]
        %v2983 = vld [vmem:[%s2567 + $0x141] sm:$0xff]
        %v2984 = vld [vmem:[%s2567 + $0x151] sm:$0xff]
        %v2985 = vld [vmem:[%s2567 + $0x159] sm:$0xff]
        %v2986 = vld [vmem:[%s2567 + $0x169] sm:$0xff]
        %v2987 = vld [vmem:[%s2567 + $0x171] sm:$0xff]
        %v2989 = vsel %vm214, %v2956, 0
        %v2992 = vsel %vm214, %v2957, 0
        %v2995 = vsel %vm214, %v2958, 0
        %v2998 = vsel %vm214, %v2959, 0
        %v3001 = vsel %vm214, %v2960, 0
        %v3004 = vsel %vm214, %v2961, 0
        %v3007 = vsel %vm214, %v2962, 0
        %v3010 = vsel %vm214, %v2963, 0
        %v3013 = vsel %vm214, %v2964, 0
        %v3016 = vsel %vm214, %v2965, 0
        %v3019 = vsel %vm214, %v2966, 0
        %v3022 = vsel %vm214, %v2967, 0
        %v3025 = vsel %vm214, %v2968, 0
        %v3028 = vsel %vm214, %v2969, 0
        %v3031 = vsel %vm214, %v2970, 0
        %v3034 = vsel %vm214, %v2971, 0
        %v3037 = vsel %vm214, %v2972, 0
        %v3040 = vsel %vm214, %v2973, 0
        %v3043 = vsel %vm214, %v2974, 0
        %v3046 = vsel %vm214, %v2975, 0
        %v3049 = vsel %vm214, %v2976, 0
        %v3052 = vsel %vm214, %v2977, 0
        %v3055 = vsel %vm214, %v2978, 0
        %v3058 = vsel %vm214, %v2979, 0
        %v3061 = vsel %vm214, %v2980, 0
        %v3064 = vsel %vm214, %v2981, 0
        %v3067 = vsel %vm214, %v2982, 0
        %v3070 = vsel %vm214, %v2983, 0
        %v3073 = vsel %vm214, %v2984, 0
        %v3076 = vsel %vm214, %v2985, 0
        %v3079 = vsel %vm214, %v2986, 0
        %v3082 = vsel %vm214, %v2987, 0
        %v3085 = vsel %vm462, %v300, 0
        %3087 = vmatprep.subr.mxu0 0.0
        %3088 = vmatpush1.msra.mxu0 %v3085
        %3089 = vmatprep.subr.mxu0 0.0
        %3090 = vmatpush1.msra.mxu0 0.0
        %3091 = vmatprep.subr.mxu0 0.0
        %3092 = vmatpush1.msra.mxu0 0.0
        %3093 = vmatprep.subr.mxu0 0.0
        %3094 = vmatpush1.msra.mxu0 0.0
        %3095 = vmatprep.subr.mxu0 0.0
        %3096 = vmatpush1.msra.mxu0 0.0
        %3097 = vmatprep.subr.mxu0 0.0
        %3098 = vmatpush1.msra.mxu0 0.0
        %3099 = vmatprep.subr.mxu0 0.0
        %3100 = vmatpush1.msra.mxu0 0.0
        %3101 = vmatprep.subr.mxu0 0.0
        %3102 = vmatpush1.msra.mxu0 0.0
        %3103 = vmatprep.subr.mxu0 0.0
        %3104 = vmatpush1.msra.mxu0 0.0
        %3105 = vmatprep.subr.mxu0 0.0
        %3106 = vmatpush1.msra.mxu0 0.0
        %3107 = vmatprep.subr.mxu0 0.0
        %3108 = vmatpush1.msra.mxu0 0.0
        %3109 = vmatprep.subr.mxu0 0.0
        %3110 = vmatpush1.msra.mxu0 0.0
        %3111 = vmatprep.subr.mxu0 0.0
        %3112 = vmatpush1.msra.mxu0 0.0
        %3113 = vmatprep.subr.mxu0 0.0
        %3114 = vmatpush1.msra.mxu0 0.0
        %3115 = vmatprep.subr.mxu0 0.0
        %3116 = vmatpush1.msra.mxu0 0.0
        %3117 = vmatprep.subr.mxu0 0.0
        %3118 = vmatpush1.msra.mxu0 0.0
        %3119 = vmatprep.subr.mxu0 0.0
        %3120 = vmatpush1.msra.mxu0 0.0
        %3121 = vmatprep.subr.mxu0 0.0
        %3122 = vmatpush1.msra.mxu0 0.0
        %3123 = vmatprep.subr.mxu0 0.0
        %3124 = vmatpush1.msra.mxu0 0.0
        %3125 = vmatprep.subr.mxu0 0.0
        %3126 = vmatpush1.msra.mxu0 0.0
        %3127 = vmatprep.subr.mxu0 0.0
        %3128 = vmatpush1.msra.mxu0 0.0
        %3129 = vmatprep.subr.mxu0 0.0
        %3130 = vmatpush1.msra.mxu0 0.0
        %3131 = vmatprep.subr.mxu0 0.0
        %3132 = vmatpush1.msra.mxu0 0.0
        %3133 = vmatprep.subr.mxu0 0.0
        %3134 = vmatpush1.msra.mxu0 0.0
        %3135 = vmatprep.subr.mxu0 0.0
        %3136 = vmatpush1.msra.mxu0 0.0
        %3137 = vmatprep.subr.mxu0 0.0
        %3138 = vmatpush1.msra.mxu0 0.0
        %3139 = vmatprep.subr.mxu0 0.0
        %3140 = vmatpush1.msra.mxu0 0.0
        %3141 = vmatprep.subr.mxu0 0.0
        %3142 = vmatpush1.msra.mxu0 0.0
        %3143 = vmatprep.subr.mxu0 0.0
        %3144 = vmatpush1.msra.mxu0 0.0
        %3145 = vmatprep.subr.mxu0 0.0
        %3146 = vmatpush1.msra.mxu0 0.0
        %3147 = vmatprep.subr.mxu0 0.0
        %3148 = vmatpush1.msra.mxu0 0.0
        %3149 = vmatprep.subr.mxu0 0.0
        %3150 = vmatpush1.msra.mxu0 0.0
        %3151 = vmatprep.mubr.f32.mxu0 0.0
        %3152 = vmatmul.mubr.f32.gmra.mrb[0].mxu0 %v2989
        %v3153 = vpop.f32.mrb[0].mxu0
        %v3154 = vadd.f32 0.0, %v3153
        %v3155 = vpop.f32.mrb[0].mxu0
        %3156 = vmatprep.mubr.f32.mxu0 0.0
        %3157 = vmatmul.mubr.f32.gmra.mrb[0].mxu0 %v2992
        %v3158 = vpop.f32.mrb[0].mxu0
        %v3159 = vadd.f32 0.0, %v3158
        %v3160 = vpop.f32.mrb[0].mxu0
        %3161 = vmatprep.mubr.f32.mxu0 0.0
        %3162 = vmatmul.mubr.f32.gmra.mrb[0].mxu0 %v2995
        %v3163 = vpop.f32.mrb[0].mxu0
        %v3164 = vadd.f32 0.0, %v3163
        %v3165 = vpop.f32.mrb[0].mxu0
        %3166 = vmatprep.mubr.f32.mxu0 0.0
        %3167 = vmatmul.mubr.f32.gmra.mrb[0].mxu0 %v2998
        %v3168 = vpop.f32.mrb[0].mxu0
        %v3169 = vadd.f32 0.0, %v3168
        %v3170 = vpop.f32.mrb[0].mxu0
        %3171 = vmatprep.mubr.f32.mxu0 0.0
        %3172 = vmatmul.mubr.f32.gmra.mrb[0].mxu0 %v3001
        %v3173 = vpop.f32.mrb[0].mxu0
        %v3174 = vadd.f32 0.0, %v3173
        %v3175 = vpop.f32.mrb[0].mxu0
        %3176 = vmatprep.mubr.f32.mxu0 0.0
        %3177 = vmatmul.mubr.f32.gmra.mrb[0].mxu0 %v3004
        %v3178 = vpop.f32.mrb[0].mxu0
        %v3179 = vadd.f32 0.0, %v3178
        %v3180 = vpop.f32.mrb[0].mxu0
        %3181 = vmatprep.mubr.f32.mxu0 0.0
        %3182 = vmatmul.mubr.f32.gmra.mrb[0].mxu0 %v3007
        %v3183 = vpop.f32.mrb[0].mxu0
        %v3184 = vadd.f32 0.0, %v3183
        %v3185 = vpop.f32.mrb[0].mxu0
        %3186 = vmatprep.mubr.f32.mxu0 0.0
        %3187 = vmatmul.mubr.f32.gmra.mrb[0].mxu0 %v3010
        %v3188 = vpop.f32.mrb[0].mxu0
        %v3189 = vadd.f32 0.0, %v3188
        %v3190 = vpop.f32.mrb[0].mxu0
        %3191 = vmatprep.mubr.f32.mxu0 0.0
        %3192 = vmatmul.mubr.f32.gmra.mrb[0].mxu0 %v3013
        %v3193 = vpop.f32.mrb[0].mxu0
        %v3194 = vadd.f32 0.0, %v3193
        %v3195 = vpop.f32.mrb[0].mxu0
        %3196 = vmatprep.mubr.f32.mxu0 0.0
        %3197 = vmatmul.mubr.f32.gmra.mrb[0].mxu0 %v3016
        %v3198 = vpop.f32.mrb[0].mxu0
        %v3199 = vadd.f32 0.0, %v3198
        %v3200 = vpop.f32.mrb[0].mxu0
        %3201 = vmatprep.mubr.f32.mxu0 0.0
        %3202 = vmatmul.mubr.f32.gmra.mrb[0].mxu0 %v3019
        %v3203 = vpop.f32.mrb[0].mxu0
        %v3204 = vadd.f32 0.0, %v3203
        %v3205 = vpop.f32.mrb[0].mxu0
        %3206 = vmatprep.mubr.f32.mxu0 0.0
        %3207 = vmatmul.mubr.f32.gmra.mrb[0].mxu0 %v3022
        %v3208 = vpop.f32.mrb[0].mxu0
        %v3209 = vadd.f32 0.0, %v3208
        %v3210 = vpop.f32.mrb[0].mxu0
        %3211 = vmatprep.mubr.f32.mxu0 0.0
        %3212 = vmatmul.mubr.f32.gmra.mrb[0].mxu0 %v3025
        %v3213 = vpop.f32.mrb[0].mxu0
        %v3214 = vadd.f32 0.0, %v3213
        %v3215 = vpop.f32.mrb[0].mxu0
        %3216 = vmatprep.mubr.f32.mxu0 0.0
        %3217 = vmatmul.mubr.f32.gmra.mrb[0].mxu0 %v3028
        %v3218 = vpop.f32.mrb[0].mxu0
        %v3219 = vadd.f32 0.0, %v3218
        %v3220 = vpop.f32.mrb[0].mxu0
        %3221 = vmatprep.mubr.f32.mxu0 0.0
        %3222 = vmatmul.mubr.f32.gmra.mrb[0].mxu0 %v3031
        %v3223 = vpop.f32.mrb[0].mxu0
        %v3224 = vadd.f32 0.0, %v3223
        %v3225 = vpop.f32.mrb[0].mxu0
        %3226 = vmatprep.mubr.f32.mxu0 0.0
        %3227 = vmatmul.mubr.f32.gmra.mrb[0].mxu0 %v3034
        %v3228 = vpop.f32.mrb[0].mxu0
        %v3229 = vadd.f32 0.0, %v3228
        %v3230 = vpop.f32.mrb[0].mxu0
        %3231 = vmatprep.mubr.f32.mxu0 0.0
        %3232 = vmatmul.mubr.f32.gmra.mrb[0].mxu0 %v3037
        %v3233 = vpop.f32.mrb[0].mxu0
        %v3234 = vadd.f32 0.0, %v3233
        %v3235 = vpop.f32.mrb[0].mxu0
        %3236 = vmatprep.mubr.f32.mxu0 0.0
        %3237 = vmatmul.mubr.f32.gmra.mrb[0].mxu0 %v3040
        %v3238 = vpop.f32.mrb[0].mxu0
        %v3239 = vadd.f32 0.0, %v3238
        %v3240 = vpop.f32.mrb[0].mxu0
        %3241 = vmatprep.mubr.f32.mxu0 0.0
        %3242 = vmatmul.mubr.f32.gmra.mrb[0].mxu0 %v3043
        %v3243 = vpop.f32.mrb[0].mxu0
        %v3244 = vadd.f32 0.0, %v3243
        %v3245 = vpop.f32.mrb[0].mxu0
        %3246 = vmatprep.mubr.f32.mxu0 0.0
        %3247 = vmatmul.mubr.f32.gmra.mrb[0].mxu0 %v3046
        %v3248 = vpop.f32.mrb[0].mxu0
        %v3249 = vadd.f32 0.0, %v3248
        %v3250 = vpop.f32.mrb[0].mxu0
        %3251 = vmatprep.mubr.f32.mxu0 0.0
        %3252 = vmatmul.mubr.f32.gmra.mrb[0].mxu0 %v3049
        %v3253 = vpop.f32.mrb[0].mxu0
        %v3254 = vadd.f32 0.0, %v3253
        %v3255 = vpop.f32.mrb[0].mxu0
        %3256 = vmatprep.mubr.f32.mxu0 0.0
        %3257 = vmatmul.mubr.f32.gmra.mrb[0].mxu0 %v3052
        %v3258 = vpop.f32.mrb[0].mxu0
        %v3259 = vadd.f32 0.0, %v3258
        %v3260 = vpop.f32.mrb[0].mxu0
        %3261 = vmatprep.mubr.f32.mxu0 0.0
        %3262 = vmatmul.mubr.f32.gmra.mrb[0].mxu0 %v3055
        %v3263 = vpop.f32.mrb[0].mxu0
        %v3264 = vadd.f32 0.0, %v3263
        %v3265 = vpop.f32.mrb[0].mxu0
        %3266 = vmatprep.mubr.f32.mxu0 0.0
        %3267 = vmatmul.mubr.f32.gmra.mrb[0].mxu0 %v3058
        %v3268 = vpop.f32.mrb[0].mxu0
        %v3269 = vadd.f32 0.0, %v3268
        %v3270 = vpop.f32.mrb[0].mxu0
        %3271 = vmatprep.mubr.f32.mxu0 0.0
        %3272 = vmatmul.mubr.f32.gmra.mrb[0].mxu0 %v3061
        %v3273 = vpop.f32.mrb[0].mxu0
        %v3274 = vadd.f32 0.0, %v3273
        %v3275 = vpop.f32.mrb[0].mxu0
        %3276 = vmatprep.mubr.f32.mxu0 0.0
        %3277 = vmatmul.mubr.f32.gmra.mrb[0].mxu0 %v3064
        %v3278 = vpop.f32.mrb[0].mxu0
        %v3279 = vadd.f32 0.0, %v3278
        %v3280 = vpop.f32.mrb[0].mxu0
        %3281 = vmatprep.mubr.f32.mxu0 0.0
        %3282 = vmatmul.mubr.f32.gmra.mrb[0].mxu0 %v3067
        %v3283 = vpop.f32.mrb[0].mxu0
        %v3284 = vadd.f32 0.0, %v3283
        %v3285 = vpop.f32.mrb[0].mxu0
        %3286 = vmatprep.mubr.f32.mxu0 0.0
        %3287 = vmatmul.mubr.f32.gmra.mrb[0].mxu0 %v3070
        %v3288 = vpop.f32.mrb[0].mxu0
        %v3289 = vadd.f32 0.0, %v3288
        %v3290 = vpop.f32.mrb[0].mxu0
        %3291 = vmatprep.mubr.f32.mxu0 0.0
        %3292 = vmatmul.mubr.f32.gmra.mrb[0].mxu0 %v3073
        %v3293 = vpop.f32.mrb[0].mxu0
        %v3294 = vadd.f32 0.0, %v3293
        %v3295 = vpop.f32.mrb[0].mxu0
        %3296 = vmatprep.mubr.f32.mxu0 0.0
        %3297 = vmatmul.mubr.f32.gmra.mrb[0].mxu0 %v3076
        %v3298 = vpop.f32.mrb[0].mxu0
        %v3299 = vadd.f32 0.0, %v3298
        %v3300 = vpop.f32.mrb[0].mxu0
        %3301 = vmatprep.mubr.f32.mxu0 0.0
        %3302 = vmatmul.mubr.f32.gmra.mrb[0].mxu0 %v3079
        %v3303 = vpop.f32.mrb[0].mxu0
        %v3304 = vadd.f32 0.0, %v3303
        %v3305 = vpop.f32.mrb[0].mxu0
        %3306 = vmatprep.mubr.f32.mxu0 0.0
        %3307 = vmatmul.mubr.f32.gmra.mrb[0].mxu0 %v3082
        %v3308 = vpop.f32.mrb[0].mxu0
        %v3309 = vadd.f32 0.0, %v3308
        %v3310 = vpop.f32.mrb[0].mxu0
        %3311 = vdwg.mxu0
        %v3312 = vadd.f32 %v2924, %v3154
        %v3313 = vadd.f32 %v2925, %v3159
        %v3314 = vadd.f32 %v2926, %v3164
        %v3315 = vadd.f32 %v2927, %v3169
        %v3316 = vadd.f32 %v2928, %v3174
        %v3317 = vadd.f32 %v2929, %v3179
        %v3318 = vadd.f32 %v2930, %v3184
        %v3319 = vadd.f32 %v2931, %v3189
        %v3320 = vadd.f32 %v2932, %v3194
        %v3321 = vadd.f32 %v2933, %v3199
        %v3322 = vadd.f32 %v2934, %v3204
        %v3323 = vadd.f32 %v2935, %v3209
        %v3324 = vadd.f32 %v2936, %v3214
        %v3325 = vadd.f32 %v2937, %v3219
        %v3326 = vadd.f32 %v2938, %v3224
        %v3327 = vadd.f32 %v2939, %v3229
        %v3328 = vadd.f32 %v2940, %v3234
        %v3329 = vadd.f32 %v2941, %v3239
        %v3330 = vadd.f32 %v2942, %v3244
        %v3331 = vadd.f32 %v2943, %v3249
        %v3332 = vadd.f32 %v2944, %v3254
        %v3333 = vadd.f32 %v2945, %v3259
        %v3334 = vadd.f32 %v2946, %v3264
        %v3335 = vadd.f32 %v2947, %v3269
        %v3336 = vadd.f32 %v2948, %v3274
        %v3337 = vadd.f32 %v2949, %v3279
        %v3338 = vadd.f32 %v2950, %v3284
        %v3339 = vadd.f32 %v2951, %v3289
        %v3340 = vadd.f32 %v2952, %v3294
        %v3341 = vadd.f32 %v2953, %v3299
        %v3342 = vadd.f32 %v2954, %v3304
        %v3343 = vadd.f32 %v2955, %v3309
        %v3344 = vld [vmem:[%s2567 + $0x2] sm:$0xff]
        %v3345 = vld [vmem:[%s2567 + $0xa] sm:$0xff]
        %v3346 = vld [vmem:[%s2567 + $0x1a] sm:$0xff]
        %v3347 = vld [vmem:[%s2567 + $0x22] sm:$0xff]
        %v3348 = vld [vmem:[%s2567 + $0x32] sm:$0xff]
        %v3349 = vld [vmem:[%s2567 + $0x3a] sm:$0xff]
        %v3350 = vld [vmem:[%s2567 + $0x4a] sm:$0xff]
        %v3351 = vld [vmem:[%s2567 + $0x52] sm:$0xff]
        %v3352 = vld [vmem:[%s2567 + $0x62] sm:$0xff]
        %v3353 = vld [vmem:[%s2567 + $0x6a] sm:$0xff]
        %v3354 = vld [vmem:[%s2567 + $0x7a] sm:$0xff]
        %v3355 = vld [vmem:[%s2567 + $0x82] sm:$0xff]
        %v3356 = vld [vmem:[%s2567 + $0x92] sm:$0xff]
        %v3357 = vld [vmem:[%s2567 + $0x9a] sm:$0xff]
        %v3358 = vld [vmem:[%s2567 + $0xaa] sm:$0xff]
        %v3359 = vld [vmem:[%s2567 + $0xb2] sm:$0xff]
        %v3360 = vld [vmem:[%s2567 + $0xc2] sm:$0xff]
        %v3361 = vld [vmem:[%s2567 + $0xca] sm:$0xff]
        %v3362 = vld [vmem:[%s2567 + $0xda] sm:$0xff]
        %v3363 = vld [vmem:[%s2567 + $0xe2] sm:$0xff]
        %v3364 = vld [vmem:[%s2567 + $0xf2] sm:$0xff]
        %v3365 = vld [vmem:[%s2567 + $0xfa] sm:$0xff]
        %v3366 = vld [vmem:[%s2567 + $0x10a] sm:$0xff]
        %v3367 = vld [vmem:[%s2567 + $0x112] sm:$0xff]
        %v3368 = vld [vmem:[%s2567 + $0x122] sm:$0xff]
        %v3369 = vld [vmem:[%s2567 + $0x12a] sm:$0xff]
        %v3370 = vld [vmem:[%s2567 + $0x13a] sm:$0xff]
        %v3371 = vld [vmem:[%s2567 + $0x142] sm:$0xff]
        %v3372 = vld [vmem:[%s2567 + $0x152] sm:$0xff]
        %v3373 = vld [vmem:[%s2567 + $0x15a] sm:$0xff]
        %v3374 = vld [vmem:[%s2567 + $0x16a] sm:$0xff]
        %v3375 = vld [vmem:[%s2567 + $0x172] sm:$0xff]
        %v3377 = vsel %vm214, %v3344, 0
        %v3380 = vsel %vm214, %v3345, 0
        %v3383 = vsel %vm214, %v3346, 0
        %v3386 = vsel %vm214, %v3347, 0
        %v3389 = vsel %vm214, %v3348, 0
        %v3392 = vsel %vm214, %v3349, 0
        %v3395 = vsel %vm214, %v3350, 0
        %v3398 = vsel %vm214, %v3351, 0
        %v3401 = vsel %vm214, %v3352, 0
        %v3404 = vsel %vm214, %v3353, 0
        %v3407 = vsel %vm214, %v3354, 0
        %v3410 = vsel %vm214, %v3355, 0
        %v3413 = vsel %vm214, %v3356, 0
        %v3416 = vsel %vm214, %v3357, 0
        %v3419 = vsel %vm214, %v3358, 0
        %v3422 = vsel %vm214, %v3359, 0
        %v3425 = vsel %vm214, %v3360, 0
        %v3428 = vsel %vm214, %v3361, 0
        %v3431 = vsel %vm214, %v3362, 0
        %v3434 = vsel %vm214, %v3363, 0
        %v3437 = vsel %vm214, %v3364, 0
        %v3440 = vsel %vm214, %v3365, 0
        %v3443 = vsel %vm214, %v3366, 0
        %v3446 = vsel %vm214, %v3367, 0
        %v3449 = vsel %vm214, %v3368, 0
        %v3452 = vsel %vm214, %v3369, 0
        %v3455 = vsel %vm214, %v3370, 0
        %v3458 = vsel %vm214, %v3371, 0
        %v3461 = vsel %vm214, %v3372, 0
        %v3464 = vsel %vm214, %v3373, 0
        %v3467 = vsel %vm214, %v3374, 0
        %v3470 = vsel %vm214, %v3375, 0
        %v3473 = vsel %vm462, %v301, 0
        %3475 = vmatprep.subr.mxu0 0.0
        %3476 = vmatpush1.msra.mxu0 %v3473
        %3477 = vmatprep.subr.mxu0 0.0
        %3478 = vmatpush1.msra.mxu0 0.0
        %3479 = vmatprep.subr.mxu0 0.0
        %3480 = vmatpush1.msra.mxu0 0.0
        %3481 = vmatprep.subr.mxu0 0.0
        %3482 = vmatpush1.msra.mxu0 0.0
        %3483 = vmatprep.subr.mxu0 0.0
        %3484 = vmatpush1.msra.mxu0 0.0
        %3485 = vmatprep.subr.mxu0 0.0
        %3486 = vmatpush1.msra.mxu0 0.0
        %3487 = vmatprep.subr.mxu0 0.0
        %3488 = vmatpush1.msra.mxu0 0.0
        %3489 = vmatprep.subr.mxu0 0.0
        %3490 = vmatpush1.msra.mxu0 0.0
        %3491 = vmatprep.subr.mxu0 0.0
        %3492 = vmatpush1.msra.mxu0 0.0
        %3493 = vmatprep.subr.mxu0 0.0
        %3494 = vmatpush1.msra.mxu0 0.0
        %3495 = vmatprep.subr.mxu0 0.0
        %3496 = vmatpush1.msra.mxu0 0.0
        %3497 = vmatprep.subr.mxu0 0.0
        %3498 = vmatpush1.msra.mxu0 0.0
        %3499 = vmatprep.subr.mxu0 0.0
        %3500 = vmatpush1.msra.mxu0 0.0
        %3501 = vmatprep.subr.mxu0 0.0
        %3502 = vmatpush1.msra.mxu0 0.0
        %3503 = vmatprep.subr.mxu0 0.0
        %3504 = vmatpush1.msra.mxu0 0.0
        %3505 = vmatprep.subr.mxu0 0.0
        %3506 = vmatpush1.msra.mxu0 0.0
        %3507 = vmatprep.subr.mxu0 0.0
        %3508 = vmatpush1.msra.mxu0 0.0
        %3509 = vmatprep.subr.mxu0 0.0
        %3510 = vmatpush1.msra.mxu0 0.0
        %3511 = vmatprep.subr.mxu0 0.0
        %3512 = vmatpush1.msra.mxu0 0.0
        %3513 = vmatprep.subr.mxu0 0.0
        %3514 = vmatpush1.msra.mxu0 0.0
        %3515 = vmatprep.subr.mxu0 0.0
        %3516 = vmatpush1.msra.mxu0 0.0
        %3517 = vmatprep.subr.mxu0 0.0
        %3518 = vmatpush1.msra.mxu0 0.0
        %3519 = vmatprep.subr.mxu0 0.0
        %3520 = vmatpush1.msra.mxu0 0.0
        %3521 = vmatprep.subr.mxu0 0.0
        %3522 = vmatpush1.msra.mxu0 0.0
        %3523 = vmatprep.subr.mxu0 0.0
        %3524 = vmatpush1.msra.mxu0 0.0
        %3525 = vmatprep.subr.mxu0 0.0
        %3526 = vmatpush1.msra.mxu0 0.0
        %3527 = vmatprep.subr.mxu0 0.0
        %3528 = vmatpush1.msra.mxu0 0.0
        %3529 = vmatprep.subr.mxu0 0.0
        %3530 = vmatpush1.msra.mxu0 0.0
        %3531 = vmatprep.subr.mxu0 0.0
        %3532 = vmatpush1.msra.mxu0 0.0
        %3533 = vmatprep.subr.mxu0 0.0
        %3534 = vmatpush1.msra.mxu0 0.0
        %3535 = vmatprep.subr.mxu0 0.0
        %3536 = vmatpush1.msra.mxu0 0.0
        %3537 = vmatprep.subr.mxu0 0.0
        %3538 = vmatpush1.msra.mxu0 0.0
        %3539 = vmatprep.mubr.f32.mxu0 0.0
        %3540 = vmatmul.mubr.f32.gmra.mrb[0].mxu0 %v3377
        %v3541 = vpop.f32.mrb[0].mxu0
        %v3542 = vadd.f32 0.0, %v3541
        %v3543 = vpop.f32.mrb[0].mxu0
        %3544 = vmatprep.mubr.f32.mxu0 0.0
        %3545 = vmatmul.mubr.f32.gmra.mrb[0].mxu0 %v3380
        %v3546 = vpop.f32.mrb[0].mxu0
        %v3547 = vadd.f32 0.0, %v3546
        %v3548 = vpop.f32.mrb[0].mxu0
        %3549 = vmatprep.mubr.f32.mxu0 0.0
        %3550 = vmatmul.mubr.f32.gmra.mrb[0].mxu0 %v3383
        %v3551 = vpop.f32.mrb[0].mxu0
        %v3552 = vadd.f32 0.0, %v3551
        %v3553 = vpop.f32.mrb[0].mxu0
        %3554 = vmatprep.mubr.f32.mxu0 0.0
        %3555 = vmatmul.mubr.f32.gmra.mrb[0].mxu0 %v3386
        %v3556 = vpop.f32.mrb[0].mxu0
        %v3557 = vadd.f32 0.0, %v3556
        %v3558 = vpop.f32.mrb[0].mxu0
        %3559 = vmatprep.mubr.f32.mxu0 0.0
        %3560 = vmatmul.mubr.f32.gmra.mrb[0].mxu0 %v3389
        %v3561 = vpop.f32.mrb[0].mxu0
        %v3562 = vadd.f32 0.0, %v3561
        %v3563 = vpop.f32.mrb[0].mxu0
        %3564 = vmatprep.mubr.f32.mxu0 0.0
        %3565 = vmatmul.mubr.f32.gmra.mrb[0].mxu0 %v3392
        %v3566 = vpop.f32.mrb[0].mxu0
        %v3567 = vadd.f32 0.0, %v3566
        %v3568 = vpop.f32.mrb[0].mxu0
        %3569 = vmatprep.mubr.f32.mxu0 0.0
        %3570 = vmatmul.mubr.f32.gmra.mrb[0].mxu0 %v3395
        %v3571 = vpop.f32.mrb[0].mxu0
        %v3572 = vadd.f32 0.0, %v3571
        %v3573 = vpop.f32.mrb[0].mxu0
        %3574 = vmatprep.mubr.f32.mxu0 0.0
        %3575 = vmatmul.mubr.f32.gmra.mrb[0].mxu0 %v3398
        %v3576 = vpop.f32.mrb[0].mxu0
        %v3577 = vadd.f32 0.0, %v3576
        %v3578 = vpop.f32.mrb[0].mxu0
        %3579 = vmatprep.mubr.f32.mxu0 0.0
        %3580 = vmatmul.mubr.f32.gmra.mrb[0].mxu0 %v3401
        %v3581 = vpop.f32.mrb[0].mxu0
        %v3582 = vadd.f32 0.0, %v3581
        %v3583 = vpop.f32.mrb[0].mxu0
        %3584 = vmatprep.mubr.f32.mxu0 0.0
        %3585 = vmatmul.mubr.f32.gmra.mrb[0].mxu0 %v3404
        %v3586 = vpop.f32.mrb[0].mxu0
        %v3587 = vadd.f32 0.0, %v3586
        %v3588 = vpop.f32.mrb[0].mxu0
        %3589 = vmatprep.mubr.f32.mxu0 0.0
        %3590 = vmatmul.mubr.f32.gmra.mrb[0].mxu0 %v3407
        %v3591 = vpop.f32.mrb[0].mxu0
        %v3592 = vadd.f32 0.0, %v3591
        %v3593 = vpop.f32.mrb[0].mxu0
        %3594 = vmatprep.mubr.f32.mxu0 0.0
        %3595 = vmatmul.mubr.f32.gmra.mrb[0].mxu0 %v3410
        %v3596 = vpop.f32.mrb[0].mxu0
        %v3597 = vadd.f32 0.0, %v3596
        %v3598 = vpop.f32.mrb[0].mxu0
        %3599 = vmatprep.mubr.f32.mxu0 0.0
        %3600 = vmatmul.mubr.f32.gmra.mrb[0].mxu0 %v3413
        %v3601 = vpop.f32.mrb[0].mxu0
        %v3602 = vadd.f32 0.0, %v3601
        %v3603 = vpop.f32.mrb[0].mxu0
        %3604 = vmatprep.mubr.f32.mxu0 0.0
        %3605 = vmatmul.mubr.f32.gmra.mrb[0].mxu0 %v3416
        %v3606 = vpop.f32.mrb[0].mxu0
        %v3607 = vadd.f32 0.0, %v3606
        %v3608 = vpop.f32.mrb[0].mxu0
        %3609 = vmatprep.mubr.f32.mxu0 0.0
        %3610 = vmatmul.mubr.f32.gmra.mrb[0].mxu0 %v3419
        %v3611 = vpop.f32.mrb[0].mxu0
        %v3612 = vadd.f32 0.0, %v3611
        %v3613 = vpop.f32.mrb[0].mxu0
        %3614 = vmatprep.mubr.f32.mxu0 0.0
        %3615 = vmatmul.mubr.f32.gmra.mrb[0].mxu0 %v3422
        %v3616 = vpop.f32.mrb[0].mxu0
        %v3617 = vadd.f32 0.0, %v3616
        %v3618 = vpop.f32.mrb[0].mxu0
        %3619 = vmatprep.mubr.f32.mxu0 0.0
        %3620 = vmatmul.mubr.f32.gmra.mrb[0].mxu0 %v3425
        %v3621 = vpop.f32.mrb[0].mxu0
        %v3622 = vadd.f32 0.0, %v3621
        %v3623 = vpop.f32.mrb[0].mxu0
        %3624 = vmatprep.mubr.f32.mxu0 0.0
        %3625 = vmatmul.mubr.f32.gmra.mrb[0].mxu0 %v3428
        %v3626 = vpop.f32.mrb[0].mxu0
        %v3627 = vadd.f32 0.0, %v3626
        %v3628 = vpop.f32.mrb[0].mxu0
        %3629 = vmatprep.mubr.f32.mxu0 0.0
        %3630 = vmatmul.mubr.f32.gmra.mrb[0].mxu0 %v3431
        %v3631 = vpop.f32.mrb[0].mxu0
        %v3632 = vadd.f32 0.0, %v3631
        %v3633 = vpop.f32.mrb[0].mxu0
        %3634 = vmatprep.mubr.f32.mxu0 0.0
        %3635 = vmatmul.mubr.f32.gmra.mrb[0].mxu0 %v3434
        %v3636 = vpop.f32.mrb[0].mxu0
        %v3637 = vadd.f32 0.0, %v3636
        %v3638 = vpop.f32.mrb[0].mxu0
        %3639 = vmatprep.mubr.f32.mxu0 0.0
        %3640 = vmatmul.mubr.f32.gmra.mrb[0].mxu0 %v3437
        %v3641 = vpop.f32.mrb[0].mxu0
        %v3642 = vadd.f32 0.0, %v3641
        %v3643 = vpop.f32.mrb[0].mxu0
        %3644 = vmatprep.mubr.f32.mxu0 0.0
        %3645 = vmatmul.mubr.f32.gmra.mrb[0].mxu0 %v3440
        %v3646 = vpop.f32.mrb[0].mxu0
        %v3647 = vadd.f32 0.0, %v3646
        %v3648 = vpop.f32.mrb[0].mxu0
        %3649 = vmatprep.mubr.f32.mxu0 0.0
        %3650 = vmatmul.mubr.f32.gmra.mrb[0].mxu0 %v3443
        %v3651 = vpop.f32.mrb[0].mxu0
        %v3652 = vadd.f32 0.0, %v3651
        %v3653 = vpop.f32.mrb[0].mxu0
        %3654 = vmatprep.mubr.f32.mxu0 0.0
        %3655 = vmatmul.mubr.f32.gmra.mrb[0].mxu0 %v3446
        %v3656 = vpop.f32.mrb[0].mxu0
        %v3657 = vadd.f32 0.0, %v3656
        %v3658 = vpop.f32.mrb[0].mxu0
        %3659 = vmatprep.mubr.f32.mxu0 0.0
        %3660 = vmatmul.mubr.f32.gmra.mrb[0].mxu0 %v3449
        %v3661 = vpop.f32.mrb[0].mxu0
        %v3662 = vadd.f32 0.0, %v3661
        %v3663 = vpop.f32.mrb[0].mxu0
        %3664 = vmatprep.mubr.f32.mxu0 0.0
        %3665 = vmatmul.mubr.f32.gmra.mrb[0].mxu0 %v3452
        %v3666 = vpop.f32.mrb[0].mxu0
        %v3667 = vadd.f32 0.0, %v3666
        %v3668 = vpop.f32.mrb[0].mxu0
        %3669 = vmatprep.mubr.f32.mxu0 0.0
        %3670 = vmatmul.mubr.f32.gmra.mrb[0].mxu0 %v3455
        %v3671 = vpop.f32.mrb[0].mxu0
        %v3672 = vadd.f32 0.0, %v3671
        %v3673 = vpop.f32.mrb[0].mxu0
        %3674 = vmatprep.mubr.f32.mxu0 0.0
        %3675 = vmatmul.mubr.f32.gmra.mrb[0].mxu0 %v3458
        %v3676 = vpop.f32.mrb[0].mxu0
        %v3677 = vadd.f32 0.0, %v3676
        %v3678 = vpop.f32.mrb[0].mxu0
        %3679 = vmatprep.mubr.f32.mxu0 0.0
        %3680 = vmatmul.mubr.f32.gmra.mrb[0].mxu0 %v3461
        %v3681 = vpop.f32.mrb[0].mxu0
        %v3682 = vadd.f32 0.0, %v3681
        %v3683 = vpop.f32.mrb[0].mxu0
        %3684 = vmatprep.mubr.f32.mxu0 0.0
        %3685 = vmatmul.mubr.f32.gmra.mrb[0].mxu0 %v3464
        %v3686 = vpop.f32.mrb[0].mxu0
        %v3687 = vadd.f32 0.0, %v3686
        %v3688 = vpop.f32.mrb[0].mxu0
        %3689 = vmatprep.mubr.f32.mxu0 0.0
        %3690 = vmatmul.mubr.f32.gmra.mrb[0].mxu0 %v3467
        %v3691 = vpop.f32.mrb[0].mxu0
        %v3692 = vadd.f32 0.0, %v3691
        %v3693 = vpop.f32.mrb[0].mxu0
        %3694 = vmatprep.mubr.f32.mxu0 0.0
        %3695 = vmatmul.mubr.f32.gmra.mrb[0].mxu0 %v3470
        %v3696 = vpop.f32.mrb[0].mxu0
        %v3697 = vadd.f32 0.0, %v3696
        %v3698 = vpop.f32.mrb[0].mxu0
        %3699 = vdwg.mxu0
        %v3700 = vadd.f32 %v3312, %v3542
        %v3701 = vadd.f32 %v3313, %v3547
        %v3702 = vadd.f32 %v3314, %v3552
        %v3703 = vadd.f32 %v3315, %v3557
        %v3704 = vadd.f32 %v3316, %v3562
        %v3705 = vadd.f32 %v3317, %v3567
        %v3706 = vadd.f32 %v3318, %v3572
        %v3707 = vadd.f32 %v3319, %v3577
        %v3708 = vadd.f32 %v3320, %v3582
        %v3709 = vadd.f32 %v3321, %v3587
        %v3710 = vadd.f32 %v3322, %v3592
        %v3711 = vadd.f32 %v3323, %v3597
        %v3712 = vadd.f32 %v3324, %v3602
        %v3713 = vadd.f32 %v3325, %v3607
        %v3714 = vadd.f32 %v3326, %v3612
        %v3715 = vadd.f32 %v3327, %v3617
        %v3716 = vadd.f32 %v3328, %v3622
        %v3717 = vadd.f32 %v3329, %v3627
        %v3718 = vadd.f32 %v3330, %v3632
        %v3719 = vadd.f32 %v3331, %v3637
        %v3720 = vadd.f32 %v3332, %v3642
        %v3721 = vadd.f32 %v3333, %v3647
        %v3722 = vadd.f32 %v3334, %v3652
        %v3723 = vadd.f32 %v3335, %v3657
        %v3724 = vadd.f32 %v3336, %v3662
        %v3725 = vadd.f32 %v3337, %v3667
        %v3726 = vadd.f32 %v3338, %v3672
        %v3727 = vadd.f32 %v3339, %v3677
        %v3728 = vadd.f32 %v3340, %v3682
        %v3729 = vadd.f32 %v3341, %v3687
        %v3730 = vadd.f32 %v3342, %v3692
        %v3731 = vadd.f32 %v3343, %v3697
        %vm3732 = vcmask 64512
        %3733 = vst.msk [vmem:[%s181] sm:$0xff] %vm3732, %v3700
        %3734 = vst.msk [vmem:[%s181 + $0x8] sm:$0xff] %vm3732, %v3701
        %3735 = vst.msk [vmem:[%s181 + $0x10] sm:$0xff] %vm3732, %v3702
        %3736 = vst.msk [vmem:[%s181 + $0x18] sm:$0xff] %vm3732, %v3703
        %3737 = vst.msk [vmem:[%s181 + $0x20] sm:$0xff] %vm3732, %v3704
        %3738 = vst.msk [vmem:[%s181 + $0x28] sm:$0xff] %vm3732, %v3705
        %3739 = vst.msk [vmem:[%s181 + $0x30] sm:$0xff] %vm3732, %v3706
        %3740 = vst.msk [vmem:[%s181 + $0x38] sm:$0xff] %vm3732, %v3707
        %3741 = vst.msk [vmem:[%s181 + $0x40] sm:$0xff] %vm3732, %v3708
        %3742 = vst.msk [vmem:[%s181 + $0x48] sm:$0xff] %vm3732, %v3709
        %3743 = vst.msk [vmem:[%s181 + $0x50] sm:$0xff] %vm3732, %v3710
        %3744 = vst.msk [vmem:[%s181 + $0x58] sm:$0xff] %vm3732, %v3711
        %3745 = vst.msk [vmem:[%s181 + $0x60] sm:$0xff] %vm3732, %v3712
        %3746 = vst.msk [vmem:[%s181 + $0x68] sm:$0xff] %vm3732, %v3713
        %3747 = vst.msk [vmem:[%s181 + $0x70] sm:$0xff] %vm3732, %v3714
        %3748 = vst.msk [vmem:[%s181 + $0x78] sm:$0xff] %vm3732, %v3715
        %3749 = vst.msk [vmem:[%s181 + $0x80] sm:$0xff] %vm3732, %v3716
        %3750 = vst.msk [vmem:[%s181 + $0x88] sm:$0xff] %vm3732, %v3717
        %3751 = vst.msk [vmem:[%s181 + $0x90] sm:$0xff] %vm3732, %v3718
        %3752 = vst.msk [vmem:[%s181 + $0x98] sm:$0xff] %vm3732, %v3719
        %3753 = vst.msk [vmem:[%s181 + $0xa0] sm:$0xff] %vm3732, %v3720
        %3754 = vst.msk [vmem:[%s181 + $0xa8] sm:$0xff] %vm3732, %v3721
        %3755 = vst.msk [vmem:[%s181 + $0xb0] sm:$0xff] %vm3732, %v3722
        %3756 = vst.msk [vmem:[%s181 + $0xb8] sm:$0xff] %vm3732, %v3723
        %3757 = vst.msk [vmem:[%s181 + $0xc0] sm:$0xff] %vm3732, %v3724
        %3758 = vst.msk [vmem:[%s181 + $0xc8] sm:$0xff] %vm3732, %v3725
        %3759 = vst.msk [vmem:[%s181 + $0xd0] sm:$0xff] %vm3732, %v3726
        %3760 = vst.msk [vmem:[%s181 + $0xd8] sm:$0xff] %vm3732, %v3727
        %3761 = vst.msk [vmem:[%s181 + $0xe0] sm:$0xff] %vm3732, %v3728
        %3762 = vst.msk [vmem:[%s181 + $0xe8] sm:$0xff] %vm3732, %v3729
        %3763 = vst.msk [vmem:[%s181 + $0xf0] sm:$0xff] %vm3732, %v3730
        %3764 = vst.msk [vmem:[%s181 + $0xf8] sm:$0xff] %vm3732, %v3731
        %v3765 = vsel %vm3732, %v3700, 0.0
        %v3766 = vsel %vm3732, %v3701, 0.0
        %v3767 = vadd.f32 %v3765, %v3766
        %v3768 = vsel %vm3732, %v3702, 0.0
        %v3769 = vadd.f32 %v3767, %v3768
        %v3770 = vsel %vm3732, %v3703, 0.0
        %v3771 = vadd.f32 %v3769, %v3770
        %v3772 = vsel %vm3732, %v3704, 0.0
        %v3773 = vadd.f32 %v3771, %v3772
        %v3774 = vsel %vm3732, %v3705, 0.0
        %v3775 = vadd.f32 %v3773, %v3774
        %v3776 = vsel %vm3732, %v3706, 0.0
        %v3777 = vadd.f32 %v3775, %v3776
        %v3778 = vsel %vm3732, %v3707, 0.0
        %v3779 = vadd.f32 %v3777, %v3778
        %v3780 = vsel %vm3732, %v3708, 0.0
        %v3781 = vadd.f32 %v3779, %v3780
        %v3782 = vsel %vm3732, %v3709, 0.0
        %v3783 = vadd.f32 %v3781, %v3782
        %v3784 = vsel %vm3732, %v3710, 0.0
        %v3785 = vadd.f32 %v3783, %v3784
        %v3786 = vsel %vm3732, %v3711, 0.0
        %v3787 = vadd.f32 %v3785, %v3786
        %v3788 = vsel %vm3732, %v3712, 0.0
        %v3789 = vadd.f32 %v3787, %v3788
        %v3790 = vsel %vm3732, %v3713, 0.0
        %v3791 = vadd.f32 %v3789, %v3790
        %v3792 = vsel %vm3732, %v3714, 0.0
        %v3793 = vadd.f32 %v3791, %v3792
        %v3794 = vsel %vm3732, %v3715, 0.0
        %v3795 = vadd.f32 %v3793, %v3794
        %v3796 = vsel %vm3732, %v3716, 0.0
        %v3797 = vadd.f32 %v3795, %v3796
        %v3798 = vsel %vm3732, %v3717, 0.0
        %v3799 = vadd.f32 %v3797, %v3798
        %v3800 = vsel %vm3732, %v3718, 0.0
        %v3801 = vadd.f32 %v3799, %v3800
        %v3802 = vsel %vm3732, %v3719, 0.0
        %v3803 = vadd.f32 %v3801, %v3802
        %v3804 = vsel %vm3732, %v3720, 0.0
        %v3805 = vadd.f32 %v3803, %v3804
        %v3806 = vsel %vm3732, %v3721, 0.0
        %v3807 = vadd.f32 %v3805, %v3806
        %v3808 = vsel %vm3732, %v3722, 0.0
        %v3809 = vadd.f32 %v3807, %v3808
        %v3810 = vsel %vm3732, %v3723, 0.0
        %v3811 = vadd.f32 %v3809, %v3810
        %v3812 = vsel %vm3732, %v3724, 0.0
        %v3813 = vadd.f32 %v3811, %v3812
        %v3814 = vsel %vm3732, %v3725, 0.0
        %v3815 = vadd.f32 %v3813, %v3814
        %v3816 = vsel %vm3732, %v3726, 0.0
        %v3817 = vadd.f32 %v3815, %v3816
        %v3818 = vsel %vm3732, %v3727, 0.0
        %v3819 = vadd.f32 %v3817, %v3818
        %v3820 = vsel %vm3732, %v3728, 0.0
        %v3821 = vadd.f32 %v3819, %v3820
        %v3822 = vsel %vm3732, %v3729, 0.0
        %v3823 = vadd.f32 %v3821, %v3822
        %v3824 = vsel %vm3732, %v3730, 0.0
        %v3825 = vadd.f32 %v3823, %v3824
        %v3826 = vsel %vm3732, %v3731, 0.0
        %v3827 = vadd.f32 %v3825, %v3826
        %v3828 = vrot.slane %v3827, 4
        %v3829 = vadd.f32 %v3827, %v3828
        %v3830 = vrot.slane %v3829, 2
        %v3831 = vadd.f32 %v3829, %v3830
        %v3832 = vrot.slane %v3831, 1
        %v3833 = vadd.f32 %v3831, %v3832
        %v3834 = vmul.f32 %v3700, %v3700
        %v3835 = vmul.f32 %v3701, %v3701
        %v3836 = vmul.f32 %v3702, %v3702
        %v3837 = vmul.f32 %v3703, %v3703
        %v3838 = vmul.f32 %v3704, %v3704
        %v3839 = vmul.f32 %v3705, %v3705
        %v3840 = vmul.f32 %v3706, %v3706
        %v3841 = vmul.f32 %v3707, %v3707
        %v3842 = vmul.f32 %v3708, %v3708
        %v3843 = vmul.f32 %v3709, %v3709
        %v3844 = vmul.f32 %v3710, %v3710
        %v3845 = vmul.f32 %v3711, %v3711
        %v3846 = vmul.f32 %v3712, %v3712
        %v3847 = vmul.f32 %v3713, %v3713
        %v3848 = vmul.f32 %v3714, %v3714
        %v3849 = vmul.f32 %v3715, %v3715
        %v3850 = vmul.f32 %v3716, %v3716
        %v3851 = vmul.f32 %v3717, %v3717
        %v3852 = vmul.f32 %v3718, %v3718
        %v3853 = vmul.f32 %v3719, %v3719
        %v3854 = vmul.f32 %v3720, %v3720
        %v3855 = vmul.f32 %v3721, %v3721
        %v3856 = vmul.f32 %v3722, %v3722
        %v3857 = vmul.f32 %v3723, %v3723
        %v3858 = vmul.f32 %v3724, %v3724
        %v3859 = vmul.f32 %v3725, %v3725
        %v3860 = vmul.f32 %v3726, %v3726
        %v3861 = vmul.f32 %v3727, %v3727
        %v3862 = vmul.f32 %v3728, %v3728
        %v3863 = vmul.f32 %v3729, %v3729
        %v3864 = vmul.f32 %v3730, %v3730
        %v3865 = vmul.f32 %v3731, %v3731
        %v3866 = vsel %vm3732, %v3834, 0.0
        %v3867 = vsel %vm3732, %v3835, 0.0
        %v3868 = vadd.f32 %v3866, %v3867
        %v3869 = vsel %vm3732, %v3836, 0.0
        %v3870 = vadd.f32 %v3868, %v3869
        %v3871 = vsel %vm3732, %v3837, 0.0
        %v3872 = vadd.f32 %v3870, %v3871
        %v3873 = vsel %vm3732, %v3838, 0.0
        %v3874 = vadd.f32 %v3872, %v3873
        %v3875 = vsel %vm3732, %v3839, 0.0
        %v3876 = vadd.f32 %v3874, %v3875
        %v3877 = vsel %vm3732, %v3840, 0.0
        %v3878 = vadd.f32 %v3876, %v3877
        %v3879 = vsel %vm3732, %v3841, 0.0
        %v3880 = vadd.f32 %v3878, %v3879
        %v3881 = vsel %vm3732, %v3842, 0.0
        %v3882 = vadd.f32 %v3880, %v3881
        %v3883 = vsel %vm3732, %v3843, 0.0
        %v3884 = vadd.f32 %v3882, %v3883
        %v3885 = vsel %vm3732, %v3844, 0.0
        %v3886 = vadd.f32 %v3884, %v3885
        %v3887 = vsel %vm3732, %v3845, 0.0
        %v3888 = vadd.f32 %v3886, %v3887
        %v3889 = vsel %vm3732, %v3846, 0.0
        %v3890 = vadd.f32 %v3888, %v3889
        %v3891 = vsel %vm3732, %v3847, 0.0
        %v3892 = vadd.f32 %v3890, %v3891
        %v3893 = vsel %vm3732, %v3848, 0.0
        %v3894 = vadd.f32 %v3892, %v3893
        %v3895 = vsel %vm3732, %v3849, 0.0
        %v3896 = vadd.f32 %v3894, %v3895
        %v3897 = vsel %vm3732, %v3850, 0.0
        %v3898 = vadd.f32 %v3896, %v3897
        %v3899 = vsel %vm3732, %v3851, 0.0
        %v3900 = vadd.f32 %v3898, %v3899
        %v3901 = vsel %vm3732, %v3852, 0.0
        %v3902 = vadd.f32 %v3900, %v3901
        %v3903 = vsel %vm3732, %v3853, 0.0
        %v3904 = vadd.f32 %v3902, %v3903
        %v3905 = vsel %vm3732, %v3854, 0.0
        %v3906 = vadd.f32 %v3904, %v3905
        %v3907 = vsel %vm3732, %v3855, 0.0
        %v3908 = vadd.f32 %v3906, %v3907
        %v3909 = vsel %vm3732, %v3856, 0.0
        %v3910 = vadd.f32 %v3908, %v3909
        %v3911 = vsel %vm3732, %v3857, 0.0
        %v3912 = vadd.f32 %v3910, %v3911
        %v3913 = vsel %vm3732, %v3858, 0.0
        %v3914 = vadd.f32 %v3912, %v3913
        %v3915 = vsel %vm3732, %v3859, 0.0
        %v3916 = vadd.f32 %v3914, %v3915
        %v3917 = vsel %vm3732, %v3860, 0.0
        %v3918 = vadd.f32 %v3916, %v3917
        %v3919 = vsel %vm3732, %v3861, 0.0
        %v3920 = vadd.f32 %v3918, %v3919
        %v3921 = vsel %vm3732, %v3862, 0.0
        %v3922 = vadd.f32 %v3920, %v3921
        %v3923 = vsel %vm3732, %v3863, 0.0
        %v3924 = vadd.f32 %v3922, %v3923
        %v3925 = vsel %vm3732, %v3864, 0.0
        %v3926 = vadd.f32 %v3924, %v3925
        %v3927 = vsel %vm3732, %v3865, 0.0
        %v3928 = vadd.f32 %v3926, %v3927
        %v3929 = vrot.slane %v3928, 4
        %v3930 = vadd.f32 %v3928, %v3929
        %v3931 = vrot.slane %v3930, 2
        %v3932 = vadd.f32 %v3930, %v3931
        %v3933 = vrot.slane %v3932, 1
        %v3934 = vadd.f32 %v3932, %v3933
        %vm3935 = vcmask 1040384
        %v3936 = vsel %vm3935, %v3833, %v3934
        %vm3937 = vcmask 1041408
        %v3938 = vsel %vm3937, %v3936, 0.0
        %3939 = vst.msk [vmem:[%s171] sm:$0xff] %vm3732, %v3938
        %p3940 = scmp.lt.s32.totalorder %s18, 1
        %s3941 = scalar_select %p3940, %s18, 1
        %s3942 = smul.addr %s3941, 32
        %s3943 = smul.addr %s3942, 8
        %s3944 = scalar_lea.vmem %s2, %s3943
        %s3945 = sand.u32 %s99, 1
        %s3946 = scalar_lea.sflag [#allocation4], %s3945
        %s3947 = sand.u32 %s99, 1
        %s3948 = smul.addr %s3947, 8
        %s3949 = scalar_lea.vmem [#allocation3], %s3948
        // Predicated region
        $region29: #{tpu_custom_call.1} parent=27 // pred_check
          %p3950 = pneg %p83
        $region30: #{tpu_custom_call.1} parent=27 // pred_check_branch
          %3952 = sbr.rel (%p3950) target = $region32
        $region31: #{tpu_custom_call.1} parent=27 // pred_region
          _
        $region32: #{tpu_custom_call.1} parent=27 // pred_fallthru
          _
        // Predicated region
        $region33: #{tpu_custom_call.1} parent=27 // pred_check
          %p3953 = pneg %p109
        $region34: #{tpu_custom_call.1} parent=27 // pred_check_branch
          %3955 = sbr.rel (%p3953) target = $region36
        $region35: #{tpu_custom_call.1} parent=27 // pred_region
          %s3957 = ssub.s32 128, 128
          %3958 = vsyncadd %s3946, %s3957
          %s3959 = smul.addr %s18, 128
          %s3960 = scalar_lea.hbm %s3, %s3959
          %s3962 = sshll.u32 %s3949, 4
          %s3963 = int_to_ptr.vmem [resolvable:$true] %s3962
          %3965 = dma.vmem_to_hbm [thread:$0]  %s3963, 128, %s3960, %s3946
        $region36: #{tpu_custom_call.1} parent=27 // pred_fallthru
          _
      $region28: #{tpu_custom_call.1} parent=5 // pred_fallthru
        _
      %p3966 = scmp.le.s32.totalorder 2, %s13
      // Predicated region
      $region37: #{tpu_custom_call.1} parent=5 // pred_check
        %p3967 = pneg %p3966
      $region38: #{tpu_custom_call.1} parent=5 // pred_check_branch
        %3969 = sbr.rel (%p3967) target = $region40
      $region39: #{tpu_custom_call.1} parent=5 // pred_region
        %s3970 = ssub.s32 %s13, 2
        // Predicated region
        $region41: #{tpu_custom_call.1} parent=39 // pred_check
          %p3971 = pneg %p89
        $region42: #{tpu_custom_call.1} parent=39 // pred_check_branch
          %3973 = sbr.rel (%p3971) target = $region44
        $region43: #{tpu_custom_call.1} parent=39 // pred_region
          %p3974 = scmp.lt.s32.totalorder %s19, 1
          %s3975 = scalar_select %p3974, %s19, 1
          %s3976 = smul.addr %s3975, 32
          %s3977 = smul.addr %s3976, 8
          %s3978 = scalar_lea.vmem %s2, %s3977
        $region44: #{tpu_custom_call.1} parent=39 // pred_fallthru
          _
        // Predicated region
        $region45: #{tpu_custom_call.1} parent=39 // pred_check
          %p3979 = pneg %p115
        $region46: #{tpu_custom_call.1} parent=39 // pred_check_branch
          %3981 = sbr.rel (%p3979) target = $region48
        $region47: #{tpu_custom_call.1} parent=39 // pred_region
          %s3982 = sand.u32 %s100, 1
          %s3983 = scalar_lea.sflag [#allocation4], %s3982
          %s3984 = sand.u32 %s100, 1
          %s3985 = smul.addr %s3984, 8
          %s3986 = scalar_lea.vmem [#allocation3], %s3985
          %3987 = dma.done %s3983, 128
        $region48: #{tpu_custom_call.1} parent=39 // pred_fallthru
          _
      $region40: #{tpu_custom_call.1} parent=5 // pred_fallthru
        _
    $region6: #{tpu_custom_call.1} parent=1 // loop_footer
      %s17 = sadd.s32 1, %s13
    $region7: #{tpu_custom_call.1} parent=1 // loop_footer_branch
      %12 = sbr.rel target = $region3
    $region8: #{tpu_custom_call.1} parent=1 // loop_exit
      _
    %3988 = vsyncpa [#allocation4], 1
    %s3989 = scalar_lea.sflag [#allocation4], 1
    %3990 = vsyncpa %s3989, 1

</llo_original>
